<compile_context>
chip_gen: v5e
topology: v5e:2x2
jax: 0.10.0
libtpu: 0.0.40
codegen_flags: <defaults>
</compile_context>

<pallas_src>
import math

import jax
import jax.numpy as jnp
from jax import lax
from jax.experimental import pallas as pl
from jax.experimental.pallas import tpu as pltpu


def _round_up(x, m):
    return ((x + m - 1) // m) * m


# ----------------------------------------------------------------------------
# Fused SRSC kernel: pooled features + encoder LSTM + attention pointer decoder
# ----------------------------------------------------------------------------
def _make_srsc_kernel(B, L, Fp, Hp):
    def kernel(x_ref, bw_ref, bb_ref,
               ewih_ref, ewhh_ref, eb_ref,
               dw_ref, db_ref,
               w1_ref, w2_ref, v_ref, start_ref,
               out_ref, ptr_ref):
        # -------- base network: global avg pool + FC + ReLU for all B*L clips at once
        x = x_ref[...]                                          # (B*L, C, S)
        pooled = jnp.mean(x, axis=-1)                           # (B*L, C)
        feats_all = jnp.maximum(
            jnp.dot(pooled, bw_ref[...], preferred_element_type=jnp.float32)
            + bb_ref[...], 0.0)                                 # (B*L, Fp)  lane-dense
        feats = jnp.reshape(feats_all, (B, L, Fp))              # (B, L, Fp)

        # -------- hoisted loop-invariant weights / biases
        e_whh = ewhh_ref[...]                                   # (Hp, 4Hp)
        dec_w = dw_ref[...]                                     # (Fp+Hp, 4Hp) fused [Wih;Whh]
        dec_b = jnp.broadcast_to(db_ref[...], (B, 4 * Hp))      # (B, 4Hp) broadcast once
        w1 = w1_ref[...]
        w2 = w2_ref[...]
        v = jnp.reshape(v_ref[...], (1, 1, Hp))

        def gates(g, c):
            # every gate occupies a full 128-lane-aligned slab (Hp = round_up(H,128))
            i_g = jax.nn.sigmoid(g[:, 0 * Hp:1 * Hp])           # PyTorch gate order i,f,g,o
            f_g = jax.nn.sigmoid(g[:, 1 * Hp:2 * Hp])
            g_g = jnp.tanh(g[:, 2 * Hp:3 * Hp])
            o_g = jax.nn.sigmoid(g[:, 3 * Hp:4 * Hp])
            c_new = f_g * c + i_g * g_g
            h_new = o_g * jnp.tanh(c_new)
            return h_new, c_new

        # -------- encoder LSTM over the tuple axis
        # all L input projections in one matmul (only h @ Whh stays on the serial chain)
        x_proj = (jnp.dot(feats_all, ewih_ref[...], preferred_element_type=jnp.float32)
                  + eb_ref[...])                                # (B*L, 4Hp)
        x_proj = jnp.reshape(x_proj, (B, L, 4 * Hp))

        h = jnp.zeros((B, Hp), jnp.float32)
        c = jnp.zeros((B, Hp), jnp.float32)
        enc_hs = []
        for t in range(L):
            g = x_proj[:, t, :] + jnp.dot(h, e_whh, preferred_element_type=jnp.float32)
            h, c = gates(g, c)
            enc_hs.append(h)

        # encoder-state projections for additive attention: one stacked matmul
        enc_cat = jnp.concatenate(enc_hs, axis=0)               # (L*B, Hp)
        enc_proj_cat = jnp.dot(enc_cat, w1, preferred_element_type=jnp.float32)
        enc_proj = jnp.stack([enc_proj_cat[t * B:(t + 1) * B] for t in range(L)],
                             axis=1)                            # (B, L, Hp)

        # -------- pointer decoder (greedy argmax, like torch.argmax)
        dec_h, dec_c = h, c
        dec_x = jnp.broadcast_to(start_ref[...], (B, Fp))       # learned start token
        mask = jnp.zeros((B, L), jnp.float32)
        iota = lax.broadcasted_iota(jnp.int32, (B, L), 1)

        score_rows = []
        ptr_cols = []
        for _ in range(L):
            dec_in = jnp.concatenate([dec_x, dec_h], axis=1)    # (B, Fp+Hp), vreg-aligned
            g = jnp.dot(dec_in, dec_w, preferred_element_type=jnp.float32) + dec_b
            dec_h, dec_c = gates(g, dec_c)
            q = jnp.dot(dec_h, w2, preferred_element_type=jnp.float32)       # (B, Hp)

            # vectorized additive attention over all L encoder states
            e = jnp.tanh(enc_proj + q[:, None, :])              # (B, L, Hp)
            scores = jnp.sum(e * v, axis=-1)                    # (B, L)
            masked = scores + mask                              # picked positions -> ~-1e9

            max_v = jnp.max(masked, axis=-1, keepdims=True)
            is_max = masked >= max_v
            idx = jnp.min(jnp.where(is_max, iota, L), axis=-1, keepdims=True)  # (B,1) int32
            onehot = (iota == idx).astype(jnp.float32)          # (B, L)

            # next decoder input = feature of the chosen clip (gather via one-hot)
            dec_x = jnp.sum(feats * onehot[:, :, None], axis=1)  # (B, Fp)
            mask = mask + onehot * (-1e9)

            score_rows.append(jnp.reshape(masked, (B, 1, L)))
            ptr_cols.append(idx)

        out_ref[...] = jnp.concatenate(score_rows, axis=1)                     # (B, L, L)
        ptr_ref[...] = jnp.concatenate(ptr_cols, axis=1).astype(jnp.int32)     # (B, L)

    return kernel


# ----------------------------------------------------------------------------
# Parameter padding: pad feature/hidden lanes to multiples of 128 (exact zeros)
# ----------------------------------------------------------------------------
def _pad2(a, rows, cols):
    return jnp.pad(a, ((0, rows - a.shape[0]), (0, cols - a.shape[1])))


def _prepare_params(params, F, H, Fp, Hp):
    def pad_gates(w, in_pad):
        # (in_dim, 4H) -> (in_pad, 4*Hp); gate k's H columns land at [k*Hp, k*Hp + H)
        cols = [jnp.pad(w[:, k * H:(k + 1) * H], ((0, 0), (0, Hp - H))) for k in range(4)]
        wg = jnp.concatenate(cols, axis=1)
        return jnp.pad(wg, ((0, in_pad - wg.shape[0]), (0, 0)))

    dec_wih = pad_gates(params["dec_wih"], Fp)
    dec_whh = pad_gates(params["dec_whh"], Hp)
    return dict(
        base_w=_pad2(params["base_w"], params["base_w"].shape[0], Fp),
        base_b=_pad2(params["base_b"], 1, Fp),
        enc_wih=pad_gates(params["enc_wih"], Fp),
        enc_whh=pad_gates(params["enc_whh"], Hp),
        enc_b=pad_gates(params["enc_b"], 1),
        dec_w=jnp.concatenate([dec_wih, dec_whh], axis=0),      # fused [Wih; Whh]
        dec_b=pad_gates(params["dec_b"], 1),
        w1=_pad2(params["w1"], Hp, Hp),
        w2=_pad2(params["w2"], Hp, Hp),
        v=_pad2(params["v"], 1, Hp),
        start=_pad2(params["start"], 1, Fp),
    )


# ----------------------------------------------------------------------------
# SRSC forward
# ----------------------------------------------------------------------------
def srsc_forward(X, params):
    B, L, C, T, Hs, Ws = X.shape
    S = T * Hs * Ws
    F = params["base_w"].shape[1]
    H = params["enc_whh"].shape[0]
    Fp = _round_up(F, 128)
    Hp = _round_up(H, 128)

    x_flat = X.reshape(B * L, C, S)
    p = _prepare_params(params, F, H, Fp, Hp)

    kernel = _make_srsc_kernel(B, L, Fp, Hp)
    vmem = pl.BlockSpec(memory_space=pltpu.MemorySpace.VMEM)
    out_shapes = (jax.ShapeDtypeStruct((B, L, L), jnp.float32),
                  jax.ShapeDtypeStruct((B, L), jnp.int32))
    outputs, pointers = pl.pallas_call(
        kernel,
        out_shape=out_shapes,
        in_specs=[vmem] * 12,
        out_specs=(vmem, vmem),
    )(x_flat,
      p["base_w"], p["base_b"],
      p["enc_wih"], p["enc_whh"], p["enc_b"],
      p["dec_w"], p["dec_b"],
      p["w1"], p["w2"], p["v"], p["start"])
    return outputs, pointers


def init_params(key, C, feature_size, hidden_dim):
    F, H = feature_size, hidden_dim
    ks = jax.random.split(key, 12)
    u = lambda k, shape, s: jax.random.uniform(k, shape, jnp.float32, -s, s)
    kc, kh, kf = 1.0 / math.sqrt(C), 1.0 / math.sqrt(H), 1.0 / math.sqrt(F)
    return dict(
        base_w=u(ks[0], (C, F), kc),
        base_b=u(ks[1], (1, F), kc),
        enc_wih=u(ks[2], (F, 4 * H), kh),
        enc_whh=u(ks[3], (H, 4 * H), kh),
        enc_b=u(ks[4], (1, 4 * H), kh),
        dec_wih=u(ks[5], (F, 4 * H), kh),
        dec_whh=u(ks[6], (H, 4 * H), kh),
        dec_b=u(ks[7], (1, 4 * H), kh),
        w1=u(ks[8], (H, H), kh),
        w2=u(ks[9], (H, H), kh),
        v=u(ks[10], (1, H), kh),
        start=u(ks[11], (1, F), kf),
    )


if __name__ == "__main__":
    B, L = 2, 4                       # batch, tuple_len
    C, T, Hs, Ws = 3, 4, 8, 8         # per-clip NCTHW
    feature_size = input_dim = 32     # feature_size == input_dim (module assert)
    hidden_dim = 32

    key = jax.random.PRNGKey(0)
    kx, kp = jax.random.split(key)
    X = jax.random.normal(kx, (B, L, C, T, Hs, Ws), jnp.float32)
    params = init_params(kp, C, feature_size, hidden_dim)

    fwd = jax.jit(srsc_forward)
    outputs, pointers = fwd(X, params)
    jax.block_until_ready((outputs, pointers))

    assert outputs.shape == (B, L, L) and outputs.dtype == jnp.float32
    assert pointers.shape == (B, L) and pointers.dtype == jnp.int32
    # every batch element must point to each clip exactly once (greedy mask works)
    assert bool(jnp.all(jnp.sort(pointers, axis=1) ==
                        jnp.arange(L, dtype=jnp.int32)[None, :]))
    print("KERNEL_OK")
</pallas_src>

<mosaic_0001>
module attributes {stable_mosaic.version = 11 : i64} {
  func.func @kernel(%arg0: memref<8x3x256xf32, #tpu.memory_space<vmem>>, %arg1: memref<3x128xf32, #tpu.memory_space<vmem>>, %arg2: memref<1x128xf32, #tpu.memory_space<vmem>>, %arg3: memref<128x512xf32, #tpu.memory_space<vmem>>, %arg4: memref<128x512xf32, #tpu.memory_space<vmem>>, %arg5: memref<1x512xf32, #tpu.memory_space<vmem>>, %arg6: memref<256x512xf32, #tpu.memory_space<vmem>>, %arg7: memref<1x512xf32, #tpu.memory_space<vmem>>, %arg8: memref<128x128xf32, #tpu.memory_space<vmem>>, %arg9: memref<128x128xf32, #tpu.memory_space<vmem>>, %arg10: memref<1x128xf32, #tpu.memory_space<vmem>>, %arg11: memref<1x128xf32, #tpu.memory_space<vmem>>, %arg12: memref<2x4x4xf32, #tpu.memory_space<vmem>>, %arg13: memref<2x4xi32, #tpu.memory_space<vmem>>) attributes {dimension_semantics = [], scalar_prefetch = 0 : i64, scratch_operands = 0 : i64, tpu.core_type = #tpu.core_type<tc>} {
    %c0 = arith.constant 0 : index
    %c0_0 = arith.constant 0 : index
    %c0_1 = arith.constant 0 : index
    %0 = vector.load %arg0[%c0, %c0_0, %c0_1] : memref<8x3x256xf32, #tpu.memory_space<vmem>>, vector<8x3x256xf32>
    %cst = arith.constant dense<0.000000e+00> : vector<8x3xf32>
    %1 = vector.multi_reduction <add>, %0, %cst [2] : vector<8x3x256xf32> to vector<8x3xf32>
    %cst_2 = arith.constant 2.560000e+02 : f32
    %2 = vector.broadcast %cst_2 : f32 to vector<8x3xf32>
    %3 = arith.divf %1, %2 : vector<8x3xf32>
    %c0_3 = arith.constant 0 : index
    %c0_4 = arith.constant 0 : index
    %4 = vector.load %arg1[%c0_3, %c0_4] : memref<3x128xf32, #tpu.memory_space<vmem>>, vector<3x128xf32>
    %cst_5 = arith.constant dense<0.000000e+00> : vector<8x128xf32>
    %5 = tpu.matmul %3, %4, %cst_5 {dimension_numbers = #tpu.dot_dimension_numbers<[1], [0], [0], [1], [0, 0, 1, 1], [], []>} : vector<8x3xf32>, vector<3x128xf32>, vector<8x128xf32> -> vector<8x128xf32>
    %c0_6 = arith.constant 0 : index
    %c0_7 = arith.constant 0 : index
    %6 = vector.load %arg2[%c0_6, %c0_7] : memref<1x128xf32, #tpu.memory_space<vmem>>, vector<1x128xf32>
    %7 = vector.broadcast %6 : vector<1x128xf32> to vector<8x128xf32>
    %8 = arith.addf %5, %7 : vector<8x128xf32>
    %cst_8 = arith.constant 0.000000e+00 : f32
    %9 = vector.broadcast %cst_8 : f32 to vector<8x128xf32>
    %10 = arith.maximumf %8, %9 : vector<8x128xf32>
    %11 = vector.shape_cast %10 : vector<8x128xf32> to vector<2x4x128xf32>
    %c0_9 = arith.constant 0 : index
    %c0_10 = arith.constant 0 : index
    %12 = vector.load %arg4[%c0_9, %c0_10] : memref<128x512xf32, #tpu.memory_space<vmem>>, vector<128x512xf32>
    %c0_11 = arith.constant 0 : index
    %c0_12 = arith.constant 0 : index
    %13 = vector.load %arg6[%c0_11, %c0_12] : memref<256x512xf32, #tpu.memory_space<vmem>>, vector<256x512xf32>
    %c0_13 = arith.constant 0 : index
    %c0_14 = arith.constant 0 : index
    %14 = vector.load %arg7[%c0_13, %c0_14] : memref<1x512xf32, #tpu.memory_space<vmem>>, vector<1x512xf32>
    %15 = vector.shape_cast %14 : vector<1x512xf32> to vector<1x512xf32>
    %16 = vector.broadcast %15 : vector<1x512xf32> to vector<2x512xf32>
    %c0_15 = arith.constant 0 : index
    %c0_16 = arith.constant 0 : index
    %17 = vector.load %arg8[%c0_15, %c0_16] : memref<128x128xf32, #tpu.memory_space<vmem>>, vector<128x128xf32>
    %c0_17 = arith.constant 0 : index
    %c0_18 = arith.constant 0 : index
    %18 = vector.load %arg9[%c0_17, %c0_18] : memref<128x128xf32, #tpu.memory_space<vmem>>, vector<128x128xf32>
    %c0_19 = arith.constant 0 : index
    %c0_20 = arith.constant 0 : index
    %19 = vector.load %arg10[%c0_19, %c0_20] : memref<1x128xf32, #tpu.memory_space<vmem>>, vector<1x128xf32>
    %20 = vector.shape_cast %19 : vector<1x128xf32> to vector<1x1x128xf32>
    %c0_21 = arith.constant 0 : index
    %c0_22 = arith.constant 0 : index
    %21 = vector.load %arg3[%c0_21, %c0_22] : memref<128x512xf32, #tpu.memory_space<vmem>>, vector<128x512xf32>
    %cst_23 = arith.constant dense<0.000000e+00> : vector<8x512xf32>
    %22 = tpu.matmul %10, %21, %cst_23 {dimension_numbers = #tpu.dot_dimension_numbers<[1], [0], [0], [1], [0, 0, 1, 1], [], []>} : vector<8x128xf32>, vector<128x512xf32>, vector<8x512xf32> -> vector<8x512xf32>
    %c0_24 = arith.constant 0 : index
    %c0_25 = arith.constant 0 : index
    %23 = vector.load %arg5[%c0_24, %c0_25] : memref<1x512xf32, #tpu.memory_space<vmem>>, vector<1x512xf32>
    %24 = vector.broadcast %23 : vector<1x512xf32> to vector<8x512xf32>
    %25 = arith.addf %22, %24 : vector<8x512xf32>
    %26 = vector.shape_cast %25 : vector<8x512xf32> to vector<2x4x512xf32>
    %cst_26 = arith.constant 0.000000e+00 : f32
    %27 = vector.broadcast %cst_26 : f32 to vector<2x128xf32>
    %cst_27 = arith.constant 0.000000e+00 : f32
    %28 = vector.broadcast %cst_27 : f32 to vector<2x128xf32>
    %29 = vector.extract_strided_slice %26 {offsets = [0, 0, 0], sizes = [2, 1, 512], strides = [1, 1, 1]} : vector<2x4x512xf32> to vector<2x1x512xf32>
    %30 = vector.shape_cast %29 : vector<2x1x512xf32> to vector<2x512xf32>
    %cst_28 = arith.constant dense<0.000000e+00> : vector<2x512xf32>
    %31 = tpu.matmul %27, %12, %cst_28 {dimension_numbers = #tpu.dot_dimension_numbers<[1], [0], [0], [1], [0, 0, 1, 1], [], []>} : vector<2x128xf32>, vector<128x512xf32>, vector<2x512xf32> -> vector<2x512xf32>
    %32 = arith.addf %30, %31 : vector<2x512xf32>
    %33 = vector.extract_strided_slice %32 {offsets = [0, 0], sizes = [2, 128], strides = [1, 1]} : vector<2x512xf32> to vector<2x128xf32>
    %34 = arith.negf %33 : vector<2x128xf32>
    %35 = math.exp %34 : vector<2x128xf32>
    %cst_29 = arith.constant 1.000000e+00 : f32
    %36 = vector.broadcast %cst_29 : f32 to vector<2x128xf32>
    %37 = arith.addf %36, %35 : vector<2x128xf32>
    %38 = arith.divf %36, %37 : vector<2x128xf32>
    %39 = vector.extract_strided_slice %32 {offsets = [0, 128], sizes = [2, 128], strides = [1, 1]} : vector<2x512xf32> to vector<2x128xf32>
    %40 = arith.negf %39 : vector<2x128xf32>
    %41 = math.exp %40 : vector<2x128xf32>
    %cst_30 = arith.constant 1.000000e+00 : f32
    %42 = vector.broadcast %cst_30 : f32 to vector<2x128xf32>
    %43 = arith.addf %42, %41 : vector<2x128xf32>
    %44 = arith.divf %42, %43 : vector<2x128xf32>
    %45 = vector.extract_strided_slice %32 {offsets = [0, 256], sizes = [2, 128], strides = [1, 1]} : vector<2x512xf32> to vector<2x128xf32>
    %46 = math.tanh %45 : vector<2x128xf32>
    %47 = vector.extract_strided_slice %32 {offsets = [0, 384], sizes = [2, 128], strides = [1, 1]} : vector<2x512xf32> to vector<2x128xf32>
    %48 = arith.negf %47 : vector<2x128xf32>
    %49 = math.exp %48 : vector<2x128xf32>
    %cst_31 = arith.constant 1.000000e+00 : f32
    %50 = vector.broadcast %cst_31 : f32 to vector<2x128xf32>
    %51 = arith.addf %50, %49 : vector<2x128xf32>
    %52 = arith.divf %50, %51 : vector<2x128xf32>
    %53 = arith.mulf %44, %28 : vector<2x128xf32>
    %54 = arith.mulf %38, %46 : vector<2x128xf32>
    %55 = arith.addf %53, %54 : vector<2x128xf32>
    %56 = math.tanh %55 : vector<2x128xf32>
    %57 = arith.mulf %52, %56 : vector<2x128xf32>
    %58 = vector.extract_strided_slice %26 {offsets = [0, 1, 0], sizes = [2, 1, 512], strides = [1, 1, 1]} : vector<2x4x512xf32> to vector<2x1x512xf32>
    %59 = vector.shape_cast %58 : vector<2x1x512xf32> to vector<2x512xf32>
    %cst_32 = arith.constant dense<0.000000e+00> : vector<2x512xf32>
    %60 = tpu.matmul %57, %12, %cst_32 {dimension_numbers = #tpu.dot_dimension_numbers<[1], [0], [0], [1], [0, 0, 1, 1], [], []>} : vector<2x128xf32>, vector<128x512xf32>, vector<2x512xf32> -> vector<2x512xf32>
    %61 = arith.addf %59, %60 : vector<2x512xf32>
    %62 = vector.extract_strided_slice %61 {offsets = [0, 0], sizes = [2, 128], strides = [1, 1]} : vector<2x512xf32> to vector<2x128xf32>
    %63 = arith.negf %62 : vector<2x128xf32>
    %64 = math.exp %63 : vector<2x128xf32>
    %cst_33 = arith.constant 1.000000e+00 : f32
    %65 = vector.broadcast %cst_33 : f32 to vector<2x128xf32>
    %66 = arith.addf %65, %64 : vector<2x128xf32>
    %67 = arith.divf %65, %66 : vector<2x128xf32>
    %68 = vector.extract_strided_slice %61 {offsets = [0, 128], sizes = [2, 128], strides = [1, 1]} : vector<2x512xf32> to vector<2x128xf32>
    %69 = arith.negf %68 : vector<2x128xf32>
    %70 = math.exp %69 : vector<2x128xf32>
    %cst_34 = arith.constant 1.000000e+00 : f32
    %71 = vector.broadcast %cst_34 : f32 to vector<2x128xf32>
    %72 = arith.addf %71, %70 : vector<2x128xf32>
    %73 = arith.divf %71, %72 : vector<2x128xf32>
    %74 = vector.extract_strided_slice %61 {offsets = [0, 256], sizes = [2, 128], strides = [1, 1]} : vector<2x512xf32> to vector<2x128xf32>
    %75 = math.tanh %74 : vector<2x128xf32>
    %76 = vector.extract_strided_slice %61 {offsets = [0, 384], sizes = [2, 128], strides = [1, 1]} : vector<2x512xf32> to vector<2x128xf32>
    %77 = arith.negf %76 : vector<2x128xf32>
    %78 = math.exp %77 : vector<2x128xf32>
    %cst_35 = arith.constant 1.000000e+00 : f32
    %79 = vector.broadcast %cst_35 : f32 to vector<2x128xf32>
    %80 = arith.addf %79, %78 : vector<2x128xf32>
    %81 = arith.divf %79, %80 : vector<2x128xf32>
    %82 = arith.mulf %73, %55 : vector<2x128xf32>
    %83 = arith.mulf %67, %75 : vector<2x128xf32>
    %84 = arith.addf %82, %83 : vector<2x128xf32>
    %85 = math.tanh %84 : vector<2x128xf32>
    %86 = arith.mulf %81, %85 : vector<2x128xf32>
    %87 = vector.extract_strided_slice %26 {offsets = [0, 2, 0], sizes = [2, 1, 512], strides = [1, 1, 1]} : vector<2x4x512xf32> to vector<2x1x512xf32>
    %88 = vector.shape_cast %87 : vector<2x1x512xf32> to vector<2x512xf32>
    %cst_36 = arith.constant dense<0.000000e+00> : vector<2x512xf32>
    %89 = tpu.matmul %86, %12, %cst_36 {dimension_numbers = #tpu.dot_dimension_numbers<[1], [0], [0], [1], [0, 0, 1, 1], [], []>} : vector<2x128xf32>, vector<128x512xf32>, vector<2x512xf32> -> vector<2x512xf32>
    %90 = arith.addf %88, %89 : vector<2x512xf32>
    %91 = vector.extract_strided_slice %90 {offsets = [0, 0], sizes = [2, 128], strides = [1, 1]} : vector<2x512xf32> to vector<2x128xf32>
    %92 = arith.negf %91 : vector<2x128xf32>
    %93 = math.exp %92 : vector<2x128xf32>
    %cst_37 = arith.constant 1.000000e+00 : f32
    %94 = vector.broadcast %cst_37 : f32 to vector<2x128xf32>
    %95 = arith.addf %94, %93 : vector<2x128xf32>
    %96 = arith.divf %94, %95 : vector<2x128xf32>
    %97 = vector.extract_strided_slice %90 {offsets = [0, 128], sizes = [2, 128], strides = [1, 1]} : vector<2x512xf32> to vector<2x128xf32>
    %98 = arith.negf %97 : vector<2x128xf32>
    %99 = math.exp %98 : vector<2x128xf32>
    %cst_38 = arith.constant 1.000000e+00 : f32
    %100 = vector.broadcast %cst_38 : f32 to vector<2x128xf32>
    %101 = arith.addf %100, %99 : vector<2x128xf32>
    %102 = arith.divf %100, %101 : vector<2x128xf32>
    %103 = vector.extract_strided_slice %90 {offsets = [0, 256], sizes = [2, 128], strides = [1, 1]} : vector<2x512xf32> to vector<2x128xf32>
    %104 = math.tanh %103 : vector<2x128xf32>
    %105 = vector.extract_strided_slice %90 {offsets = [0, 384], sizes = [2, 128], strides = [1, 1]} : vector<2x512xf32> to vector<2x128xf32>
    %106 = arith.negf %105 : vector<2x128xf32>
    %107 = math.exp %106 : vector<2x128xf32>
    %cst_39 = arith.constant 1.000000e+00 : f32
    %108 = vector.broadcast %cst_39 : f32 to vector<2x128xf32>
    %109 = arith.addf %108, %107 : vector<2x128xf32>
    %110 = arith.divf %108, %109 : vector<2x128xf32>
    %111 = arith.mulf %102, %84 : vector<2x128xf32>
    %112 = arith.mulf %96, %104 : vector<2x128xf32>
    %113 = arith.addf %111, %112 : vector<2x128xf32>
    %114 = math.tanh %113 : vector<2x128xf32>
    %115 = arith.mulf %110, %114 : vector<2x128xf32>
    %116 = vector.extract_strided_slice %26 {offsets = [0, 3, 0], sizes = [2, 1, 512], strides = [1, 1, 1]} : vector<2x4x512xf32> to vector<2x1x512xf32>
    %117 = vector.shape_cast %116 : vector<2x1x512xf32> to vector<2x512xf32>
    %cst_40 = arith.constant dense<0.000000e+00> : vector<2x512xf32>
    %118 = tpu.matmul %115, %12, %cst_40 {dimension_numbers = #tpu.dot_dimension_numbers<[1], [0], [0], [1], [0, 0, 1, 1], [], []>} : vector<2x128xf32>, vector<128x512xf32>, vector<2x512xf32> -> vector<2x512xf32>
    %119 = arith.addf %117, %118 : vector<2x512xf32>
    %120 = vector.extract_strided_slice %119 {offsets = [0, 0], sizes = [2, 128], strides = [1, 1]} : vector<2x512xf32> to vector<2x128xf32>
    %121 = arith.negf %120 : vector<2x128xf32>
    %122 = math.exp %121 : vector<2x128xf32>
    %cst_41 = arith.constant 1.000000e+00 : f32
    %123 = vector.broadcast %cst_41 : f32 to vector<2x128xf32>
    %124 = arith.addf %123, %122 : vector<2x128xf32>
    %125 = arith.divf %123, %124 : vector<2x128xf32>
    %126 = vector.extract_strided_slice %119 {offsets = [0, 128], sizes = [2, 128], strides = [1, 1]} : vector<2x512xf32> to vector<2x128xf32>
    %127 = arith.negf %126 : vector<2x128xf32>
    %128 = math.exp %127 : vector<2x128xf32>
    %cst_42 = arith.constant 1.000000e+00 : f32
    %129 = vector.broadcast %cst_42 : f32 to vector<2x128xf32>
    %130 = arith.addf %129, %128 : vector<2x128xf32>
    %131 = arith.divf %129, %130 : vector<2x128xf32>
    %132 = vector.extract_strided_slice %119 {offsets = [0, 256], sizes = [2, 128], strides = [1, 1]} : vector<2x512xf32> to vector<2x128xf32>
    %133 = math.tanh %132 : vector<2x128xf32>
    %134 = vector.extract_strided_slice %119 {offsets = [0, 384], sizes = [2, 128], strides = [1, 1]} : vector<2x512xf32> to vector<2x128xf32>
    %135 = arith.negf %134 : vector<2x128xf32>
    %136 = math.exp %135 : vector<2x128xf32>
    %cst_43 = arith.constant 1.000000e+00 : f32
    %137 = vector.broadcast %cst_43 : f32 to vector<2x128xf32>
    %138 = arith.addf %137, %136 : vector<2x128xf32>
    %139 = arith.divf %137, %138 : vector<2x128xf32>
    %140 = arith.mulf %131, %113 : vector<2x128xf32>
    %141 = arith.mulf %125, %133 : vector<2x128xf32>
    %142 = arith.addf %140, %141 : vector<2x128xf32>
    %143 = math.tanh %142 : vector<2x128xf32>
    %144 = arith.mulf %139, %143 : vector<2x128xf32>
    %145 = tpu.concatenate %57, %86, %115, %144 in 0 : vector<2x128xf32>, vector<2x128xf32>, vector<2x128xf32>, vector<2x128xf32> -> vector<8x128xf32>
    %cst_44 = arith.constant dense<0.000000e+00> : vector<8x128xf32>
    %146 = tpu.matmul %145, %17, %cst_44 {dimension_numbers = #tpu.dot_dimension_numbers<[1], [0], [0], [1], [0, 0, 1, 1], [], []>} : vector<8x128xf32>, vector<128x128xf32>, vector<8x128xf32> -> vector<8x128xf32>
    %147 = vector.extract_strided_slice %146 {offsets = [0, 0], sizes = [2, 128], strides = [1, 1]} : vector<8x128xf32> to vector<2x128xf32>
    %148 = vector.extract_strided_slice %146 {offsets = [2, 0], sizes = [2, 128], strides = [1, 1]} : vector<8x128xf32> to vector<2x128xf32>
    %149 = vector.extract_strided_slice %146 {offsets = [4, 0], sizes = [2, 128], strides = [1, 1]} : vector<8x128xf32> to vector<2x128xf32>
    %150 = vector.extract_strided_slice %146 {offsets = [6, 0], sizes = [2, 128], strides = [1, 1]} : vector<8x128xf32> to vector<2x128xf32>
    %151 = vector.shape_cast %147 : vector<2x128xf32> to vector<2x1x128xf32>
    %152 = vector.shape_cast %148 : vector<2x128xf32> to vector<2x1x128xf32>
    %153 = vector.shape_cast %149 : vector<2x128xf32> to vector<2x1x128xf32>
    %154 = vector.shape_cast %150 : vector<2x128xf32> to vector<2x1x128xf32>
    %155 = tpu.concatenate %151, %152, %153, %154 in 1 : vector<2x1x128xf32>, vector<2x1x128xf32>, vector<2x1x128xf32>, vector<2x1x128xf32> -> vector<2x4x128xf32>
    %c0_45 = arith.constant 0 : index
    %c0_46 = arith.constant 0 : index
    %156 = vector.load %arg11[%c0_45, %c0_46] : memref<1x128xf32, #tpu.memory_space<vmem>>, vector<1x128xf32>
    %157 = vector.shape_cast %156 : vector<1x128xf32> to vector<1x128xf32>
    %158 = vector.broadcast %157 : vector<1x128xf32> to vector<2x128xf32>
    %cst_47 = arith.constant 0.000000e+00 : f32
    %159 = vector.broadcast %cst_47 : f32 to vector<2x4xf32>
    %160 = tpu.iota {dimensions = array<i32: 1>} : vector<2x4xi32>
    %161 = tpu.concatenate %158, %144 in 1 : vector<2x128xf32>, vector<2x128xf32> -> vector<2x256xf32>
    %cst_48 = arith.constant dense<0.000000e+00> : vector<2x512xf32>
    %162 = tpu.matmul %161, %13, %cst_48 {dimension_numbers = #tpu.dot_dimension_numbers<[1], [0], [0], [1], [0, 0, 1, 1], [], []>} : vector<2x256xf32>, vector<256x512xf32>, vector<2x512xf32> -> vector<2x512xf32>
    %163 = arith.addf %162, %16 : vector<2x512xf32>
    %164 = vector.extract_strided_slice %163 {offsets = [0, 0], sizes = [2, 128], strides = [1, 1]} : vector<2x512xf32> to vector<2x128xf32>
    %165 = arith.negf %164 : vector<2x128xf32>
    %166 = math.exp %165 : vector<2x128xf32>
    %cst_49 = arith.constant 1.000000e+00 : f32
    %167 = vector.broadcast %cst_49 : f32 to vector<2x128xf32>
    %168 = arith.addf %167, %166 : vector<2x128xf32>
    %169 = arith.divf %167, %168 : vector<2x128xf32>
    %170 = vector.extract_strided_slice %163 {offsets = [0, 128], sizes = [2, 128], strides = [1, 1]} : vector<2x512xf32> to vector<2x128xf32>
    %171 = arith.negf %170 : vector<2x128xf32>
    %172 = math.exp %171 : vector<2x128xf32>
    %cst_50 = arith.constant 1.000000e+00 : f32
    %173 = vector.broadcast %cst_50 : f32 to vector<2x128xf32>
    %174 = arith.addf %173, %172 : vector<2x128xf32>
    %175 = arith.divf %173, %174 : vector<2x128xf32>
    %176 = vector.extract_strided_slice %163 {offsets = [0, 256], sizes = [2, 128], strides = [1, 1]} : vector<2x512xf32> to vector<2x128xf32>
    %177 = math.tanh %176 : vector<2x128xf32>
    %178 = vector.extract_strided_slice %163 {offsets = [0, 384], sizes = [2, 128], strides = [1, 1]} : vector<2x512xf32> to vector<2x128xf32>
    %179 = arith.negf %178 : vector<2x128xf32>
    %180 = math.exp %179 : vector<2x128xf32>
    %cst_51 = arith.constant 1.000000e+00 : f32
    %181 = vector.broadcast %cst_51 : f32 to vector<2x128xf32>
    %182 = arith.addf %181, %180 : vector<2x128xf32>
    %183 = arith.divf %181, %182 : vector<2x128xf32>
    %184 = arith.mulf %175, %142 : vector<2x128xf32>
    %185 = arith.mulf %169, %177 : vector<2x128xf32>
    %186 = arith.addf %184, %185 : vector<2x128xf32>
    %187 = math.tanh %186 : vector<2x128xf32>
    %188 = arith.mulf %183, %187 : vector<2x128xf32>
    %cst_52 = arith.constant dense<0.000000e+00> : vector<2x128xf32>
    %189 = tpu.matmul %188, %18, %cst_52 {dimension_numbers = #tpu.dot_dimension_numbers<[1], [0], [0], [1], [0, 0, 1, 1], [], []>} : vector<2x128xf32>, vector<128x128xf32>, vector<2x128xf32> -> vector<2x128xf32>
    %190 = vector.shape_cast %189 : vector<2x128xf32> to vector<2x1x128xf32>
    %191 = vector.broadcast %190 : vector<2x1x128xf32> to vector<2x4x128xf32>
    %192 = arith.addf %155, %191 : vector<2x4x128xf32>
    %193 = math.tanh %192 : vector<2x4x128xf32>
    %194 = vector.broadcast %20 : vector<1x1x128xf32> to vector<2x4x128xf32>
    %195 = arith.mulf %193, %194 : vector<2x4x128xf32>
    %cst_53 = arith.constant dense<0.000000e+00> : vector<2x4xf32>
    %196 = vector.multi_reduction <add>, %195, %cst_53 [2] : vector<2x4x128xf32> to vector<2x4xf32>
    %197 = arith.addf %196, %159 : vector<2x4xf32>
    %cst_54 = arith.constant dense<0xFF800000> : vector<2xf32>
    %198 = vector.multi_reduction <maximumf>, %197, %cst_54 [1] : vector<2x4xf32> to vector<2xf32>
    %199 = vector.shape_cast %198 : vector<2xf32> to vector<2x1xf32>
    %200 = vector.broadcast %199 : vector<2x1xf32> to vector<2x4xf32>
    %201 = arith.cmpf oge, %197, %200 : vector<2x4xf32>
    %c4_i32 = arith.constant 4 : i32
    %202 = vector.broadcast %c4_i32 : i32 to vector<2x4xi32>
    %203 = arith.select %201, %160, %202 : vector<2x4xi1>, vector<2x4xi32>
    %cst_55 = arith.constant dense<2147483647> : vector<2xi32>
    %204 = vector.multi_reduction <minsi>, %203, %cst_55 [1] : vector<2x4xi32> to vector<2xi32>
    %205 = vector.shape_cast %204 : vector<2xi32> to vector<2x1xi32>
    %206 = vector.broadcast %205 : vector<2x1xi32> to vector<2x4xi32>
    %207 = arith.cmpi eq, %160, %206 : vector<2x4xi32>
    %208 = arith.extui %207 : vector<2x4xi1> to vector<2x4xi32>
    %209 = arith.sitofp %208 : vector<2x4xi32> to vector<2x4xf32>
    %210 = vector.shape_cast %209 : vector<2x4xf32> to vector<2x4x1xf32>
    %211 = vector.broadcast %210 : vector<2x4x1xf32> to vector<2x4x128xf32>
    %212 = arith.mulf %11, %211 : vector<2x4x128xf32>
    %cst_56 = arith.constant dense<0.000000e+00> : vector<2x128xf32>
    %213 = vector.multi_reduction <add>, %212, %cst_56 [1] : vector<2x4x128xf32> to vector<2x128xf32>
    %cst_57 = arith.constant -1.000000e+09 : f32
    %214 = vector.broadcast %cst_57 : f32 to vector<2x4xf32>
    %215 = arith.mulf %209, %214 : vector<2x4xf32>
    %216 = arith.addf %159, %215 : vector<2x4xf32>
    %217 = vector.shape_cast %197 : vector<2x4xf32> to vector<2x1x4xf32>
    %218 = tpu.concatenate %213, %188 in 1 : vector<2x128xf32>, vector<2x128xf32> -> vector<2x256xf32>
    %cst_58 = arith.constant dense<0.000000e+00> : vector<2x512xf32>
    %219 = tpu.matmul %218, %13, %cst_58 {dimension_numbers = #tpu.dot_dimension_numbers<[1], [0], [0], [1], [0, 0, 1, 1], [], []>} : vector<2x256xf32>, vector<256x512xf32>, vector<2x512xf32> -> vector<2x512xf32>
    %220 = arith.addf %219, %16 : vector<2x512xf32>
    %221 = vector.extract_strided_slice %220 {offsets = [0, 0], sizes = [2, 128], strides = [1, 1]} : vector<2x512xf32> to vector<2x128xf32>
    %222 = arith.negf %221 : vector<2x128xf32>
    %223 = math.exp %222 : vector<2x128xf32>
    %cst_59 = arith.constant 1.000000e+00 : f32
    %224 = vector.broadcast %cst_59 : f32 to vector<2x128xf32>
    %225 = arith.addf %224, %223 : vector<2x128xf32>
    %226 = arith.divf %224, %225 : vector<2x128xf32>
    %227 = vector.extract_strided_slice %220 {offsets = [0, 128], sizes = [2, 128], strides = [1, 1]} : vector<2x512xf32> to vector<2x128xf32>
    %228 = arith.negf %227 : vector<2x128xf32>
    %229 = math.exp %228 : vector<2x128xf32>
    %cst_60 = arith.constant 1.000000e+00 : f32
    %230 = vector.broadcast %cst_60 : f32 to vector<2x128xf32>
    %231 = arith.addf %230, %229 : vector<2x128xf32>
    %232 = arith.divf %230, %231 : vector<2x128xf32>
    %233 = vector.extract_strided_slice %220 {offsets = [0, 256], sizes = [2, 128], strides = [1, 1]} : vector<2x512xf32> to vector<2x128xf32>
    %234 = math.tanh %233 : vector<2x128xf32>
    %235 = vector.extract_strided_slice %220 {offsets = [0, 384], sizes = [2, 128], strides = [1, 1]} : vector<2x512xf32> to vector<2x128xf32>
    %236 = arith.negf %235 : vector<2x128xf32>
    %237 = math.exp %236 : vector<2x128xf32>
    %cst_61 = arith.constant 1.000000e+00 : f32
    %238 = vector.broadcast %cst_61 : f32 to vector<2x128xf32>
    %239 = arith.addf %238, %237 : vector<2x128xf32>
    %240 = arith.divf %238, %239 : vector<2x128xf32>
    %241 = arith.mulf %232, %186 : vector<2x128xf32>
    %242 = arith.mulf %226, %234 : vector<2x128xf32>
    %243 = arith.addf %241, %242 : vector<2x128xf32>
    %244 = math.tanh %243 : vector<2x128xf32>
    %245 = arith.mulf %240, %244 : vector<2x128xf32>
    %cst_62 = arith.constant dense<0.000000e+00> : vector<2x128xf32>
    %246 = tpu.matmul %245, %18, %cst_62 {dimension_numbers = #tpu.dot_dimension_numbers<[1], [0], [0], [1], [0, 0, 1, 1], [], []>} : vector<2x128xf32>, vector<128x128xf32>, vector<2x128xf32> -> vector<2x128xf32>
    %247 = vector.shape_cast %246 : vector<2x128xf32> to vector<2x1x128xf32>
    %248 = vector.broadcast %247 : vector<2x1x128xf32> to vector<2x4x128xf32>
    %249 = arith.addf %155, %248 : vector<2x4x128xf32>
    %250 = math.tanh %249 : vector<2x4x128xf32>
    %251 = vector.broadcast %20 : vector<1x1x128xf32> to vector<2x4x128xf32>
    %252 = arith.mulf %250, %251 : vector<2x4x128xf32>
    %cst_63 = arith.constant dense<0.000000e+00> : vector<2x4xf32>
    %253 = vector.multi_reduction <add>, %252, %cst_63 [2] : vector<2x4x128xf32> to vector<2x4xf32>
    %254 = arith.addf %253, %216 : vector<2x4xf32>
    %cst_64 = arith.constant dense<0xFF800000> : vector<2xf32>
    %255 = vector.multi_reduction <maximumf>, %254, %cst_64 [1] : vector<2x4xf32> to vector<2xf32>
    %256 = vector.shape_cast %255 : vector<2xf32> to vector<2x1xf32>
    %257 = vector.broadcast %256 : vector<2x1xf32> to vector<2x4xf32>
    %258 = arith.cmpf oge, %254, %257 : vector<2x4xf32>
    %c4_i32_65 = arith.constant 4 : i32
    %259 = vector.broadcast %c4_i32_65 : i32 to vector<2x4xi32>
    %260 = arith.select %258, %160, %259 : vector<2x4xi1>, vector<2x4xi32>
    %cst_66 = arith.constant dense<2147483647> : vector<2xi32>
    %261 = vector.multi_reduction <minsi>, %260, %cst_66 [1] : vector<2x4xi32> to vector<2xi32>
    %262 = vector.shape_cast %261 : vector<2xi32> to vector<2x1xi32>
    %263 = vector.broadcast %262 : vector<2x1xi32> to vector<2x4xi32>
    %264 = arith.cmpi eq, %160, %263 : vector<2x4xi32>
    %265 = arith.extui %264 : vector<2x4xi1> to vector<2x4xi32>
    %266 = arith.sitofp %265 : vector<2x4xi32> to vector<2x4xf32>
    %267 = vector.shape_cast %266 : vector<2x4xf32> to vector<2x4x1xf32>
    %268 = vector.broadcast %267 : vector<2x4x1xf32> to vector<2x4x128xf32>
    %269 = arith.mulf %11, %268 : vector<2x4x128xf32>
    %cst_67 = arith.constant dense<0.000000e+00> : vector<2x128xf32>
    %270 = vector.multi_reduction <add>, %269, %cst_67 [1] : vector<2x4x128xf32> to vector<2x128xf32>
    %cst_68 = arith.constant -1.000000e+09 : f32
    %271 = vector.broadcast %cst_68 : f32 to vector<2x4xf32>
    %272 = arith.mulf %266, %271 : vector<2x4xf32>
    %273 = arith.addf %216, %272 : vector<2x4xf32>
    %274 = vector.shape_cast %254 : vector<2x4xf32> to vector<2x1x4xf32>
    %275 = tpu.concatenate %270, %245 in 1 : vector<2x128xf32>, vector<2x128xf32> -> vector<2x256xf32>
    %cst_69 = arith.constant dense<0.000000e+00> : vector<2x512xf32>
    %276 = tpu.matmul %275, %13, %cst_69 {dimension_numbers = #tpu.dot_dimension_numbers<[1], [0], [0], [1], [0, 0, 1, 1], [], []>} : vector<2x256xf32>, vector<256x512xf32>, vector<2x512xf32> -> vector<2x512xf32>
    %277 = arith.addf %276, %16 : vector<2x512xf32>
    %278 = vector.extract_strided_slice %277 {offsets = [0, 0], sizes = [2, 128], strides = [1, 1]} : vector<2x512xf32> to vector<2x128xf32>
    %279 = arith.negf %278 : vector<2x128xf32>
    %280 = math.exp %279 : vector<2x128xf32>
    %cst_70 = arith.constant 1.000000e+00 : f32
    %281 = vector.broadcast %cst_70 : f32 to vector<2x128xf32>
    %282 = arith.addf %281, %280 : vector<2x128xf32>
    %283 = arith.divf %281, %282 : vector<2x128xf32>
    %284 = vector.extract_strided_slice %277 {offsets = [0, 128], sizes = [2, 128], strides = [1, 1]} : vector<2x512xf32> to vector<2x128xf32>
    %285 = arith.negf %284 : vector<2x128xf32>
    %286 = math.exp %285 : vector<2x128xf32>
    %cst_71 = arith.constant 1.000000e+00 : f32
    %287 = vector.broadcast %cst_71 : f32 to vector<2x128xf32>
    %288 = arith.addf %287, %286 : vector<2x128xf32>
    %289 = arith.divf %287, %288 : vector<2x128xf32>
    %290 = vector.extract_strided_slice %277 {offsets = [0, 256], sizes = [2, 128], strides = [1, 1]} : vector<2x512xf32> to vector<2x128xf32>
    %291 = math.tanh %290 : vector<2x128xf32>
    %292 = vector.extract_strided_slice %277 {offsets = [0, 384], sizes = [2, 128], strides = [1, 1]} : vector<2x512xf32> to vector<2x128xf32>
    %293 = arith.negf %292 : vector<2x128xf32>
    %294 = math.exp %293 : vector<2x128xf32>
    %cst_72 = arith.constant 1.000000e+00 : f32
    %295 = vector.broadcast %cst_72 : f32 to vector<2x128xf32>
    %296 = arith.addf %295, %294 : vector<2x128xf32>
    %297 = arith.divf %295, %296 : vector<2x128xf32>
    %298 = arith.mulf %289, %243 : vector<2x128xf32>
    %299 = arith.mulf %283, %291 : vector<2x128xf32>
    %300 = arith.addf %298, %299 : vector<2x128xf32>
    %301 = math.tanh %300 : vector<2x128xf32>
    %302 = arith.mulf %297, %301 : vector<2x128xf32>
    %cst_73 = arith.constant dense<0.000000e+00> : vector<2x128xf32>
    %303 = tpu.matmul %302, %18, %cst_73 {dimension_numbers = #tpu.dot_dimension_numbers<[1], [0], [0], [1], [0, 0, 1, 1], [], []>} : vector<2x128xf32>, vector<128x128xf32>, vector<2x128xf32> -> vector<2x128xf32>
    %304 = vector.shape_cast %303 : vector<2x128xf32> to vector<2x1x128xf32>
    %305 = vector.broadcast %304 : vector<2x1x128xf32> to vector<2x4x128xf32>
    %306 = arith.addf %155, %305 : vector<2x4x128xf32>
    %307 = math.tanh %306 : vector<2x4x128xf32>
    %308 = vector.broadcast %20 : vector<1x1x128xf32> to vector<2x4x128xf32>
    %309 = arith.mulf %307, %308 : vector<2x4x128xf32>
    %cst_74 = arith.constant dense<0.000000e+00> : vector<2x4xf32>
    %310 = vector.multi_reduction <add>, %309, %cst_74 [2] : vector<2x4x128xf32> to vector<2x4xf32>
    %311 = arith.addf %310, %273 : vector<2x4xf32>
    %cst_75 = arith.constant dense<0xFF800000> : vector<2xf32>
    %312 = vector.multi_reduction <maximumf>, %311, %cst_75 [1] : vector<2x4xf32> to vector<2xf32>
    %313 = vector.shape_cast %312 : vector<2xf32> to vector<2x1xf32>
    %314 = vector.broadcast %313 : vector<2x1xf32> to vector<2x4xf32>
    %315 = arith.cmpf oge, %311, %314 : vector<2x4xf32>
    %c4_i32_76 = arith.constant 4 : i32
    %316 = vector.broadcast %c4_i32_76 : i32 to vector<2x4xi32>
    %317 = arith.select %315, %160, %316 : vector<2x4xi1>, vector<2x4xi32>
    %cst_77 = arith.constant dense<2147483647> : vector<2xi32>
    %318 = vector.multi_reduction <minsi>, %317, %cst_77 [1] : vector<2x4xi32> to vector<2xi32>
    %319 = vector.shape_cast %318 : vector<2xi32> to vector<2x1xi32>
    %320 = vector.broadcast %319 : vector<2x1xi32> to vector<2x4xi32>
    %321 = arith.cmpi eq, %160, %320 : vector<2x4xi32>
    %322 = arith.extui %321 : vector<2x4xi1> to vector<2x4xi32>
    %323 = arith.sitofp %322 : vector<2x4xi32> to vector<2x4xf32>
    %324 = vector.shape_cast %323 : vector<2x4xf32> to vector<2x4x1xf32>
    %325 = vector.broadcast %324 : vector<2x4x1xf32> to vector<2x4x128xf32>
    %326 = arith.mulf %11, %325 : vector<2x4x128xf32>
    %cst_78 = arith.constant dense<0.000000e+00> : vector<2x128xf32>
    %327 = vector.multi_reduction <add>, %326, %cst_78 [1] : vector<2x4x128xf32> to vector<2x128xf32>
    %cst_79 = arith.constant -1.000000e+09 : f32
    %328 = vector.broadcast %cst_79 : f32 to vector<2x4xf32>
    %329 = arith.mulf %323, %328 : vector<2x4xf32>
    %330 = arith.addf %273, %329 : vector<2x4xf32>
    %331 = vector.shape_cast %311 : vector<2x4xf32> to vector<2x1x4xf32>
    %332 = tpu.concatenate %327, %302 in 1 : vector<2x128xf32>, vector<2x128xf32> -> vector<2x256xf32>
    %cst_80 = arith.constant dense<0.000000e+00> : vector<2x512xf32>
    %333 = tpu.matmul %332, %13, %cst_80 {dimension_numbers = #tpu.dot_dimension_numbers<[1], [0], [0], [1], [0, 0, 1, 1], [], []>} : vector<2x256xf32>, vector<256x512xf32>, vector<2x512xf32> -> vector<2x512xf32>
    %334 = arith.addf %333, %16 : vector<2x512xf32>
    %335 = vector.extract_strided_slice %334 {offsets = [0, 0], sizes = [2, 128], strides = [1, 1]} : vector<2x512xf32> to vector<2x128xf32>
    %336 = arith.negf %335 : vector<2x128xf32>
    %337 = math.exp %336 : vector<2x128xf32>
    %cst_81 = arith.constant 1.000000e+00 : f32
    %338 = vector.broadcast %cst_81 : f32 to vector<2x128xf32>
    %339 = arith.addf %338, %337 : vector<2x128xf32>
    %340 = arith.divf %338, %339 : vector<2x128xf32>
    %341 = vector.extract_strided_slice %334 {offsets = [0, 128], sizes = [2, 128], strides = [1, 1]} : vector<2x512xf32> to vector<2x128xf32>
    %342 = arith.negf %341 : vector<2x128xf32>
    %343 = math.exp %342 : vector<2x128xf32>
    %cst_82 = arith.constant 1.000000e+00 : f32
    %344 = vector.broadcast %cst_82 : f32 to vector<2x128xf32>
    %345 = arith.addf %344, %343 : vector<2x128xf32>
    %346 = arith.divf %344, %345 : vector<2x128xf32>
    %347 = vector.extract_strided_slice %334 {offsets = [0, 256], sizes = [2, 128], strides = [1, 1]} : vector<2x512xf32> to vector<2x128xf32>
    %348 = math.tanh %347 : vector<2x128xf32>
    %349 = vector.extract_strided_slice %334 {offsets = [0, 384], sizes = [2, 128], strides = [1, 1]} : vector<2x512xf32> to vector<2x128xf32>
    %350 = arith.negf %349 : vector<2x128xf32>
    %351 = math.exp %350 : vector<2x128xf32>
    %cst_83 = arith.constant 1.000000e+00 : f32
    %352 = vector.broadcast %cst_83 : f32 to vector<2x128xf32>
    %353 = arith.addf %352, %351 : vector<2x128xf32>
    %354 = arith.divf %352, %353 : vector<2x128xf32>
    %355 = arith.mulf %346, %300 : vector<2x128xf32>
    %356 = arith.mulf %340, %348 : vector<2x128xf32>
    %357 = arith.addf %355, %356 : vector<2x128xf32>
    %358 = math.tanh %357 : vector<2x128xf32>
    %359 = arith.mulf %354, %358 : vector<2x128xf32>
    %cst_84 = arith.constant dense<0.000000e+00> : vector<2x128xf32>
    %360 = tpu.matmul %359, %18, %cst_84 {dimension_numbers = #tpu.dot_dimension_numbers<[1], [0], [0], [1], [0, 0, 1, 1], [], []>} : vector<2x128xf32>, vector<128x128xf32>, vector<2x128xf32> -> vector<2x128xf32>
    %361 = vector.shape_cast %360 : vector<2x128xf32> to vector<2x1x128xf32>
    %362 = vector.broadcast %361 : vector<2x1x128xf32> to vector<2x4x128xf32>
    %363 = arith.addf %155, %362 : vector<2x4x128xf32>
    %364 = math.tanh %363 : vector<2x4x128xf32>
    %365 = vector.broadcast %20 : vector<1x1x128xf32> to vector<2x4x128xf32>
    %366 = arith.mulf %364, %365 : vector<2x4x128xf32>
    %cst_85 = arith.constant dense<0.000000e+00> : vector<2x4xf32>
    %367 = vector.multi_reduction <add>, %366, %cst_85 [2] : vector<2x4x128xf32> to vector<2x4xf32>
    %368 = arith.addf %367, %330 : vector<2x4xf32>
    %cst_86 = arith.constant dense<0xFF800000> : vector<2xf32>
    %369 = vector.multi_reduction <maximumf>, %368, %cst_86 [1] : vector<2x4xf32> to vector<2xf32>
    %370 = vector.shape_cast %369 : vector<2xf32> to vector<2x1xf32>
    %371 = vector.broadcast %370 : vector<2x1xf32> to vector<2x4xf32>
    %372 = arith.cmpf oge, %368, %371 : vector<2x4xf32>
    %c4_i32_87 = arith.constant 4 : i32
    %373 = vector.broadcast %c4_i32_87 : i32 to vector<2x4xi32>
    %374 = arith.select %372, %160, %373 : vector<2x4xi1>, vector<2x4xi32>
    %cst_88 = arith.constant dense<2147483647> : vector<2xi32>
    %375 = vector.multi_reduction <minsi>, %374, %cst_88 [1] : vector<2x4xi32> to vector<2xi32>
    %376 = vector.shape_cast %375 : vector<2xi32> to vector<2x1xi32>
    %377 = vector.shape_cast %368 : vector<2x4xf32> to vector<2x1x4xf32>
    %378 = tpu.concatenate %217, %274, %331, %377 in 1 : vector<2x1x4xf32>, vector<2x1x4xf32>, vector<2x1x4xf32>, vector<2x1x4xf32> -> vector<2x4x4xf32>
    %c0_89 = arith.constant 0 : index
    %c0_90 = arith.constant 0 : index
    %c0_91 = arith.constant 0 : index
    %379 = vector.load %arg12[%c0_89, %c0_90, %c0_91] : memref<2x4x4xf32, #tpu.memory_space<vmem>>, vector<2x4x4xf32>
    tpu.vector_store %arg12[%c0_89, %c0_90, %c0_91], %378 {strides = array<i32>} : memref<2x4x4xf32, #tpu.memory_space<vmem>>, vector<2x4x4xf32>,
    %380 = tpu.concatenate %205, %262, %319, %376 in 1 : vector<2x1xi32>, vector<2x1xi32>, vector<2x1xi32>, vector<2x1xi32> -> vector<2x4xi32>
    %c0_92 = arith.constant 0 : index
    %c0_93 = arith.constant 0 : index
    %381 = vector.load %arg13[%c0_92, %c0_93] : memref<2x4xi32, #tpu.memory_space<vmem>>, vector<2x4xi32>
    tpu.vector_store %arg13[%c0_92, %c0_93], %380 {strides = array<i32>} : memref<2x4xi32, #tpu.memory_space<vmem>>, vector<2x4xi32>,
    return
  }
}

</mosaic_0001>

<llo_original>
// kernel: srsc_forward.1
$region0: #{srsc_forward.1}
  #allocation0 [shape = 'u32[]', space=smem, size = 0x4, offset = 0x4, fixed_abs, tag = 'smem constant byte address 0x4 - core index']
  #allocation1 [shape = 'u32[72,128]{1,0:T(1,128)}', space=vmem, size = 0x9000, scoped, tag = 'internal scratch']
  %s0 = inlined_call_operand.vmem [shape: f32[8,3,256], index: 0, kind: input, shape index: {}]
  %s1 = inlined_call_operand.vmem [shape: f32[3,128], index: 1, kind: input, shape index: {}]
  %s2 = inlined_call_operand.vmem [shape: f32[1,128], index: 2, kind: input, shape index: {}]
  %s3 = inlined_call_operand.vmem [shape: f32[128,512], index: 3, kind: input, shape index: {}]
  %s4 = inlined_call_operand.vmem [shape: f32[128,512], index: 4, kind: input, shape index: {}]
  %s5 = inlined_call_operand.vmem [shape: f32[1,512], index: 5, kind: input, shape index: {}]
  %s6 = inlined_call_operand.vmem [shape: f32[256,512], index: 6, kind: input, shape index: {}]
  %s7 = inlined_call_operand.vmem [shape: f32[1,512], index: 7, kind: input, shape index: {}]
  %s8 = inlined_call_operand.vmem [shape: f32[128,128], index: 8, kind: input, shape index: {}]
  %s9 = inlined_call_operand.vmem [shape: f32[128,128], index: 9, kind: input, shape index: {}]
  %s10 = inlined_call_operand.vmem [shape: f32[1,128], index: 10, kind: input, shape index: {}]
  %s11 = inlined_call_operand.vmem [shape: f32[1,128], index: 11, kind: input, shape index: {}]
  %s12 = inlined_call_operand.hbm [shape: f32[2,4,4], index: 12, kind: output, shape index: {0}]
  %s13 = inlined_call_operand.hbm [shape: s32[2,4], index: 13, kind: output, shape index: {1}]
  %14 = xla_tuple %s12, %s13
  %s15 = sld [smem:[#allocation0]]
  $region66: #{srsc_forward.1} parent=0
    _
  %s17 = ssub.s32 1, %s15
  %s18 = scalar_select 0, %s17, %s15
  $region1: #{srsc_forward.1} parent=0
    #allocation2 [shape = 'u8[4096]{0}', space=vmem, size = 0x1000, scoped, tag = 'output window, operand 0, single buffered']
    #allocation3 [shape = 's32[1]{0}', space=sflag, size = 0x4, scoped, tag = 'scoped memory for srsc_forward.1']
    #allocation4 [shape = 'u8[1024]{0}', space=vmem, size = 0x400, scoped, tag = 'output window, operand 1, single buffered']
    #allocation5 [shape = 's32[1]{0}', space=sflag, size = 0x4, scoped, tag = 'scoped memory for srsc_forward.1']
    %19 = vsyncpa [#allocation3], 0
    %20 = vsyncpa [#allocation5], 0
    // Predicated region
    $region2: #{srsc_forward.1} parent=1 // pred_check
      _
    $region3: #{srsc_forward.1} parent=1 // pred_check_branch
      %22 = sbr.rel (0) target = $region5
    $region4: #{srsc_forward.1} parent=1 // pred_region
      _
    $region5: #{srsc_forward.1} parent=1 // pred_fallthru
      _
    // Predicated region
    $region6: #{srsc_forward.1} parent=1 // pred_check
      _
    $region7: #{srsc_forward.1} parent=1 // pred_check_branch
      %24 = sbr.rel (0) target = $region9
    $region8: #{srsc_forward.1} parent=1 // pred_region
      _
    $region9: #{srsc_forward.1} parent=1 // pred_fallthru
      _
    // Predicated region
    $region10: #{srsc_forward.1} parent=1 // pred_check
      _
    $region11: #{srsc_forward.1} parent=1 // pred_check_branch
      %26 = sbr.rel (0) target = $region13
    $region12: #{srsc_forward.1} parent=1 // pred_region
      _
    $region13: #{srsc_forward.1} parent=1 // pred_fallthru
      _
    // Predicated region
    $region14: #{srsc_forward.1} parent=1 // pred_check
      _
    $region15: #{srsc_forward.1} parent=1 // pred_check_branch
      %28 = sbr.rel (0) target = $region17
    $region16: #{srsc_forward.1} parent=1 // pred_region
      _
    $region17: #{srsc_forward.1} parent=1 // pred_fallthru
      _
    // Predicated region
    $region18: #{srsc_forward.1} parent=1 // pred_check
      _
    $region19: #{srsc_forward.1} parent=1 // pred_check_branch
      %30 = sbr.rel (0) target = $region21
    $region20: #{srsc_forward.1} parent=1 // pred_region
      _
    $region21: #{srsc_forward.1} parent=1 // pred_fallthru
      _
    // Predicated region
    $region22: #{srsc_forward.1} parent=1 // pred_check
      _
    $region23: #{srsc_forward.1} parent=1 // pred_check_branch
      %32 = sbr.rel (0) target = $region25
    $region24: #{srsc_forward.1} parent=1 // pred_region
      _
    $region25: #{srsc_forward.1} parent=1 // pred_fallthru
      _
    // Predicated region
    $region26: #{srsc_forward.1} parent=1 // pred_check
      _
    $region27: #{srsc_forward.1} parent=1 // pred_check_branch
      %34 = sbr.rel (0) target = $region29
    $region28: #{srsc_forward.1} parent=1 // pred_region
      _
    $region29: #{srsc_forward.1} parent=1 // pred_fallthru
      _
    // Predicated region
    $region30: #{srsc_forward.1} parent=1 // pred_check
      _
    $region31: #{srsc_forward.1} parent=1 // pred_check_branch
      %36 = sbr.rel (0) target = $region33
    $region32: #{srsc_forward.1} parent=1 // pred_region
      _
    $region33: #{srsc_forward.1} parent=1 // pred_fallthru
      _
    // Predicated region
    $region34: #{srsc_forward.1} parent=1 // pred_check
      _
    $region35: #{srsc_forward.1} parent=1 // pred_check_branch
      %38 = sbr.rel (0) target = $region37
    $region36: #{srsc_forward.1} parent=1 // pred_region
      _
    $region37: #{srsc_forward.1} parent=1 // pred_fallthru
      _
    // Predicated region
    $region38: #{srsc_forward.1} parent=1 // pred_check
      _
    $region39: #{srsc_forward.1} parent=1 // pred_check_branch
      %40 = sbr.rel (0) target = $region41
    $region40: #{srsc_forward.1} parent=1 // pred_region
      _
    $region41: #{srsc_forward.1} parent=1 // pred_fallthru
      _
    // Predicated region
    $region42: #{srsc_forward.1} parent=1 // pred_check
      _
    $region43: #{srsc_forward.1} parent=1 // pred_check_branch
      %42 = sbr.rel (0) target = $region45
    $region44: #{srsc_forward.1} parent=1 // pred_region
      _
    $region45: #{srsc_forward.1} parent=1 // pred_fallthru
      _
    // Predicated region
    $region46: #{srsc_forward.1} parent=1 // pred_check
      _
    $region47: #{srsc_forward.1} parent=1 // pred_check_branch
      %44 = sbr.rel (0) target = $region49
    $region48: #{srsc_forward.1} parent=1 // pred_region
      _
    $region49: #{srsc_forward.1} parent=1 // pred_fallthru
      _
    %v45 = vld [vmem:[%s0] sm:$0x77]
    %v46 = vld [vmem:[%s0 + $0x8] sm:$0x77]
    %v47 = vld [vmem:[%s0 + $0x10] sm:$0x77]
    %v48 = vld [vmem:[%s0 + $0x18] sm:$0x77]
    %v49 = vld [vmem:[%s0 + $0x20] sm:$0x77]
    %v50 = vld [vmem:[%s0 + $0x28] sm:$0x77]
    %v51 = vld [vmem:[%s0 + $0x30] sm:$0x77]
    %v52 = vld [vmem:[%s0 + $0x38] sm:$0x77]
    %61 = vst [vmem:[#allocation1] ss:$2 sm:$0xff] %v45
    %v62 = vld.sshfl [vmem:[#allocation1] sm:$0xff pattern:$0x75316420]
    %v63 = vld.sshfl [vmem:[#allocation1 + $0x8] sm:$0xff pattern:$0x75316420]
    %s64 = scalar_lea.vmem [#allocation1], 16
    %65 = vst [vmem:[%s64] ss:$2 sm:$0xff] %v46
    %v66 = vld.sshfl [vmem:[#allocation1 + $0x10] sm:$0xff pattern:$0x75316420]
    %v67 = vld.sshfl [vmem:[#allocation1 + $0x18] sm:$0xff pattern:$0x75316420]
    %s68 = scalar_lea.vmem [#allocation1], 32
    %69 = vst [vmem:[%s68] ss:$2 sm:$0xff] %v47
    %v70 = vld.sshfl [vmem:[#allocation1 + $0x20] sm:$0xff pattern:$0x75316420]
    %v71 = vld.sshfl [vmem:[#allocation1 + $0x28] sm:$0xff pattern:$0x75316420]
    %s72 = scalar_lea.vmem [#allocation1], 48
    %73 = vst [vmem:[%s72] ss:$2 sm:$0xff] %v48
    %v74 = vld.sshfl [vmem:[#allocation1 + $0x30] sm:$0xff pattern:$0x75316420]
    %v75 = vld.sshfl [vmem:[#allocation1 + $0x38] sm:$0xff pattern:$0x75316420]
    %76 = vst [vmem:[#allocation1] ss:$2 sm:$0xff] %v49
    %v77 = vld.sshfl [vmem:[#allocation1] sm:$0xff pattern:$0x75316420]
    %v78 = vld.sshfl [vmem:[#allocation1 + $0x8] sm:$0xff pattern:$0x75316420]
    %79 = vst [vmem:[%s64] ss:$2 sm:$0xff] %v50
    %v80 = vld.sshfl [vmem:[#allocation1 + $0x10] sm:$0xff pattern:$0x75316420]
    %v81 = vld.sshfl [vmem:[#allocation1 + $0x18] sm:$0xff pattern:$0x75316420]
    %82 = vst [vmem:[%s68] ss:$2 sm:$0xff] %v51
    %v83 = vld.sshfl [vmem:[#allocation1 + $0x20] sm:$0xff pattern:$0x75316420]
    %v84 = vld.sshfl [vmem:[#allocation1 + $0x28] sm:$0xff pattern:$0x75316420]
    %85 = vst [vmem:[%s72] ss:$2 sm:$0xff] %v52
    %v86 = vld.sshfl [vmem:[#allocation1 + $0x30] sm:$0xff pattern:$0x75316420]
    %v87 = vld.sshfl [vmem:[#allocation1 + $0x38] sm:$0xff pattern:$0x75316420]
    %vm104 = vcmask 1042432
    %v105 = vsel %vm104, %v62, 0.0
    %v106 = vsel %vm104, %v63, 0.0
    %v107 = vadd.f32 %v105, %v106
    %108 = vadd.xlane.f32.xlu0 %v107
    %v109 = vpop.xlane.xlu0 %108
    %v110 = vsel %vm104, %v66, 0.0
    %v111 = vsel %vm104, %v67, 0.0
    %v112 = vadd.f32 %v110, %v111
    %113 = vadd.xlane.f32.xlu0 %v112
    %v114 = vpop.xlane.xlu0 %113
    %v115 = vsel %vm104, %v70, 0.0
    %v116 = vsel %vm104, %v71, 0.0
    %v117 = vadd.f32 %v115, %v116
    %118 = vadd.xlane.f32.xlu0 %v117
    %v119 = vpop.xlane.xlu0 %118
    %v120 = vsel %vm104, %v74, 0.0
    %v121 = vsel %vm104, %v75, 0.0
    %v122 = vadd.f32 %v120, %v121
    %123 = vadd.xlane.f32.xlu0 %v122
    %v124 = vpop.xlane.xlu0 %123
    %v125 = vsel %vm104, %v77, 0.0
    %v126 = vsel %vm104, %v78, 0.0
    %v127 = vadd.f32 %v125, %v126
    %128 = vadd.xlane.f32.xlu0 %v127
    %v129 = vpop.xlane.xlu0 %128
    %v130 = vsel %vm104, %v80, 0.0
    %v131 = vsel %vm104, %v81, 0.0
    %v132 = vadd.f32 %v130, %v131
    %133 = vadd.xlane.f32.xlu0 %v132
    %v134 = vpop.xlane.xlu0 %133
    %v135 = vsel %vm104, %v83, 0.0
    %v136 = vsel %vm104, %v84, 0.0
    %v137 = vadd.f32 %v135, %v136
    %138 = vadd.xlane.f32.xlu0 %v137
    %v139 = vpop.xlane.xlu0 %138
    %v140 = vsel %vm104, %v86, 0.0
    %v141 = vsel %vm104, %v87, 0.0
    %v142 = vadd.f32 %v140, %v141
    %143 = vadd.xlane.f32.xlu0 %v142
    %v144 = vpop.xlane.xlu0 %143
    %v145 = vrcp.pop 256.0
    %v146 = vmul.f32 256.0, %v145
    %v147 = vsub.f32 1.0, %v146
    %v148 = vmul.f32 %v145, %v147
    %v149 = vadd.f32 %v145, %v148
    %vm150 = vweird.f32 %v145
    %v151 = vsel %vm150, %v145, %v149
    %v152 = vmul.f32 %v109, %v151
    %v153 = vmul.f32 %v114, %v151
    %v154 = vmul.f32 %v119, %v151
    %v155 = vmul.f32 %v124, %v151
    %v156 = vmul.f32 %v129, %v151
    %v157 = vmul.f32 %v134, %v151
    %v158 = vmul.f32 %v139, %v151
    %v159 = vmul.f32 %v144, %v151
    %v160 = vld [vmem:[%s1] sm:$0x7]
    %v161 = vld [vmem:[%s2] sm:$0x1]
    %v163 = vperm.slane %v161, 0
    %v173 = vlaneseq
    %v174 = vand.u32 %v173, 127
    %v175 = vperm.slane %v152, %v174
    %v176 = vperm.slane %v153, %v174
    %v177 = vperm.slane %v154, %v174
    %v178 = vperm.slane %v155, %v174
    %v179 = vperm.slane %v156, %v174
    %v180 = vperm.slane %v157, %v174
    %v181 = vperm.slane %v158, %v174
    %v182 = vperm.slane %v159, %v174
    %vm183 = vcmask 1041409
    %v184 = vsel %vm183, %v176, %v175
    %vm185 = vcmask 1042434
    %v186 = vsel %vm185, %v177, %v184
    %vm187 = vcmask 1043459
    %v188 = vsel %vm187, %v178, %v186
    %vm189 = vcmask 1044484
    %v190 = vsel %vm189, %v179, %v188
    %vm191 = vcmask 1045509
    %v192 = vsel %vm191, %v180, %v190
    %vm193 = vcmask 1046534
    %v194 = vsel %vm193, %v181, %v192
    %vm195 = vcmask 1047559
    %v196 = vsel %vm195, %v182, %v194
    %vm197 = vcmask 23552
    %v198 = vsel %vm197, %v196, 0
    %v201 = vsel %vm104, %v160, 0
    %203 = vmatpush.msra.mxu0 0.0
    %204 = vmatpush.msra.mxu0 0.0
    %205 = vmatpush.msra.mxu0 0.0
    %206 = vmatpush.msra.mxu0 0.0
    %207 = vmatpush.msra.mxu0 0.0
    %208 = vmatpush.msra.mxu0 0.0
    %209 = vmatpush.msra.mxu0 0.0
    %210 = vmatpush.msra.mxu0 0.0
    %211 = vmatpush.msra.mxu0 0.0
    %212 = vmatpush.msra.mxu0 0.0
    %213 = vmatpush.msra.mxu0 0.0
    %214 = vmatpush.msra.mxu0 0.0
    %215 = vmatpush.msra.mxu0 0.0
    %216 = vmatpush.msra.mxu0 0.0
    %217 = vmatpush.msra.mxu0 0.0
    %218 = vmatpush.msra.mxu0 %v201
    %219 = vmatmul.f32.gmra.mxu0 %v198
    %v220 = vpop.f32.mrf.mxu0
    %v221 = vadd.f32 %v163, %v220
    %222 = vdwg.mxu0
    %v223 = vmax.f32 %v221, 0.0
    %v225 = vrot.slane %v223, 4
    %v227 = vld [vmem:[%s4] sm:$0xff]
    %v228 = vld [vmem:[%s4 + $0x8] sm:$0xff]
    %v229 = vld [vmem:[%s4 + $0x10] sm:$0xff]
    %v230 = vld [vmem:[%s4 + $0x18] sm:$0xff]
    %v231 = vld [vmem:[%s4 + $0x20] sm:$0xff]
    %v232 = vld [vmem:[%s4 + $0x28] sm:$0xff]
    %v233 = vld [vmem:[%s4 + $0x30] sm:$0xff]
    %v234 = vld [vmem:[%s4 + $0x38] sm:$0xff]
    %v235 = vld [vmem:[%s4 + $0x40] sm:$0xff]
    %v236 = vld [vmem:[%s4 + $0x48] sm:$0xff]
    %v237 = vld [vmem:[%s4 + $0x50] sm:$0xff]
    %v238 = vld [vmem:[%s4 + $0x58] sm:$0xff]
    %v239 = vld [vmem:[%s4 + $0x60] sm:$0xff]
    %v240 = vld [vmem:[%s4 + $0x68] sm:$0xff]
    %v241 = vld [vmem:[%s4 + $0x70] sm:$0xff]
    %v242 = vld [vmem:[%s4 + $0x78] sm:$0xff]
    %v243 = vld [vmem:[%s4 + $0x80] sm:$0xff]
    %v244 = vld [vmem:[%s4 + $0x88] sm:$0xff]
    %v245 = vld [vmem:[%s4 + $0x90] sm:$0xff]
    %v246 = vld [vmem:[%s4 + $0x98] sm:$0xff]
    %v247 = vld [vmem:[%s4 + $0xa0] sm:$0xff]
    %v248 = vld [vmem:[%s4 + $0xa8] sm:$0xff]
    %v249 = vld [vmem:[%s4 + $0xb0] sm:$0xff]
    %v250 = vld [vmem:[%s4 + $0xb8] sm:$0xff]
    %v251 = vld [vmem:[%s4 + $0xc0] sm:$0xff]
    %v252 = vld [vmem:[%s4 + $0xc8] sm:$0xff]
    %v253 = vld [vmem:[%s4 + $0xd0] sm:$0xff]
    %v254 = vld [vmem:[%s4 + $0xd8] sm:$0xff]
    %v255 = vld [vmem:[%s4 + $0xe0] sm:$0xff]
    %v256 = vld [vmem:[%s4 + $0xe8] sm:$0xff]
    %v257 = vld [vmem:[%s4 + $0xf0] sm:$0xff]
    %v258 = vld [vmem:[%s4 + $0xf8] sm:$0xff]
    %v259 = vld [vmem:[%s4 + $0x100] sm:$0xff]
    %v260 = vld [vmem:[%s4 + $0x108] sm:$0xff]
    %v261 = vld [vmem:[%s4 + $0x110] sm:$0xff]
    %v262 = vld [vmem:[%s4 + $0x118] sm:$0xff]
    %v263 = vld [vmem:[%s4 + $0x120] sm:$0xff]
    %v264 = vld [vmem:[%s4 + $0x128] sm:$0xff]
    %v265 = vld [vmem:[%s4 + $0x130] sm:$0xff]
    %v266 = vld [vmem:[%s4 + $0x138] sm:$0xff]
    %v267 = vld [vmem:[%s4 + $0x140] sm:$0xff]
    %v268 = vld [vmem:[%s4 + $0x148] sm:$0xff]
    %v269 = vld [vmem:[%s4 + $0x150] sm:$0xff]
    %v270 = vld [vmem:[%s4 + $0x158] sm:$0xff]
    %v271 = vld [vmem:[%s4 + $0x160] sm:$0xff]
    %v272 = vld [vmem:[%s4 + $0x168] sm:$0xff]
    %v273 = vld [vmem:[%s4 + $0x170] sm:$0xff]
    %v274 = vld [vmem:[%s4 + $0x178] sm:$0xff]
    %v275 = vld [vmem:[%s4 + $0x180] sm:$0xff]
    %v276 = vld [vmem:[%s4 + $0x188] sm:$0xff]
    %v277 = vld [vmem:[%s4 + $0x190] sm:$0xff]
    %v278 = vld [vmem:[%s4 + $0x198] sm:$0xff]
    %v279 = vld [vmem:[%s4 + $0x1a0] sm:$0xff]
    %v280 = vld [vmem:[%s4 + $0x1a8] sm:$0xff]
    %v281 = vld [vmem:[%s4 + $0x1b0] sm:$0xff]
    %v282 = vld [vmem:[%s4 + $0x1b8] sm:$0xff]
    %v283 = vld [vmem:[%s4 + $0x1c0] sm:$0xff]
    %v284 = vld [vmem:[%s4 + $0x1c8] sm:$0xff]
    %v285 = vld [vmem:[%s4 + $0x1d0] sm:$0xff]
    %v286 = vld [vmem:[%s4 + $0x1d8] sm:$0xff]
    %v287 = vld [vmem:[%s4 + $0x1e0] sm:$0xff]
    %v288 = vld [vmem:[%s4 + $0x1e8] sm:$0xff]
    %v289 = vld [vmem:[%s4 + $0x1f0] sm:$0xff]
    %v290 = vld [vmem:[%s4 + $0x1f8] sm:$0xff]
    %v291 = vld [vmem:[%s6] sm:$0xff]
    %v292 = vld [vmem:[%s6 + $0x8] sm:$0xff]
    %v293 = vld [vmem:[%s6 + $0x10] sm:$0xff]
    %v294 = vld [vmem:[%s6 + $0x18] sm:$0xff]
    %v295 = vld [vmem:[%s6 + $0x20] sm:$0xff]
    %v296 = vld [vmem:[%s6 + $0x28] sm:$0xff]
    %v297 = vld [vmem:[%s6 + $0x30] sm:$0xff]
    %v298 = vld [vmem:[%s6 + $0x38] sm:$0xff]
    %v299 = vld [vmem:[%s6 + $0x40] sm:$0xff]
    %v300 = vld [vmem:[%s6 + $0x48] sm:$0xff]
    %v301 = vld [vmem:[%s6 + $0x50] sm:$0xff]
    %v302 = vld [vmem:[%s6 + $0x58] sm:$0xff]
    %v303 = vld [vmem:[%s6 + $0x60] sm:$0xff]
    %v304 = vld [vmem:[%s6 + $0x68] sm:$0xff]
    %v305 = vld [vmem:[%s6 + $0x70] sm:$0xff]
    %v306 = vld [vmem:[%s6 + $0x78] sm:$0xff]
    %v307 = vld [vmem:[%s6 + $0x80] sm:$0xff]
    %v308 = vld [vmem:[%s6 + $0x88] sm:$0xff]
    %v309 = vld [vmem:[%s6 + $0x90] sm:$0xff]
    %v310 = vld [vmem:[%s6 + $0x98] sm:$0xff]
    %v311 = vld [vmem:[%s6 + $0xa0] sm:$0xff]
    %v312 = vld [vmem:[%s6 + $0xa8] sm:$0xff]
    %v313 = vld [vmem:[%s6 + $0xb0] sm:$0xff]
    %v314 = vld [vmem:[%s6 + $0xb8] sm:$0xff]
    %v315 = vld [vmem:[%s6 + $0xc0] sm:$0xff]
    %v316 = vld [vmem:[%s6 + $0xc8] sm:$0xff]
    %v317 = vld [vmem:[%s6 + $0xd0] sm:$0xff]
    %v318 = vld [vmem:[%s6 + $0xd8] sm:$0xff]
    %v319 = vld [vmem:[%s6 + $0xe0] sm:$0xff]
    %v320 = vld [vmem:[%s6 + $0xe8] sm:$0xff]
    %v321 = vld [vmem:[%s6 + $0xf0] sm:$0xff]
    %v322 = vld [vmem:[%s6 + $0xf8] sm:$0xff]
    %v323 = vld [vmem:[%s6 + $0x100] sm:$0xff]
    %v324 = vld [vmem:[%s6 + $0x108] sm:$0xff]
    %v325 = vld [vmem:[%s6 + $0x110] sm:$0xff]
    %v326 = vld [vmem:[%s6 + $0x118] sm:$0xff]
    %v327 = vld [vmem:[%s6 + $0x120] sm:$0xff]
    %v328 = vld [vmem:[%s6 + $0x128] sm:$0xff]
    %v329 = vld [vmem:[%s6 + $0x130] sm:$0xff]
    %v330 = vld [vmem:[%s6 + $0x138] sm:$0xff]
    %v331 = vld [vmem:[%s6 + $0x140] sm:$0xff]
    %v332 = vld [vmem:[%s6 + $0x148] sm:$0xff]
    %v333 = vld [vmem:[%s6 + $0x150] sm:$0xff]
    %v334 = vld [vmem:[%s6 + $0x158] sm:$0xff]
    %v335 = vld [vmem:[%s6 + $0x160] sm:$0xff]
    %v336 = vld [vmem:[%s6 + $0x168] sm:$0xff]
    %v337 = vld [vmem:[%s6 + $0x170] sm:$0xff]
    %v338 = vld [vmem:[%s6 + $0x178] sm:$0xff]
    %v339 = vld [vmem:[%s6 + $0x180] sm:$0xff]
    %v340 = vld [vmem:[%s6 + $0x188] sm:$0xff]
    %v341 = vld [vmem:[%s6 + $0x190] sm:$0xff]
    %v342 = vld [vmem:[%s6 + $0x198] sm:$0xff]
    %v343 = vld [vmem:[%s6 + $0x1a0] sm:$0xff]
    %v344 = vld [vmem:[%s6 + $0x1a8] sm:$0xff]
    %v345 = vld [vmem:[%s6 + $0x1b0] sm:$0xff]
    %v346 = vld [vmem:[%s6 + $0x1b8] sm:$0xff]
    %v347 = vld [vmem:[%s6 + $0x1c0] sm:$0xff]
    %v348 = vld [vmem:[%s6 + $0x1c8] sm:$0xff]
    %v349 = vld [vmem:[%s6 + $0x1d0] sm:$0xff]
    %v350 = vld [vmem:[%s6 + $0x1d8] sm:$0xff]
    %v351 = vld [vmem:[%s6 + $0x1e0] sm:$0xff]
    %v352 = vld [vmem:[%s6 + $0x1e8] sm:$0xff]
    %v353 = vld [vmem:[%s6 + $0x1f0] sm:$0xff]
    %v354 = vld [vmem:[%s6 + $0x1f8] sm:$0xff]
    %v355 = vld [vmem:[%s6 + $0x200] sm:$0xff]
    %v356 = vld [vmem:[%s6 + $0x208] sm:$0xff]
    %v357 = vld [vmem:[%s6 + $0x210] sm:$0xff]
    %v358 = vld [vmem:[%s6 + $0x218] sm:$0xff]
    %v359 = vld [vmem:[%s6 + $0x220] sm:$0xff]
    %v360 = vld [vmem:[%s6 + $0x228] sm:$0xff]
    %v361 = vld [vmem:[%s6 + $0x230] sm:$0xff]
    %v362 = vld [vmem:[%s6 + $0x238] sm:$0xff]
    %v363 = vld [vmem:[%s6 + $0x240] sm:$0xff]
    %v364 = vld [vmem:[%s6 + $0x248] sm:$0xff]
    %v365 = vld [vmem:[%s6 + $0x250] sm:$0xff]
    %v366 = vld [vmem:[%s6 + $0x258] sm:$0xff]
    %v367 = vld [vmem:[%s6 + $0x260] sm:$0xff]
    %v368 = vld [vmem:[%s6 + $0x268] sm:$0xff]
    %v369 = vld [vmem:[%s6 + $0x270] sm:$0xff]
    %v370 = vld [vmem:[%s6 + $0x278] sm:$0xff]
    %v371 = vld [vmem:[%s6 + $0x280] sm:$0xff]
    %v372 = vld [vmem:[%s6 + $0x288] sm:$0xff]
    %v373 = vld [vmem:[%s6 + $0x290] sm:$0xff]
    %v374 = vld [vmem:[%s6 + $0x298] sm:$0xff]
    %v375 = vld [vmem:[%s6 + $0x2a0] sm:$0xff]
    %v376 = vld [vmem:[%s6 + $0x2a8] sm:$0xff]
    %v377 = vld [vmem:[%s6 + $0x2b0] sm:$0xff]
    %v378 = vld [vmem:[%s6 + $0x2b8] sm:$0xff]
    %v379 = vld [vmem:[%s6 + $0x2c0] sm:$0xff]
    %v380 = vld [vmem:[%s6 + $0x2c8] sm:$0xff]
    %v381 = vld [vmem:[%s6 + $0x2d0] sm:$0xff]
    %v382 = vld [vmem:[%s6 + $0x2d8] sm:$0xff]
    %v383 = vld [vmem:[%s6 + $0x2e0] sm:$0xff]
    %v384 = vld [vmem:[%s6 + $0x2e8] sm:$0xff]
    %v385 = vld [vmem:[%s6 + $0x2f0] sm:$0xff]
    %v386 = vld [vmem:[%s6 + $0x2f8] sm:$0xff]
    %v387 = vld [vmem:[%s6 + $0x300] sm:$0xff]
    %v388 = vld [vmem:[%s6 + $0x308] sm:$0xff]
    %v389 = vld [vmem:[%s6 + $0x310] sm:$0xff]
    %v390 = vld [vmem:[%s6 + $0x318] sm:$0xff]
    %v391 = vld [vmem:[%s6 + $0x320] sm:$0xff]
    %v392 = vld [vmem:[%s6 + $0x328] sm:$0xff]
    %v393 = vld [vmem:[%s6 + $0x330] sm:$0xff]
    %v394 = vld [vmem:[%s6 + $0x338] sm:$0xff]
    %v395 = vld [vmem:[%s6 + $0x340] sm:$0xff]
    %v396 = vld [vmem:[%s6 + $0x348] sm:$0xff]
    %v397 = vld [vmem:[%s6 + $0x350] sm:$0xff]
    %v398 = vld [vmem:[%s6 + $0x358] sm:$0xff]
    %v399 = vld [vmem:[%s6 + $0x360] sm:$0xff]
    %v400 = vld [vmem:[%s6 + $0x368] sm:$0xff]
    %v401 = vld [vmem:[%s6 + $0x370] sm:$0xff]
    %v402 = vld [vmem:[%s6 + $0x378] sm:$0xff]
    %v403 = vld [vmem:[%s6 + $0x380] sm:$0xff]
    %v404 = vld [vmem:[%s6 + $0x388] sm:$0xff]
    %v405 = vld [vmem:[%s6 + $0x390] sm:$0xff]
    %v406 = vld [vmem:[%s6 + $0x398] sm:$0xff]
    %v407 = vld [vmem:[%s6 + $0x3a0] sm:$0xff]
    %v408 = vld [vmem:[%s6 + $0x3a8] sm:$0xff]
    %v409 = vld [vmem:[%s6 + $0x3b0] sm:$0xff]
    %v410 = vld [vmem:[%s6 + $0x3b8] sm:$0xff]
    %v411 = vld [vmem:[%s6 + $0x3c0] sm:$0xff]
    %v412 = vld [vmem:[%s6 + $0x3c8] sm:$0xff]
    %v413 = vld [vmem:[%s6 + $0x3d0] sm:$0xff]
    %v414 = vld [vmem:[%s6 + $0x3d8] sm:$0xff]
    %v415 = vld [vmem:[%s6 + $0x3e0] sm:$0xff]
    %v416 = vld [vmem:[%s6 + $0x3e8] sm:$0xff]
    %v417 = vld [vmem:[%s6 + $0x3f0] sm:$0xff]
    %v418 = vld [vmem:[%s6 + $0x3f8] sm:$0xff]
    %v419 = vld [vmem:[%s7] sm:$0xf]
    %v421 = vperm.slane %v419, 0
    %v422 = vperm.slane %v419, 1
    %v423 = vperm.slane %v419, 2
    %v424 = vperm.slane %v419, 3
    %v429 = vld [vmem:[%s8] sm:$0xff]
    %v430 = vld [vmem:[%s8 + $0x8] sm:$0xff]
    %v431 = vld [vmem:[%s8 + $0x10] sm:$0xff]
    %v432 = vld [vmem:[%s8 + $0x18] sm:$0xff]
    %v433 = vld [vmem:[%s8 + $0x20] sm:$0xff]
    %v434 = vld [vmem:[%s8 + $0x28] sm:$0xff]
    %v435 = vld [vmem:[%s8 + $0x30] sm:$0xff]
    %v436 = vld [vmem:[%s8 + $0x38] sm:$0xff]
    %v437 = vld [vmem:[%s8 + $0x40] sm:$0xff]
    %v438 = vld [vmem:[%s8 + $0x48] sm:$0xff]
    %v439 = vld [vmem:[%s8 + $0x50] sm:$0xff]
    %v440 = vld [vmem:[%s8 + $0x58] sm:$0xff]
    %v441 = vld [vmem:[%s8 + $0x60] sm:$0xff]
    %v442 = vld [vmem:[%s8 + $0x68] sm:$0xff]
    %v443 = vld [vmem:[%s8 + $0x70] sm:$0xff]
    %v444 = vld [vmem:[%s8 + $0x78] sm:$0xff]
    %v445 = vld [vmem:[%s9] sm:$0xff]
    %v446 = vld [vmem:[%s9 + $0x8] sm:$0xff]
    %v447 = vld [vmem:[%s9 + $0x10] sm:$0xff]
    %v448 = vld [vmem:[%s9 + $0x18] sm:$0xff]
    %v449 = vld [vmem:[%s9 + $0x20] sm:$0xff]
    %v450 = vld [vmem:[%s9 + $0x28] sm:$0xff]
    %v451 = vld [vmem:[%s9 + $0x30] sm:$0xff]
    %v452 = vld [vmem:[%s9 + $0x38] sm:$0xff]
    %v453 = vld [vmem:[%s9 + $0x40] sm:$0xff]
    %v454 = vld [vmem:[%s9 + $0x48] sm:$0xff]
    %v455 = vld [vmem:[%s9 + $0x50] sm:$0xff]
    %v456 = vld [vmem:[%s9 + $0x58] sm:$0xff]
    %v457 = vld [vmem:[%s9 + $0x60] sm:$0xff]
    %v458 = vld [vmem:[%s9 + $0x68] sm:$0xff]
    %v459 = vld [vmem:[%s9 + $0x70] sm:$0xff]
    %v460 = vld [vmem:[%s9 + $0x78] sm:$0xff]
    %v461 = vld [vmem:[%s10] sm:$0x1]
    %v462 = vld [vmem:[%s3] sm:$0xff]
    %v463 = vld [vmem:[%s3 + $0x8] sm:$0xff]
    %v464 = vld [vmem:[%s3 + $0x10] sm:$0xff]
    %v465 = vld [vmem:[%s3 + $0x18] sm:$0xff]
    %v466 = vld [vmem:[%s3 + $0x20] sm:$0xff]
    %v467 = vld [vmem:[%s3 + $0x28] sm:$0xff]
    %v468 = vld [vmem:[%s3 + $0x30] sm:$0xff]
    %v469 = vld [vmem:[%s3 + $0x38] sm:$0xff]
    %v470 = vld [vmem:[%s3 + $0x40] sm:$0xff]
    %v471 = vld [vmem:[%s3 + $0x48] sm:$0xff]
    %v472 = vld [vmem:[%s3 + $0x50] sm:$0xff]
    %v473 = vld [vmem:[%s3 + $0x58] sm:$0xff]
    %v474 = vld [vmem:[%s3 + $0x60] sm:$0xff]
    %v475 = vld [vmem:[%s3 + $0x68] sm:$0xff]
    %v476 = vld [vmem:[%s3 + $0x70] sm:$0xff]
    %v477 = vld [vmem:[%s3 + $0x78] sm:$0xff]
    %v478 = vld [vmem:[%s3 + $0x80] sm:$0xff]
    %v479 = vld [vmem:[%s3 + $0x88] sm:$0xff]
    %v480 = vld [vmem:[%s3 + $0x90] sm:$0xff]
    %v481 = vld [vmem:[%s3 + $0x98] sm:$0xff]
    %v482 = vld [vmem:[%s3 + $0xa0] sm:$0xff]
    %v483 = vld [vmem:[%s3 + $0xa8] sm:$0xff]
    %v484 = vld [vmem:[%s3 + $0xb0] sm:$0xff]
    %v485 = vld [vmem:[%s3 + $0xb8] sm:$0xff]
    %v486 = vld [vmem:[%s3 + $0xc0] sm:$0xff]
    %v487 = vld [vmem:[%s3 + $0xc8] sm:$0xff]
    %v488 = vld [vmem:[%s3 + $0xd0] sm:$0xff]
    %v489 = vld [vmem:[%s3 + $0xd8] sm:$0xff]
    %v490 = vld [vmem:[%s3 + $0xe0] sm:$0xff]
    %v491 = vld [vmem:[%s3 + $0xe8] sm:$0xff]
    %v492 = vld [vmem:[%s3 + $0xf0] sm:$0xff]
    %v493 = vld [vmem:[%s3 + $0xf8] sm:$0xff]
    %v494 = vld [vmem:[%s3 + $0x100] sm:$0xff]
    %v495 = vld [vmem:[%s3 + $0x108] sm:$0xff]
    %v496 = vld [vmem:[%s3 + $0x110] sm:$0xff]
    %v497 = vld [vmem:[%s3 + $0x118] sm:$0xff]
    %v498 = vld [vmem:[%s3 + $0x120] sm:$0xff]
    %v499 = vld [vmem:[%s3 + $0x128] sm:$0xff]
    %v500 = vld [vmem:[%s3 + $0x130] sm:$0xff]
    %v501 = vld [vmem:[%s3 + $0x138] sm:$0xff]
    %v502 = vld [vmem:[%s3 + $0x140] sm:$0xff]
    %v503 = vld [vmem:[%s3 + $0x148] sm:$0xff]
    %v504 = vld [vmem:[%s3 + $0x150] sm:$0xff]
    %v505 = vld [vmem:[%s3 + $0x158] sm:$0xff]
    %v506 = vld [vmem:[%s3 + $0x160] sm:$0xff]
    %v507 = vld [vmem:[%s3 + $0x168] sm:$0xff]
    %v508 = vld [vmem:[%s3 + $0x170] sm:$0xff]
    %v509 = vld [vmem:[%s3 + $0x178] sm:$0xff]
    %v510 = vld [vmem:[%s3 + $0x180] sm:$0xff]
    %v511 = vld [vmem:[%s3 + $0x188] sm:$0xff]
    %v512 = vld [vmem:[%s3 + $0x190] sm:$0xff]
    %v513 = vld [vmem:[%s3 + $0x198] sm:$0xff]
    %v514 = vld [vmem:[%s3 + $0x1a0] sm:$0xff]
    %v515 = vld [vmem:[%s3 + $0x1a8] sm:$0xff]
    %v516 = vld [vmem:[%s3 + $0x1b0] sm:$0xff]
    %v517 = vld [vmem:[%s3 + $0x1b8] sm:$0xff]
    %v518 = vld [vmem:[%s3 + $0x1c0] sm:$0xff]
    %v519 = vld [vmem:[%s3 + $0x1c8] sm:$0xff]
    %v520 = vld [vmem:[%s3 + $0x1d0] sm:$0xff]
    %v521 = vld [vmem:[%s3 + $0x1d8] sm:$0xff]
    %v522 = vld [vmem:[%s3 + $0x1e0] sm:$0xff]
    %v523 = vld [vmem:[%s3 + $0x1e8] sm:$0xff]
    %v524 = vld [vmem:[%s3 + $0x1f0] sm:$0xff]
    %v525 = vld [vmem:[%s3 + $0x1f8] sm:$0xff]
    %v526 = vld [vmem:[%s5] sm:$0xf]
    %v528 = vperm.slane %v526, 0
    %v529 = vperm.slane %v526, 1
    %v530 = vperm.slane %v526, 2
    %v531 = vperm.slane %v526, 3
    %536 = vmatpush.msra.mxu0 %v522
    %537 = vmatpush.msra.mxu0 %v518
    %538 = vmatpush.msra.mxu0 %v514
    %539 = vmatpush.msra.mxu0 %v510
    %540 = vmatpush.msra.mxu0 %v506
    %541 = vmatpush.msra.mxu0 %v502
    %542 = vmatpush.msra.mxu0 %v498
    %543 = vmatpush.msra.mxu0 %v494
    %544 = vmatpush.msra.mxu0 %v490
    %545 = vmatpush.msra.mxu0 %v486
    %546 = vmatpush.msra.mxu0 %v482
    %547 = vmatpush.msra.mxu0 %v478
    %548 = vmatpush.msra.mxu0 %v474
    %549 = vmatpush.msra.mxu0 %v470
    %550 = vmatpush.msra.mxu0 %v466
    %551 = vmatpush.msra.mxu0 %v462
    %552 = vmatmul.f32.gmra.mxu0 %v223
    %v553 = vpop.f32.mrf.mxu0
    %v554 = vadd.f32 %v528, %v553
    %555 = vdwg.mxu0
    %556 = vmatpush.msra.mxu0 %v523
    %557 = vmatpush.msra.mxu0 %v519
    %558 = vmatpush.msra.mxu0 %v515
    %559 = vmatpush.msra.mxu0 %v511
    %560 = vmatpush.msra.mxu0 %v507
    %561 = vmatpush.msra.mxu0 %v503
    %562 = vmatpush.msra.mxu0 %v499
    %563 = vmatpush.msra.mxu0 %v495
    %564 = vmatpush.msra.mxu0 %v491
    %565 = vmatpush.msra.mxu0 %v487
    %566 = vmatpush.msra.mxu0 %v483
    %567 = vmatpush.msra.mxu0 %v479
    %568 = vmatpush.msra.mxu0 %v475
    %569 = vmatpush.msra.mxu0 %v471
    %570 = vmatpush.msra.mxu0 %v467
    %571 = vmatpush.msra.mxu0 %v463
    %572 = vmatmul.f32.gmra.mxu0 %v223
    %v573 = vpop.f32.mrf.mxu0
    %v574 = vadd.f32 %v529, %v573
    %575 = vdwg.mxu0
    %576 = vmatpush.msra.mxu0 %v524
    %577 = vmatpush.msra.mxu0 %v520
    %578 = vmatpush.msra.mxu0 %v516
    %579 = vmatpush.msra.mxu0 %v512
    %580 = vmatpush.msra.mxu0 %v508
    %581 = vmatpush.msra.mxu0 %v504
    %582 = vmatpush.msra.mxu0 %v500
    %583 = vmatpush.msra.mxu0 %v496
    %584 = vmatpush.msra.mxu0 %v492
    %585 = vmatpush.msra.mxu0 %v488
    %586 = vmatpush.msra.mxu0 %v484
    %587 = vmatpush.msra.mxu0 %v480
    %588 = vmatpush.msra.mxu0 %v476
    %589 = vmatpush.msra.mxu0 %v472
    %590 = vmatpush.msra.mxu0 %v468
    %591 = vmatpush.msra.mxu0 %v464
    %592 = vmatmul.f32.gmra.mxu0 %v223
    %v593 = vpop.f32.mrf.mxu0
    %v594 = vadd.f32 %v530, %v593
    %595 = vdwg.mxu0
    %596 = vmatpush.msra.mxu0 %v525
    %597 = vmatpush.msra.mxu0 %v521
    %598 = vmatpush.msra.mxu0 %v517
    %599 = vmatpush.msra.mxu0 %v513
    %600 = vmatpush.msra.mxu0 %v509
    %601 = vmatpush.msra.mxu0 %v505
    %602 = vmatpush.msra.mxu0 %v501
    %603 = vmatpush.msra.mxu0 %v497
    %604 = vmatpush.msra.mxu0 %v493
    %605 = vmatpush.msra.mxu0 %v489
    %606 = vmatpush.msra.mxu0 %v485
    %607 = vmatpush.msra.mxu0 %v481
    %608 = vmatpush.msra.mxu0 %v477
    %609 = vmatpush.msra.mxu0 %v473
    %610 = vmatpush.msra.mxu0 %v469
    %611 = vmatpush.msra.mxu0 %v465
    %612 = vmatmul.f32.gmra.mxu0 %v223
    %v613 = vpop.f32.mrf.mxu0
    %v614 = vadd.f32 %v531, %v613
    %615 = vdwg.mxu0
    %v620 = vrot.slane %v574, 4
    %v621 = vrot.slane %v614, 4
    %vm622 = vcmask 1043456
    %v623 = vsel %vm622, %v554, %v620
    %v624 = vsel %vm622, %v594, %v621
    %v625 = vsel %vm622, %v620, %v554
    %v626 = vrot.slane %v625, 4
    %v627 = vsel %vm622, %v621, %v594
    %v628 = vrot.slane %v627, 4
    %633 = vmatpush.msra.mxu0 %v287
    %634 = vmatpush.msra.mxu0 %v283
    %635 = vmatpush.msra.mxu0 %v279
    %636 = vmatpush.msra.mxu0 %v275
    %637 = vmatpush.msra.mxu0 %v271
    %638 = vmatpush.msra.mxu0 %v267
    %639 = vmatpush.msra.mxu0 %v263
    %640 = vmatpush.msra.mxu0 %v259
    %641 = vmatpush.msra.mxu0 %v255
    %642 = vmatpush.msra.mxu0 %v251
    %643 = vmatpush.msra.mxu0 %v247
    %644 = vmatpush.msra.mxu0 %v243
    %645 = vmatpush.msra.mxu0 %v239
    %646 = vmatpush.msra.mxu0 %v235
    %647 = vmatpush.msra.mxu0 %v231
    %648 = vmatpush.msra.mxu0 %v227
    %649 = vmatmul.f32.gmra.mxu0 0.0
    %v650 = vpop.f32.mrf.mxu0
    %v651 = vadd.f32 0.0, %v650
    %652 = vdwg.mxu0
    %653 = vmatpush.msra.mxu0 %v288
    %654 = vmatpush.msra.mxu0 %v284
    %655 = vmatpush.msra.mxu0 %v280
    %656 = vmatpush.msra.mxu0 %v276
    %657 = vmatpush.msra.mxu0 %v272
    %658 = vmatpush.msra.mxu0 %v268
    %659 = vmatpush.msra.mxu0 %v264
    %660 = vmatpush.msra.mxu0 %v260
    %661 = vmatpush.msra.mxu0 %v256
    %662 = vmatpush.msra.mxu0 %v252
    %663 = vmatpush.msra.mxu0 %v248
    %664 = vmatpush.msra.mxu0 %v244
    %665 = vmatpush.msra.mxu0 %v240
    %666 = vmatpush.msra.mxu0 %v236
    %667 = vmatpush.msra.mxu0 %v232
    %668 = vmatpush.msra.mxu0 %v228
    %669 = vmatmul.f32.gmra.mxu0 0.0
    %v670 = vpop.f32.mrf.mxu0
    %v671 = vadd.f32 0.0, %v670
    %672 = vdwg.mxu0
    %673 = vmatpush.msra.mxu0 %v289
    %674 = vmatpush.msra.mxu0 %v285
    %675 = vmatpush.msra.mxu0 %v281
    %676 = vmatpush.msra.mxu0 %v277
    %677 = vmatpush.msra.mxu0 %v273
    %678 = vmatpush.msra.mxu0 %v269
    %679 = vmatpush.msra.mxu0 %v265
    %680 = vmatpush.msra.mxu0 %v261
    %681 = vmatpush.msra.mxu0 %v257
    %682 = vmatpush.msra.mxu0 %v253
    %683 = vmatpush.msra.mxu0 %v249
    %684 = vmatpush.msra.mxu0 %v245
    %685 = vmatpush.msra.mxu0 %v241
    %686 = vmatpush.msra.mxu0 %v237
    %687 = vmatpush.msra.mxu0 %v233
    %688 = vmatpush.msra.mxu0 %v229
    %689 = vmatmul.f32.gmra.mxu0 0.0
    %v690 = vpop.f32.mrf.mxu0
    %v691 = vadd.f32 0.0, %v690
    %692 = vdwg.mxu0
    %693 = vmatpush.msra.mxu0 %v290
    %694 = vmatpush.msra.mxu0 %v286
    %695 = vmatpush.msra.mxu0 %v282
    %696 = vmatpush.msra.mxu0 %v278
    %697 = vmatpush.msra.mxu0 %v274
    %698 = vmatpush.msra.mxu0 %v270
    %699 = vmatpush.msra.mxu0 %v266
    %700 = vmatpush.msra.mxu0 %v262
    %701 = vmatpush.msra.mxu0 %v258
    %702 = vmatpush.msra.mxu0 %v254
    %703 = vmatpush.msra.mxu0 %v250
    %704 = vmatpush.msra.mxu0 %v246
    %705 = vmatpush.msra.mxu0 %v242
    %706 = vmatpush.msra.mxu0 %v238
    %707 = vmatpush.msra.mxu0 %v234
    %708 = vmatpush.msra.mxu0 %v230
    %709 = vmatmul.f32.gmra.mxu0 0.0
    %v710 = vpop.f32.mrf.mxu0
    %v711 = vadd.f32 0.0, %v710
    %712 = vdwg.mxu0
    %v717 = vrot.slane %v671, 4
    %v718 = vrot.slane %v711, 4
    %v719 = vsel %vm622, %v651, %v717
    %v720 = vsel %vm622, %v691, %v718
    %v721 = vrot.slane %v719, 1
    %v722 = vrot.slane %v720, 1
    %v727 = vadd.f32 %v623, %v719
    %v728 = vadd.f32 %v624, %v720
    %v729 = vadd.f32 %v626, %v721
    %v730 = vadd.f32 %v628, %v722
    %v731 = vxor.u32 %v727, 2147483648
    %v732 = vxor.u32 %v729, 2147483648
    %v733 = vmul.f32 %v731, 1.442695
    %v734 = vpow.pop %v733
    %v735 = vmul.f32 %v732, 1.442695
    %v736 = vpow.pop %v735
    %v737 = vadd.f32 %v734, 1.0
    %v738 = vadd.f32 %v736, 1.0
    %v739 = vrcp.pop %v737
    %v740 = vmul.f32 %v737, %v739
    %v741 = vsub.f32 1.0, %v740
    %v742 = vmul.f32 %v739, %v741
    %v743 = vadd.f32 %v739, %v742
    %vm744 = vweird.f32 %v737
    %vm745 = vweird.f32 %v739
    %vm746 = vmor %vm744, %vm745
    %v747 = vsel %vm746, %v739, %v743
    %v748 = vand.u32 2147483647, %v737
    %vm749 = vcmp.eq.f32.partialorder %v748, 8.507059e+37
    %v750 = vand.u32 %v737, 2147483648
    %v751 = vor.u32 1.1754944e-38, %v750
    %v752 = vsel %vm749, %v751, %v747
    %v753 = vmul.f32 1.0, %v752
    %v754 = vrcp.pop %v738
    %v755 = vmul.f32 %v738, %v754
    %v756 = vsub.f32 1.0, %v755
    %v757 = vmul.f32 %v754, %v756
    %v758 = vadd.f32 %v754, %v757
    %vm759 = vweird.f32 %v738
    %vm760 = vweird.f32 %v754
    %vm761 = vmor %vm759, %vm760
    %v762 = vsel %vm761, %v754, %v758
    %v763 = vand.u32 2147483647, %v738
    %vm764 = vcmp.eq.f32.partialorder %v763, 8.507059e+37
    %v765 = vand.u32 %v738, 2147483648
    %v766 = vor.u32 1.1754944e-38, %v765
    %v767 = vsel %vm764, %v766, %v762
    %v768 = vmul.f32 1.0, %v767
    %v771 = vrot.slane %v727, 4
    %v772 = vrot.slane %v729, 4
    %v775 = vxor.u32 %v771, 2147483648
    %v776 = vxor.u32 %v772, 2147483648
    %v777 = vmul.f32 %v775, 1.442695
    %v778 = vpow.pop %v777
    %v779 = vmul.f32 %v776, 1.442695
    %v780 = vpow.pop %v779
    %v781 = vadd.f32 %v778, 1.0
    %v782 = vadd.f32 %v780, 1.0
    %v783 = vrcp.pop %v781
    %v784 = vmul.f32 %v781, %v783
    %v785 = vsub.f32 1.0, %v784
    %v786 = vmul.f32 %v783, %v785
    %v787 = vadd.f32 %v783, %v786
    %vm788 = vweird.f32 %v781
    %vm789 = vweird.f32 %v783
    %vm790 = vmor %vm788, %vm789
    %v791 = vsel %vm790, %v783, %v787
    %v792 = vand.u32 2147483647, %v781
    %vm793 = vcmp.eq.f32.partialorder %v792, 8.507059e+37
    %v794 = vand.u32 %v781, 2147483648
    %v795 = vor.u32 1.1754944e-38, %v794
    %v796 = vsel %vm793, %v795, %v791
    %v797 = vmul.f32 1.0, %v796
    %v798 = vrcp.pop %v782
    %v799 = vmul.f32 %v782, %v798
    %v800 = vsub.f32 1.0, %v799
    %v801 = vmul.f32 %v798, %v800
    %v802 = vadd.f32 %v798, %v801
    %vm803 = vweird.f32 %v782
    %vm804 = vweird.f32 %v798
    %vm805 = vmor %vm803, %vm804
    %v806 = vsel %vm805, %v798, %v802
    %v807 = vand.u32 2147483647, %v782
    %vm808 = vcmp.eq.f32.partialorder %v807, 8.507059e+37
    %v809 = vand.u32 %v782, 2147483648
    %v810 = vor.u32 1.1754944e-38, %v809
    %v811 = vsel %vm808, %v810, %v806
    %v812 = vmul.f32 1.0, %v811
    %v813 = vtanh.pop %v728
    %v814 = vtanh.pop %v730
    %v817 = vrot.slane %v728, 4
    %v818 = vrot.slane %v730, 4
    %v821 = vxor.u32 %v817, 2147483648
    %v822 = vxor.u32 %v818, 2147483648
    %v823 = vmul.f32 %v821, 1.442695
    %v824 = vpow.pop %v823
    %v825 = vmul.f32 %v822, 1.442695
    %v826 = vpow.pop %v825
    %v827 = vadd.f32 %v824, 1.0
    %v828 = vadd.f32 %v826, 1.0
    %v829 = vrcp.pop %v827
    %v830 = vmul.f32 %v827, %v829
    %v831 = vsub.f32 1.0, %v830
    %v832 = vmul.f32 %v829, %v831
    %v833 = vadd.f32 %v829, %v832
    %vm834 = vweird.f32 %v827
    %vm835 = vweird.f32 %v829
    %vm836 = vmor %vm834, %vm835
    %v837 = vsel %vm836, %v829, %v833
    %v838 = vand.u32 2147483647, %v827
    %vm839 = vcmp.eq.f32.partialorder %v838, 8.507059e+37
    %v840 = vand.u32 %v827, 2147483648
    %v841 = vor.u32 1.1754944e-38, %v840
    %v842 = vsel %vm839, %v841, %v837
    %v843 = vmul.f32 1.0, %v842
    %v844 = vrcp.pop %v828
    %v845 = vmul.f32 %v828, %v844
    %v846 = vsub.f32 1.0, %v845
    %v847 = vmul.f32 %v844, %v846
    %v848 = vadd.f32 %v844, %v847
    %vm849 = vweird.f32 %v828
    %vm850 = vweird.f32 %v844
    %vm851 = vmor %vm849, %vm850
    %v852 = vsel %vm851, %v844, %v848
    %v853 = vand.u32 2147483647, %v828
    %vm854 = vcmp.eq.f32.partialorder %v853, 8.507059e+37
    %v855 = vand.u32 %v828, 2147483648
    %v856 = vor.u32 1.1754944e-38, %v855
    %v857 = vsel %vm854, %v856, %v852
    %v858 = vmul.f32 1.0, %v857
    %v859 = vmul.f32 %v797, 0.0
    %v860 = vmul.f32 %v812, 0.0
    %v861 = vmul.f32 %v753, %v813
    %v862 = vmul.f32 %v768, %v814
    %v863 = vadd.f32 %v859, %v861
    %v864 = vadd.f32 %v860, %v862
    %v865 = vtanh.pop %v863
    %v866 = vtanh.pop %v864
    %v867 = vmul.f32 %v843, %v865
    %v868 = vmul.f32 %v858, %v866
    %v871 = vperm.slane %v867, 0
    %v872 = vperm.slane %v868, 0
    %v873 = vsel %vm183, %v872, %v871
    %875 = vmatpush.msra.mxu0 %v287
    %876 = vmatpush.msra.mxu0 %v283
    %877 = vmatpush.msra.mxu0 %v279
    %878 = vmatpush.msra.mxu0 %v275
    %879 = vmatpush.msra.mxu0 %v271
    %880 = vmatpush.msra.mxu0 %v267
    %881 = vmatpush.msra.mxu0 %v263
    %882 = vmatpush.msra.mxu0 %v259
    %883 = vmatpush.msra.mxu0 %v255
    %884 = vmatpush.msra.mxu0 %v251
    %885 = vmatpush.msra.mxu0 %v247
    %886 = vmatpush.msra.mxu0 %v243
    %887 = vmatpush.msra.mxu0 %v239
    %888 = vmatpush.msra.mxu0 %v235
    %889 = vmatpush.msra.mxu0 %v231
    %890 = vmatpush.msra.mxu0 %v227
    %891 = vmatmul.f32.gmra.mxu0 %v873
    %v892 = vpop.f32.mrf.mxu0
    %v893 = vadd.f32 0.0, %v892
    %894 = vdwg.mxu0
    %895 = vmatpush.msra.mxu0 %v288
    %896 = vmatpush.msra.mxu0 %v284
    %897 = vmatpush.msra.mxu0 %v280
    %898 = vmatpush.msra.mxu0 %v276
    %899 = vmatpush.msra.mxu0 %v272
    %900 = vmatpush.msra.mxu0 %v268
    %901 = vmatpush.msra.mxu0 %v264
    %902 = vmatpush.msra.mxu0 %v260
    %903 = vmatpush.msra.mxu0 %v256
    %904 = vmatpush.msra.mxu0 %v252
    %905 = vmatpush.msra.mxu0 %v248
    %906 = vmatpush.msra.mxu0 %v244
    %907 = vmatpush.msra.mxu0 %v240
    %908 = vmatpush.msra.mxu0 %v236
    %909 = vmatpush.msra.mxu0 %v232
    %910 = vmatpush.msra.mxu0 %v228
    %911 = vmatmul.f32.gmra.mxu0 %v873
    %v912 = vpop.f32.mrf.mxu0
    %v913 = vadd.f32 0.0, %v912
    %914 = vdwg.mxu0
    %915 = vmatpush.msra.mxu0 %v289
    %916 = vmatpush.msra.mxu0 %v285
    %917 = vmatpush.msra.mxu0 %v281
    %918 = vmatpush.msra.mxu0 %v277
    %919 = vmatpush.msra.mxu0 %v273
    %920 = vmatpush.msra.mxu0 %v269
    %921 = vmatpush.msra.mxu0 %v265
    %922 = vmatpush.msra.mxu0 %v261
    %923 = vmatpush.msra.mxu0 %v257
    %924 = vmatpush.msra.mxu0 %v253
    %925 = vmatpush.msra.mxu0 %v249
    %926 = vmatpush.msra.mxu0 %v245
    %927 = vmatpush.msra.mxu0 %v241
    %928 = vmatpush.msra.mxu0 %v237
    %929 = vmatpush.msra.mxu0 %v233
    %930 = vmatpush.msra.mxu0 %v229
    %931 = vmatmul.f32.gmra.mxu0 %v873
    %v932 = vpop.f32.mrf.mxu0
    %v933 = vadd.f32 0.0, %v932
    %934 = vdwg.mxu0
    %935 = vmatpush.msra.mxu0 %v290
    %936 = vmatpush.msra.mxu0 %v286
    %937 = vmatpush.msra.mxu0 %v282
    %938 = vmatpush.msra.mxu0 %v278
    %939 = vmatpush.msra.mxu0 %v274
    %940 = vmatpush.msra.mxu0 %v270
    %941 = vmatpush.msra.mxu0 %v266
    %942 = vmatpush.msra.mxu0 %v262
    %943 = vmatpush.msra.mxu0 %v258
    %944 = vmatpush.msra.mxu0 %v254
    %945 = vmatpush.msra.mxu0 %v250
    %946 = vmatpush.msra.mxu0 %v246
    %947 = vmatpush.msra.mxu0 %v242
    %948 = vmatpush.msra.mxu0 %v238
    %949 = vmatpush.msra.mxu0 %v234
    %950 = vmatpush.msra.mxu0 %v230
    %951 = vmatmul.f32.gmra.mxu0 %v873
    %v952 = vpop.f32.mrf.mxu0
    %v953 = vadd.f32 0.0, %v952
    %954 = vdwg.mxu0
    %v959 = vrot.slane %v913, 4
    %v960 = vrot.slane %v953, 4
    %v961 = vsel %vm622, %v893, %v959
    %v962 = vsel %vm622, %v933, %v960
    %v963 = vrot.slane %v961, 7
    %v964 = vrot.slane %v962, 7
    %v969 = vadd.f32 %v623, %v963
    %v970 = vadd.f32 %v624, %v964
    %v971 = vadd.f32 %v626, %v961
    %v972 = vadd.f32 %v628, %v962
    %v973 = vxor.u32 %v969, 2147483648
    %v974 = vxor.u32 %v971, 2147483648
    %v975 = vmul.f32 %v973, 1.442695
    %v976 = vpow.pop %v975
    %v977 = vmul.f32 %v974, 1.442695
    %v978 = vpow.pop %v977
    %v979 = vadd.f32 %v976, 1.0
    %v980 = vadd.f32 %v978, 1.0
    %v981 = vrcp.pop %v979
    %v982 = vmul.f32 %v979, %v981
    %v983 = vsub.f32 1.0, %v982
    %v984 = vmul.f32 %v981, %v983
    %v985 = vadd.f32 %v981, %v984
    %vm986 = vweird.f32 %v979
    %vm987 = vweird.f32 %v981
    %vm988 = vmor %vm986, %vm987
    %v989 = vsel %vm988, %v981, %v985
    %v990 = vand.u32 2147483647, %v979
    %vm991 = vcmp.eq.f32.partialorder %v990, 8.507059e+37
    %v992 = vand.u32 %v979, 2147483648
    %v993 = vor.u32 1.1754944e-38, %v992
    %v994 = vsel %vm991, %v993, %v989
    %v995 = vmul.f32 1.0, %v994
    %v996 = vrcp.pop %v980
    %v997 = vmul.f32 %v980, %v996
    %v998 = vsub.f32 1.0, %v997
    %v999 = vmul.f32 %v996, %v998
    %v1000 = vadd.f32 %v996, %v999
    %vm1001 = vweird.f32 %v980
    %vm1002 = vweird.f32 %v996
    %vm1003 = vmor %vm1001, %vm1002
    %v1004 = vsel %vm1003, %v996, %v1000
    %v1005 = vand.u32 2147483647, %v980
    %vm1006 = vcmp.eq.f32.partialorder %v1005, 8.507059e+37
    %v1007 = vand.u32 %v980, 2147483648
    %v1008 = vor.u32 1.1754944e-38, %v1007
    %v1009 = vsel %vm1006, %v1008, %v1004
    %v1010 = vmul.f32 1.0, %v1009
    %v1013 = vrot.slane %v969, 4
    %v1014 = vrot.slane %v971, 4
    %v1017 = vxor.u32 %v1013, 2147483648
    %v1018 = vxor.u32 %v1014, 2147483648
    %v1019 = vmul.f32 %v1017, 1.442695
    %v1020 = vpow.pop %v1019
    %v1021 = vmul.f32 %v1018, 1.442695
    %v1022 = vpow.pop %v1021
    %v1023 = vadd.f32 %v1020, 1.0
    %v1024 = vadd.f32 %v1022, 1.0
    %v1025 = vrcp.pop %v1023
    %v1026 = vmul.f32 %v1023, %v1025
    %v1027 = vsub.f32 1.0, %v1026
    %v1028 = vmul.f32 %v1025, %v1027
    %v1029 = vadd.f32 %v1025, %v1028
    %vm1030 = vweird.f32 %v1023
    %vm1031 = vweird.f32 %v1025
    %vm1032 = vmor %vm1030, %vm1031
    %v1033 = vsel %vm1032, %v1025, %v1029
    %v1034 = vand.u32 2147483647, %v1023
    %vm1035 = vcmp.eq.f32.partialorder %v1034, 8.507059e+37
    %v1036 = vand.u32 %v1023, 2147483648
    %v1037 = vor.u32 1.1754944e-38, %v1036
    %v1038 = vsel %vm1035, %v1037, %v1033
    %v1039 = vmul.f32 1.0, %v1038
    %v1040 = vrcp.pop %v1024
    %v1041 = vmul.f32 %v1024, %v1040
    %v1042 = vsub.f32 1.0, %v1041
    %v1043 = vmul.f32 %v1040, %v1042
    %v1044 = vadd.f32 %v1040, %v1043
    %vm1045 = vweird.f32 %v1024
    %vm1046 = vweird.f32 %v1040
    %vm1047 = vmor %vm1045, %vm1046
    %v1048 = vsel %vm1047, %v1040, %v1044
    %v1049 = vand.u32 2147483647, %v1024
    %vm1050 = vcmp.eq.f32.partialorder %v1049, 8.507059e+37
    %v1051 = vand.u32 %v1024, 2147483648
    %v1052 = vor.u32 1.1754944e-38, %v1051
    %v1053 = vsel %vm1050, %v1052, %v1048
    %v1054 = vmul.f32 1.0, %v1053
    %v1055 = vtanh.pop %v970
    %v1056 = vtanh.pop %v972
    %v1059 = vrot.slane %v970, 4
    %v1060 = vrot.slane %v972, 4
    %v1063 = vxor.u32 %v1059, 2147483648
    %v1064 = vxor.u32 %v1060, 2147483648
    %v1065 = vmul.f32 %v1063, 1.442695
    %v1066 = vpow.pop %v1065
    %v1067 = vmul.f32 %v1064, 1.442695
    %v1068 = vpow.pop %v1067
    %v1069 = vadd.f32 %v1066, 1.0
    %v1070 = vadd.f32 %v1068, 1.0
    %v1071 = vrcp.pop %v1069
    %v1072 = vmul.f32 %v1069, %v1071
    %v1073 = vsub.f32 1.0, %v1072
    %v1074 = vmul.f32 %v1071, %v1073
    %v1075 = vadd.f32 %v1071, %v1074
    %vm1076 = vweird.f32 %v1069
    %vm1077 = vweird.f32 %v1071
    %vm1078 = vmor %vm1076, %vm1077
    %v1079 = vsel %vm1078, %v1071, %v1075
    %v1080 = vand.u32 2147483647, %v1069
    %vm1081 = vcmp.eq.f32.partialorder %v1080, 8.507059e+37
    %v1082 = vand.u32 %v1069, 2147483648
    %v1083 = vor.u32 1.1754944e-38, %v1082
    %v1084 = vsel %vm1081, %v1083, %v1079
    %v1085 = vmul.f32 1.0, %v1084
    %v1086 = vrcp.pop %v1070
    %v1087 = vmul.f32 %v1070, %v1086
    %v1088 = vsub.f32 1.0, %v1087
    %v1089 = vmul.f32 %v1086, %v1088
    %v1090 = vadd.f32 %v1086, %v1089
    %vm1091 = vweird.f32 %v1070
    %vm1092 = vweird.f32 %v1086
    %vm1093 = vmor %vm1091, %vm1092
    %v1094 = vsel %vm1093, %v1086, %v1090
    %v1095 = vand.u32 2147483647, %v1070
    %vm1096 = vcmp.eq.f32.partialorder %v1095, 8.507059e+37
    %v1097 = vand.u32 %v1070, 2147483648
    %v1098 = vor.u32 1.1754944e-38, %v1097
    %v1099 = vsel %vm1096, %v1098, %v1094
    %v1100 = vmul.f32 1.0, %v1099
    %v1103 = vrot.slane %v863, 7
    %v1104 = vrot.slane %v864, 7
    %v1107 = vmul.f32 %v1039, %v1103
    %v1108 = vmul.f32 %v1054, %v1104
    %v1109 = vmul.f32 %v995, %v1055
    %v1110 = vmul.f32 %v1010, %v1056
    %v1111 = vadd.f32 %v1107, %v1109
    %v1112 = vadd.f32 %v1108, %v1110
    %v1113 = vtanh.pop %v1111
    %v1114 = vtanh.pop %v1112
    %v1115 = vmul.f32 %v1085, %v1113
    %v1116 = vmul.f32 %v1100, %v1114
    %v1119 = vperm.slane %v1115, 1
    %v1120 = vperm.slane %v1116, 1
    %v1121 = vsel %vm183, %v1120, %v1119
    %1123 = vmatpush.msra.mxu0 %v287
    %1124 = vmatpush.msra.mxu0 %v283
    %1125 = vmatpush.msra.mxu0 %v279
    %1126 = vmatpush.msra.mxu0 %v275
    %1127 = vmatpush.msra.mxu0 %v271
    %1128 = vmatpush.msra.mxu0 %v267
    %1129 = vmatpush.msra.mxu0 %v263
    %1130 = vmatpush.msra.mxu0 %v259
    %1131 = vmatpush.msra.mxu0 %v255
    %1132 = vmatpush.msra.mxu0 %v251
    %1133 = vmatpush.msra.mxu0 %v247
    %1134 = vmatpush.msra.mxu0 %v243
    %1135 = vmatpush.msra.mxu0 %v239
    %1136 = vmatpush.msra.mxu0 %v235
    %1137 = vmatpush.msra.mxu0 %v231
    %1138 = vmatpush.msra.mxu0 %v227
    %1139 = vmatmul.f32.gmra.mxu0 %v1121
    %v1140 = vpop.f32.mrf.mxu0
    %v1141 = vadd.f32 0.0, %v1140
    %1142 = vdwg.mxu0
    %1143 = vmatpush.msra.mxu0 %v288
    %1144 = vmatpush.msra.mxu0 %v284
    %1145 = vmatpush.msra.mxu0 %v280
    %1146 = vmatpush.msra.mxu0 %v276
    %1147 = vmatpush.msra.mxu0 %v272
    %1148 = vmatpush.msra.mxu0 %v268
    %1149 = vmatpush.msra.mxu0 %v264
    %1150 = vmatpush.msra.mxu0 %v260
    %1151 = vmatpush.msra.mxu0 %v256
    %1152 = vmatpush.msra.mxu0 %v252
    %1153 = vmatpush.msra.mxu0 %v248
    %1154 = vmatpush.msra.mxu0 %v244
    %1155 = vmatpush.msra.mxu0 %v240
    %1156 = vmatpush.msra.mxu0 %v236
    %1157 = vmatpush.msra.mxu0 %v232
    %1158 = vmatpush.msra.mxu0 %v228
    %1159 = vmatmul.f32.gmra.mxu0 %v1121
    %v1160 = vpop.f32.mrf.mxu0
    %v1161 = vadd.f32 0.0, %v1160
    %1162 = vdwg.mxu0
    %1163 = vmatpush.msra.mxu0 %v289
    %1164 = vmatpush.msra.mxu0 %v285
    %1165 = vmatpush.msra.mxu0 %v281
    %1166 = vmatpush.msra.mxu0 %v277
    %1167 = vmatpush.msra.mxu0 %v273
    %1168 = vmatpush.msra.mxu0 %v269
    %1169 = vmatpush.msra.mxu0 %v265
    %1170 = vmatpush.msra.mxu0 %v261
    %1171 = vmatpush.msra.mxu0 %v257
    %1172 = vmatpush.msra.mxu0 %v253
    %1173 = vmatpush.msra.mxu0 %v249
    %1174 = vmatpush.msra.mxu0 %v245
    %1175 = vmatpush.msra.mxu0 %v241
    %1176 = vmatpush.msra.mxu0 %v237
    %1177 = vmatpush.msra.mxu0 %v233
    %1178 = vmatpush.msra.mxu0 %v229
    %1179 = vmatmul.f32.gmra.mxu0 %v1121
    %v1180 = vpop.f32.mrf.mxu0
    %v1181 = vadd.f32 0.0, %v1180
    %1182 = vdwg.mxu0
    %1183 = vmatpush.msra.mxu0 %v290
    %1184 = vmatpush.msra.mxu0 %v286
    %1185 = vmatpush.msra.mxu0 %v282
    %1186 = vmatpush.msra.mxu0 %v278
    %1187 = vmatpush.msra.mxu0 %v274
    %1188 = vmatpush.msra.mxu0 %v270
    %1189 = vmatpush.msra.mxu0 %v266
    %1190 = vmatpush.msra.mxu0 %v262
    %1191 = vmatpush.msra.mxu0 %v258
    %1192 = vmatpush.msra.mxu0 %v254
    %1193 = vmatpush.msra.mxu0 %v250
    %1194 = vmatpush.msra.mxu0 %v246
    %1195 = vmatpush.msra.mxu0 %v242
    %1196 = vmatpush.msra.mxu0 %v238
    %1197 = vmatpush.msra.mxu0 %v234
    %1198 = vmatpush.msra.mxu0 %v230
    %1199 = vmatmul.f32.gmra.mxu0 %v1121
    %v1200 = vpop.f32.mrf.mxu0
    %v1201 = vadd.f32 0.0, %v1200
    %1202 = vdwg.mxu0
    %v1207 = vrot.slane %v1161, 4
    %v1208 = vrot.slane %v1201, 4
    %v1209 = vsel %vm622, %v1141, %v1207
    %v1210 = vsel %vm622, %v1181, %v1208
    %v1211 = vrot.slane %v1209, 6
    %v1212 = vrot.slane %v1210, 6
    %v1213 = vrot.slane %v1209, 7
    %v1214 = vrot.slane %v1210, 7
    %v1219 = vadd.f32 %v623, %v1211
    %v1220 = vadd.f32 %v624, %v1212
    %v1221 = vadd.f32 %v626, %v1213
    %v1222 = vadd.f32 %v628, %v1214
    %v1223 = vxor.u32 %v1219, 2147483648
    %v1224 = vxor.u32 %v1221, 2147483648
    %v1225 = vmul.f32 %v1223, 1.442695
    %v1226 = vpow.pop %v1225
    %v1227 = vmul.f32 %v1224, 1.442695
    %v1228 = vpow.pop %v1227
    %v1229 = vadd.f32 %v1226, 1.0
    %v1230 = vadd.f32 %v1228, 1.0
    %v1231 = vrcp.pop %v1229
    %v1232 = vmul.f32 %v1229, %v1231
    %v1233 = vsub.f32 1.0, %v1232
    %v1234 = vmul.f32 %v1231, %v1233
    %v1235 = vadd.f32 %v1231, %v1234
    %vm1236 = vweird.f32 %v1229
    %vm1237 = vweird.f32 %v1231
    %vm1238 = vmor %vm1236, %vm1237
    %v1239 = vsel %vm1238, %v1231, %v1235
    %v1240 = vand.u32 2147483647, %v1229
    %vm1241 = vcmp.eq.f32.partialorder %v1240, 8.507059e+37
    %v1242 = vand.u32 %v1229, 2147483648
    %v1243 = vor.u32 1.1754944e-38, %v1242
    %v1244 = vsel %vm1241, %v1243, %v1239
    %v1245 = vmul.f32 1.0, %v1244
    %v1246 = vrcp.pop %v1230
    %v1247 = vmul.f32 %v1230, %v1246
    %v1248 = vsub.f32 1.0, %v1247
    %v1249 = vmul.f32 %v1246, %v1248
    %v1250 = vadd.f32 %v1246, %v1249
    %vm1251 = vweird.f32 %v1230
    %vm1252 = vweird.f32 %v1246
    %vm1253 = vmor %vm1251, %vm1252
    %v1254 = vsel %vm1253, %v1246, %v1250
    %v1255 = vand.u32 2147483647, %v1230
    %vm1256 = vcmp.eq.f32.partialorder %v1255, 8.507059e+37
    %v1257 = vand.u32 %v1230, 2147483648
    %v1258 = vor.u32 1.1754944e-38, %v1257
    %v1259 = vsel %vm1256, %v1258, %v1254
    %v1260 = vmul.f32 1.0, %v1259
    %v1263 = vrot.slane %v1219, 4
    %v1264 = vrot.slane %v1221, 4
    %v1267 = vxor.u32 %v1263, 2147483648
    %v1268 = vxor.u32 %v1264, 2147483648
    %v1269 = vmul.f32 %v1267, 1.442695
    %v1270 = vpow.pop %v1269
    %v1271 = vmul.f32 %v1268, 1.442695
    %v1272 = vpow.pop %v1271
    %v1273 = vadd.f32 %v1270, 1.0
    %v1274 = vadd.f32 %v1272, 1.0
    %v1275 = vrcp.pop %v1273
    %v1276 = vmul.f32 %v1273, %v1275
    %v1277 = vsub.f32 1.0, %v1276
    %v1278 = vmul.f32 %v1275, %v1277
    %v1279 = vadd.f32 %v1275, %v1278
    %vm1280 = vweird.f32 %v1273
    %vm1281 = vweird.f32 %v1275
    %vm1282 = vmor %vm1280, %vm1281
    %v1283 = vsel %vm1282, %v1275, %v1279
    %v1284 = vand.u32 2147483647, %v1273
    %vm1285 = vcmp.eq.f32.partialorder %v1284, 8.507059e+37
    %v1286 = vand.u32 %v1273, 2147483648
    %v1287 = vor.u32 1.1754944e-38, %v1286
    %v1288 = vsel %vm1285, %v1287, %v1283
    %v1289 = vmul.f32 1.0, %v1288
    %v1290 = vrcp.pop %v1274
    %v1291 = vmul.f32 %v1274, %v1290
    %v1292 = vsub.f32 1.0, %v1291
    %v1293 = vmul.f32 %v1290, %v1292
    %v1294 = vadd.f32 %v1290, %v1293
    %vm1295 = vweird.f32 %v1274
    %vm1296 = vweird.f32 %v1290
    %vm1297 = vmor %vm1295, %vm1296
    %v1298 = vsel %vm1297, %v1290, %v1294
    %v1299 = vand.u32 2147483647, %v1274
    %vm1300 = vcmp.eq.f32.partialorder %v1299, 8.507059e+37
    %v1301 = vand.u32 %v1274, 2147483648
    %v1302 = vor.u32 1.1754944e-38, %v1301
    %v1303 = vsel %vm1300, %v1302, %v1298
    %v1304 = vmul.f32 1.0, %v1303
    %v1305 = vtanh.pop %v1220
    %v1306 = vtanh.pop %v1222
    %v1309 = vrot.slane %v1220, 4
    %v1310 = vrot.slane %v1222, 4
    %v1313 = vxor.u32 %v1309, 2147483648
    %v1314 = vxor.u32 %v1310, 2147483648
    %v1315 = vmul.f32 %v1313, 1.442695
    %v1316 = vpow.pop %v1315
    %v1317 = vmul.f32 %v1314, 1.442695
    %v1318 = vpow.pop %v1317
    %v1319 = vadd.f32 %v1316, 1.0
    %v1320 = vadd.f32 %v1318, 1.0
    %v1321 = vrcp.pop %v1319
    %v1322 = vmul.f32 %v1319, %v1321
    %v1323 = vsub.f32 1.0, %v1322
    %v1324 = vmul.f32 %v1321, %v1323
    %v1325 = vadd.f32 %v1321, %v1324
    %vm1326 = vweird.f32 %v1319
    %vm1327 = vweird.f32 %v1321
    %vm1328 = vmor %vm1326, %vm1327
    %v1329 = vsel %vm1328, %v1321, %v1325
    %v1330 = vand.u32 2147483647, %v1319
    %vm1331 = vcmp.eq.f32.partialorder %v1330, 8.507059e+37
    %v1332 = vand.u32 %v1319, 2147483648
    %v1333 = vor.u32 1.1754944e-38, %v1332
    %v1334 = vsel %vm1331, %v1333, %v1329
    %v1335 = vmul.f32 1.0, %v1334
    %v1336 = vrcp.pop %v1320
    %v1337 = vmul.f32 %v1320, %v1336
    %v1338 = vsub.f32 1.0, %v1337
    %v1339 = vmul.f32 %v1336, %v1338
    %v1340 = vadd.f32 %v1336, %v1339
    %vm1341 = vweird.f32 %v1320
    %vm1342 = vweird.f32 %v1336
    %vm1343 = vmor %vm1341, %vm1342
    %v1344 = vsel %vm1343, %v1336, %v1340
    %v1345 = vand.u32 2147483647, %v1320
    %vm1346 = vcmp.eq.f32.partialorder %v1345, 8.507059e+37
    %v1347 = vand.u32 %v1320, 2147483648
    %v1348 = vor.u32 1.1754944e-38, %v1347
    %v1349 = vsel %vm1346, %v1348, %v1344
    %v1350 = vmul.f32 1.0, %v1349
    %v1353 = vrot.slane %v1111, 7
    %v1354 = vrot.slane %v1112, 7
    %v1357 = vmul.f32 %v1289, %v1353
    %v1358 = vmul.f32 %v1304, %v1354
    %v1359 = vmul.f32 %v1245, %v1305
    %v1360 = vmul.f32 %v1260, %v1306
    %v1361 = vadd.f32 %v1357, %v1359
    %v1362 = vadd.f32 %v1358, %v1360
    %v1363 = vtanh.pop %v1361
    %v1364 = vtanh.pop %v1362
    %v1365 = vmul.f32 %v1335, %v1363
    %v1366 = vmul.f32 %v1350, %v1364
    %v1369 = vperm.slane %v1365, 2
    %v1370 = vperm.slane %v1366, 2
    %v1371 = vsel %vm183, %v1370, %v1369
    %1373 = vmatpush.msra.mxu0 %v287
    %1374 = vmatpush.msra.mxu0 %v283
    %1375 = vmatpush.msra.mxu0 %v279
    %1376 = vmatpush.msra.mxu0 %v275
    %1377 = vmatpush.msra.mxu0 %v271
    %1378 = vmatpush.msra.mxu0 %v267
    %1379 = vmatpush.msra.mxu0 %v263
    %1380 = vmatpush.msra.mxu0 %v259
    %1381 = vmatpush.msra.mxu0 %v255
    %1382 = vmatpush.msra.mxu0 %v251
    %1383 = vmatpush.msra.mxu0 %v247
    %1384 = vmatpush.msra.mxu0 %v243
    %1385 = vmatpush.msra.mxu0 %v239
    %1386 = vmatpush.msra.mxu0 %v235
    %1387 = vmatpush.msra.mxu0 %v231
    %1388 = vmatpush.msra.mxu0 %v227
    %1389 = vmatmul.f32.gmra.mxu0 %v1371
    %v1390 = vpop.f32.mrf.mxu0
    %v1391 = vadd.f32 0.0, %v1390
    %1392 = vdwg.mxu0
    %1393 = vmatpush.msra.mxu0 %v288
    %1394 = vmatpush.msra.mxu0 %v284
    %1395 = vmatpush.msra.mxu0 %v280
    %1396 = vmatpush.msra.mxu0 %v276
    %1397 = vmatpush.msra.mxu0 %v272
    %1398 = vmatpush.msra.mxu0 %v268
    %1399 = vmatpush.msra.mxu0 %v264
    %1400 = vmatpush.msra.mxu0 %v260
    %1401 = vmatpush.msra.mxu0 %v256
    %1402 = vmatpush.msra.mxu0 %v252
    %1403 = vmatpush.msra.mxu0 %v248
    %1404 = vmatpush.msra.mxu0 %v244
    %1405 = vmatpush.msra.mxu0 %v240
    %1406 = vmatpush.msra.mxu0 %v236
    %1407 = vmatpush.msra.mxu0 %v232
    %1408 = vmatpush.msra.mxu0 %v228
    %1409 = vmatmul.f32.gmra.mxu0 %v1371
    %v1410 = vpop.f32.mrf.mxu0
    %v1411 = vadd.f32 0.0, %v1410
    %1412 = vdwg.mxu0
    %1413 = vmatpush.msra.mxu0 %v289
    %1414 = vmatpush.msra.mxu0 %v285
    %1415 = vmatpush.msra.mxu0 %v281
    %1416 = vmatpush.msra.mxu0 %v277
    %1417 = vmatpush.msra.mxu0 %v273
    %1418 = vmatpush.msra.mxu0 %v269
    %1419 = vmatpush.msra.mxu0 %v265
    %1420 = vmatpush.msra.mxu0 %v261
    %1421 = vmatpush.msra.mxu0 %v257
    %1422 = vmatpush.msra.mxu0 %v253
    %1423 = vmatpush.msra.mxu0 %v249
    %1424 = vmatpush.msra.mxu0 %v245
    %1425 = vmatpush.msra.mxu0 %v241
    %1426 = vmatpush.msra.mxu0 %v237
    %1427 = vmatpush.msra.mxu0 %v233
    %1428 = vmatpush.msra.mxu0 %v229
    %1429 = vmatmul.f32.gmra.mxu0 %v1371
    %v1430 = vpop.f32.mrf.mxu0
    %v1431 = vadd.f32 0.0, %v1430
    %1432 = vdwg.mxu0
    %1433 = vmatpush.msra.mxu0 %v290
    %1434 = vmatpush.msra.mxu0 %v286
    %1435 = vmatpush.msra.mxu0 %v282
    %1436 = vmatpush.msra.mxu0 %v278
    %1437 = vmatpush.msra.mxu0 %v274
    %1438 = vmatpush.msra.mxu0 %v270
    %1439 = vmatpush.msra.mxu0 %v266
    %1440 = vmatpush.msra.mxu0 %v262
    %1441 = vmatpush.msra.mxu0 %v258
    %1442 = vmatpush.msra.mxu0 %v254
    %1443 = vmatpush.msra.mxu0 %v250
    %1444 = vmatpush.msra.mxu0 %v246
    %1445 = vmatpush.msra.mxu0 %v242
    %1446 = vmatpush.msra.mxu0 %v238
    %1447 = vmatpush.msra.mxu0 %v234
    %1448 = vmatpush.msra.mxu0 %v230
    %1449 = vmatmul.f32.gmra.mxu0 %v1371
    %v1450 = vpop.f32.mrf.mxu0
    %v1451 = vadd.f32 0.0, %v1450
    %1452 = vdwg.mxu0
    %v1457 = vrot.slane %v1411, 4
    %v1458 = vrot.slane %v1451, 4
    %v1459 = vsel %vm622, %v1391, %v1457
    %v1460 = vsel %vm622, %v1431, %v1458
    %v1461 = vrot.slane %v1459, 5
    %v1462 = vrot.slane %v1460, 5
    %v1463 = vrot.slane %v1459, 6
    %v1464 = vrot.slane %v1460, 6
    %v1469 = vadd.f32 %v623, %v1461
    %v1470 = vadd.f32 %v624, %v1462
    %v1471 = vadd.f32 %v626, %v1463
    %v1472 = vadd.f32 %v628, %v1464
    %v1473 = vxor.u32 %v1469, 2147483648
    %v1474 = vxor.u32 %v1471, 2147483648
    %v1475 = vmul.f32 %v1473, 1.442695
    %v1476 = vpow.pop %v1475
    %v1477 = vmul.f32 %v1474, 1.442695
    %v1478 = vpow.pop %v1477
    %v1479 = vadd.f32 %v1476, 1.0
    %v1480 = vadd.f32 %v1478, 1.0
    %v1481 = vrcp.pop %v1479
    %v1482 = vmul.f32 %v1479, %v1481
    %v1483 = vsub.f32 1.0, %v1482
    %v1484 = vmul.f32 %v1481, %v1483
    %v1485 = vadd.f32 %v1481, %v1484
    %vm1486 = vweird.f32 %v1479
    %vm1487 = vweird.f32 %v1481
    %vm1488 = vmor %vm1486, %vm1487
    %v1489 = vsel %vm1488, %v1481, %v1485
    %v1490 = vand.u32 2147483647, %v1479
    %vm1491 = vcmp.eq.f32.partialorder %v1490, 8.507059e+37
    %v1492 = vand.u32 %v1479, 2147483648
    %v1493 = vor.u32 1.1754944e-38, %v1492
    %v1494 = vsel %vm1491, %v1493, %v1489
    %v1495 = vmul.f32 1.0, %v1494
    %v1496 = vrcp.pop %v1480
    %v1497 = vmul.f32 %v1480, %v1496
    %v1498 = vsub.f32 1.0, %v1497
    %v1499 = vmul.f32 %v1496, %v1498
    %v1500 = vadd.f32 %v1496, %v1499
    %vm1501 = vweird.f32 %v1480
    %vm1502 = vweird.f32 %v1496
    %vm1503 = vmor %vm1501, %vm1502
    %v1504 = vsel %vm1503, %v1496, %v1500
    %v1505 = vand.u32 2147483647, %v1480
    %vm1506 = vcmp.eq.f32.partialorder %v1505, 8.507059e+37
    %v1507 = vand.u32 %v1480, 2147483648
    %v1508 = vor.u32 1.1754944e-38, %v1507
    %v1509 = vsel %vm1506, %v1508, %v1504
    %v1510 = vmul.f32 1.0, %v1509
    %v1513 = vrot.slane %v1469, 4
    %v1514 = vrot.slane %v1471, 4
    %v1517 = vxor.u32 %v1513, 2147483648
    %v1518 = vxor.u32 %v1514, 2147483648
    %v1519 = vmul.f32 %v1517, 1.442695
    %v1520 = vpow.pop %v1519
    %v1521 = vmul.f32 %v1518, 1.442695
    %v1522 = vpow.pop %v1521
    %v1523 = vadd.f32 %v1520, 1.0
    %v1524 = vadd.f32 %v1522, 1.0
    %v1525 = vrcp.pop %v1523
    %v1526 = vmul.f32 %v1523, %v1525
    %v1527 = vsub.f32 1.0, %v1526
    %v1528 = vmul.f32 %v1525, %v1527
    %v1529 = vadd.f32 %v1525, %v1528
    %vm1530 = vweird.f32 %v1523
    %vm1531 = vweird.f32 %v1525
    %vm1532 = vmor %vm1530, %vm1531
    %v1533 = vsel %vm1532, %v1525, %v1529
    %v1534 = vand.u32 2147483647, %v1523
    %vm1535 = vcmp.eq.f32.partialorder %v1534, 8.507059e+37
    %v1536 = vand.u32 %v1523, 2147483648
    %v1537 = vor.u32 1.1754944e-38, %v1536
    %v1538 = vsel %vm1535, %v1537, %v1533
    %v1539 = vmul.f32 1.0, %v1538
    %v1540 = vrcp.pop %v1524
    %v1541 = vmul.f32 %v1524, %v1540
    %v1542 = vsub.f32 1.0, %v1541
    %v1543 = vmul.f32 %v1540, %v1542
    %v1544 = vadd.f32 %v1540, %v1543
    %vm1545 = vweird.f32 %v1524
    %vm1546 = vweird.f32 %v1540
    %vm1547 = vmor %vm1545, %vm1546
    %v1548 = vsel %vm1547, %v1540, %v1544
    %v1549 = vand.u32 2147483647, %v1524
    %vm1550 = vcmp.eq.f32.partialorder %v1549, 8.507059e+37
    %v1551 = vand.u32 %v1524, 2147483648
    %v1552 = vor.u32 1.1754944e-38, %v1551
    %v1553 = vsel %vm1550, %v1552, %v1548
    %v1554 = vmul.f32 1.0, %v1553
    %v1555 = vtanh.pop %v1470
    %v1556 = vtanh.pop %v1472
    %v1559 = vrot.slane %v1470, 4
    %v1560 = vrot.slane %v1472, 4
    %v1563 = vxor.u32 %v1559, 2147483648
    %v1564 = vxor.u32 %v1560, 2147483648
    %v1565 = vmul.f32 %v1563, 1.442695
    %v1566 = vpow.pop %v1565
    %v1567 = vmul.f32 %v1564, 1.442695
    %v1568 = vpow.pop %v1567
    %v1569 = vadd.f32 %v1566, 1.0
    %v1570 = vadd.f32 %v1568, 1.0
    %v1571 = vrcp.pop %v1569
    %v1572 = vmul.f32 %v1569, %v1571
    %v1573 = vsub.f32 1.0, %v1572
    %v1574 = vmul.f32 %v1571, %v1573
    %v1575 = vadd.f32 %v1571, %v1574
    %vm1576 = vweird.f32 %v1569
    %vm1577 = vweird.f32 %v1571
    %vm1578 = vmor %vm1576, %vm1577
    %v1579 = vsel %vm1578, %v1571, %v1575
    %v1580 = vand.u32 2147483647, %v1569
    %vm1581 = vcmp.eq.f32.partialorder %v1580, 8.507059e+37
    %v1582 = vand.u32 %v1569, 2147483648
    %v1583 = vor.u32 1.1754944e-38, %v1582
    %v1584 = vsel %vm1581, %v1583, %v1579
    %v1585 = vmul.f32 1.0, %v1584
    %v1586 = vrcp.pop %v1570
    %v1587 = vmul.f32 %v1570, %v1586
    %v1588 = vsub.f32 1.0, %v1587
    %v1589 = vmul.f32 %v1586, %v1588
    %v1590 = vadd.f32 %v1586, %v1589
    %vm1591 = vweird.f32 %v1570
    %vm1592 = vweird.f32 %v1586
    %vm1593 = vmor %vm1591, %vm1592
    %v1594 = vsel %vm1593, %v1586, %v1590
    %v1595 = vand.u32 2147483647, %v1570
    %vm1596 = vcmp.eq.f32.partialorder %v1595, 8.507059e+37
    %v1597 = vand.u32 %v1570, 2147483648
    %v1598 = vor.u32 1.1754944e-38, %v1597
    %v1599 = vsel %vm1596, %v1598, %v1594
    %v1600 = vmul.f32 1.0, %v1599
    %v1603 = vrot.slane %v1361, 7
    %v1604 = vrot.slane %v1362, 7
    %v1607 = vmul.f32 %v1539, %v1603
    %v1608 = vmul.f32 %v1554, %v1604
    %v1609 = vmul.f32 %v1495, %v1555
    %v1610 = vmul.f32 %v1510, %v1556
    %v1611 = vadd.f32 %v1607, %v1609
    %v1612 = vadd.f32 %v1608, %v1610
    %v1613 = vtanh.pop %v1611
    %v1614 = vtanh.pop %v1612
    %v1615 = vmul.f32 %v1585, %v1613
    %v1616 = vmul.f32 %v1600, %v1614
    %v1617 = vsel %vm187, %v1120, %v1119
    %v1619 = vsel %vm191, %v1370, %v1369
    %v1623 = vperm.slane %v1615, 3
    %v1624 = vperm.slane %v1616, 3
    %v1625 = vsel %vm195, %v1624, %v1623
    %vm1627 = vcmask 1041408
    %v1628 = vsel %vm1627, %v873, %v1617
    %v1629 = vsel %vm622, %v1628, %v1619
    %vm1630 = vcmask 1045504
    %v1631 = vsel %vm1630, %v1629, %v1625
    %1632 = vmatpush.msra.mxu0 %v444
    %1633 = vmatpush.msra.mxu0 %v443
    %1634 = vmatpush.msra.mxu0 %v442
    %1635 = vmatpush.msra.mxu0 %v441
    %1636 = vmatpush.msra.mxu0 %v440
    %1637 = vmatpush.msra.mxu0 %v439
    %1638 = vmatpush.msra.mxu0 %v438
    %1639 = vmatpush.msra.mxu0 %v437
    %1640 = vmatpush.msra.mxu0 %v436
    %1641 = vmatpush.msra.mxu0 %v435
    %1642 = vmatpush.msra.mxu0 %v434
    %1643 = vmatpush.msra.mxu0 %v433
    %1644 = vmatpush.msra.mxu0 %v432
    %1645 = vmatpush.msra.mxu0 %v431
    %1646 = vmatpush.msra.mxu0 %v430
    %1647 = vmatpush.msra.mxu0 %v429
    %1648 = vmatmul.f32.gmra.mxu0 %v1631
    %v1649 = vpop.f32.mrf.mxu0
    %v1650 = vadd.f32 0.0, %v1649
    %1651 = vdwg.mxu0
    %v1653 = vrot.slane %v1650, 1
    %1655 = vst [vmem:[#allocation1] sm:$0xff] %v1650
    %s1656 = scalar_lea.vmem [#allocation1], 2
    %v1657 = vld [vmem:[%s1656] ss:$9 sm:$0xff]
    %s1658 = scalar_lea.vmem [#allocation1], 3
    %v1659 = vld [vmem:[%s1658] ss:$9 sm:$0xff]
    %1660 = vst [vmem:[#allocation1] sm:$0xff] %v1650
    %s1661 = scalar_lea.vmem [#allocation1], 4
    %v1662 = vld [vmem:[%s1661] ss:$9 sm:$0xff]
    %s1663 = scalar_lea.vmem [#allocation1], 5
    %v1664 = vld [vmem:[%s1663] ss:$9 sm:$0xff]
    %1665 = vst [vmem:[#allocation1] sm:$0xff] %v1650
    %s1666 = scalar_lea.vmem [#allocation1], 6
    %v1667 = vld [vmem:[%s1666] ss:$9 sm:$0xff]
    %s1668 = scalar_lea.vmem [#allocation1], 7
    %v1669 = vld [vmem:[%s1668] ss:$9 sm:$0xff]
    %v1670 = vperm.slane %v1657, 0
    %v1671 = vperm.slane %v1659, 0
    %v1674 = vperm.slane %v1662, 0
    %v1675 = vperm.slane %v1664, 0
    %v1678 = vperm.slane %v1667, 0
    %v1679 = vperm.slane %v1669, 0
    %vm1682 = vcmask 1040384
    %v1683 = vsel %vm1682, %v1650, %v1670
    %v1684 = vsel %vm1682, %v1653, %v1671
    %v1685 = vsel %vm1627, %v1683, %v1674
    %v1686 = vsel %vm1627, %v1684, %v1675
    %v1687 = vsel %vm104, %v1685, %v1678
    %v1688 = vsel %vm104, %v1686, %v1679
    %v1689 = vld [vmem:[%s11] sm:$0x1]
    %v1691 = vperm.slane %v1689, 0
    %v1693 = vsel %vm183, %v1624, %v1623
    %1695 = vmatpush.msra.mxu0 %v351
    %1696 = vmatpush.msra.mxu0 %v347
    %1697 = vmatpush.msra.mxu0 %v343
    %1698 = vmatpush.msra.mxu0 %v339
    %1699 = vmatpush.msra.mxu0 %v335
    %1700 = vmatpush.msra.mxu0 %v331
    %1701 = vmatpush.msra.mxu0 %v327
    %1702 = vmatpush.msra.mxu0 %v323
    %1703 = vmatpush.msra.mxu0 %v319
    %1704 = vmatpush.msra.mxu0 %v315
    %1705 = vmatpush.msra.mxu0 %v311
    %1706 = vmatpush.msra.mxu0 %v307
    %1707 = vmatpush.msra.mxu0 %v303
    %1708 = vmatpush.msra.mxu0 %v299
    %1709 = vmatpush.msra.mxu0 %v295
    %1710 = vmatpush.msra.mxu0 %v291
    %1711 = vmatmul.f32.gmra.mxu0 %v1691
    %v1712 = vpop.f32.mrf.mxu0
    %v1713 = vadd.f32 %v421, %v1712
    %1714 = vdwg.mxu0
    %1715 = vmatpush.msra.mxu0 %v415
    %1716 = vmatpush.msra.mxu0 %v411
    %1717 = vmatpush.msra.mxu0 %v407
    %1718 = vmatpush.msra.mxu0 %v403
    %1719 = vmatpush.msra.mxu0 %v399
    %1720 = vmatpush.msra.mxu0 %v395
    %1721 = vmatpush.msra.mxu0 %v391
    %1722 = vmatpush.msra.mxu0 %v387
    %1723 = vmatpush.msra.mxu0 %v383
    %1724 = vmatpush.msra.mxu0 %v379
    %1725 = vmatpush.msra.mxu0 %v375
    %1726 = vmatpush.msra.mxu0 %v371
    %1727 = vmatpush.msra.mxu0 %v367
    %1728 = vmatpush.msra.mxu0 %v363
    %1729 = vmatpush.msra.mxu0 %v359
    %1730 = vmatpush.msra.mxu0 %v355
    %1731 = vmatmul.f32.gmra.mxu0 %v1693
    %v1732 = vpop.f32.mrf.mxu0
    %v1733 = vadd.f32 %v1713, %v1732
    %1734 = vdwg.mxu0
    %1735 = vmatpush.msra.mxu0 %v352
    %1736 = vmatpush.msra.mxu0 %v348
    %1737 = vmatpush.msra.mxu0 %v344
    %1738 = vmatpush.msra.mxu0 %v340
    %1739 = vmatpush.msra.mxu0 %v336
    %1740 = vmatpush.msra.mxu0 %v332
    %1741 = vmatpush.msra.mxu0 %v328
    %1742 = vmatpush.msra.mxu0 %v324
    %1743 = vmatpush.msra.mxu0 %v320
    %1744 = vmatpush.msra.mxu0 %v316
    %1745 = vmatpush.msra.mxu0 %v312
    %1746 = vmatpush.msra.mxu0 %v308
    %1747 = vmatpush.msra.mxu0 %v304
    %1748 = vmatpush.msra.mxu0 %v300
    %1749 = vmatpush.msra.mxu0 %v296
    %1750 = vmatpush.msra.mxu0 %v292
    %1751 = vmatmul.f32.gmra.mxu0 %v1691
    %v1752 = vpop.f32.mrf.mxu0
    %v1753 = vadd.f32 %v422, %v1752
    %1754 = vdwg.mxu0
    %1755 = vmatpush.msra.mxu0 %v416
    %1756 = vmatpush.msra.mxu0 %v412
    %1757 = vmatpush.msra.mxu0 %v408
    %1758 = vmatpush.msra.mxu0 %v404
    %1759 = vmatpush.msra.mxu0 %v400
    %1760 = vmatpush.msra.mxu0 %v396
    %1761 = vmatpush.msra.mxu0 %v392
    %1762 = vmatpush.msra.mxu0 %v388
    %1763 = vmatpush.msra.mxu0 %v384
    %1764 = vmatpush.msra.mxu0 %v380
    %1765 = vmatpush.msra.mxu0 %v376
    %1766 = vmatpush.msra.mxu0 %v372
    %1767 = vmatpush.msra.mxu0 %v368
    %1768 = vmatpush.msra.mxu0 %v364
    %1769 = vmatpush.msra.mxu0 %v360
    %1770 = vmatpush.msra.mxu0 %v356
    %1771 = vmatmul.f32.gmra.mxu0 %v1693
    %v1772 = vpop.f32.mrf.mxu0
    %v1773 = vadd.f32 %v1753, %v1772
    %1774 = vdwg.mxu0
    %1775 = vmatpush.msra.mxu0 %v353
    %1776 = vmatpush.msra.mxu0 %v349
    %1777 = vmatpush.msra.mxu0 %v345
    %1778 = vmatpush.msra.mxu0 %v341
    %1779 = vmatpush.msra.mxu0 %v337
    %1780 = vmatpush.msra.mxu0 %v333
    %1781 = vmatpush.msra.mxu0 %v329
    %1782 = vmatpush.msra.mxu0 %v325
    %1783 = vmatpush.msra.mxu0 %v321
    %1784 = vmatpush.msra.mxu0 %v317
    %1785 = vmatpush.msra.mxu0 %v313
    %1786 = vmatpush.msra.mxu0 %v309
    %1787 = vmatpush.msra.mxu0 %v305
    %1788 = vmatpush.msra.mxu0 %v301
    %1789 = vmatpush.msra.mxu0 %v297
    %1790 = vmatpush.msra.mxu0 %v293
    %1791 = vmatmul.f32.gmra.mxu0 %v1691
    %v1792 = vpop.f32.mrf.mxu0
    %v1793 = vadd.f32 %v423, %v1792
    %1794 = vdwg.mxu0
    %1795 = vmatpush.msra.mxu0 %v417
    %1796 = vmatpush.msra.mxu0 %v413
    %1797 = vmatpush.msra.mxu0 %v409
    %1798 = vmatpush.msra.mxu0 %v405
    %1799 = vmatpush.msra.mxu0 %v401
    %1800 = vmatpush.msra.mxu0 %v397
    %1801 = vmatpush.msra.mxu0 %v393
    %1802 = vmatpush.msra.mxu0 %v389
    %1803 = vmatpush.msra.mxu0 %v385
    %1804 = vmatpush.msra.mxu0 %v381
    %1805 = vmatpush.msra.mxu0 %v377
    %1806 = vmatpush.msra.mxu0 %v373
    %1807 = vmatpush.msra.mxu0 %v369
    %1808 = vmatpush.msra.mxu0 %v365
    %1809 = vmatpush.msra.mxu0 %v361
    %1810 = vmatpush.msra.mxu0 %v357
    %1811 = vmatmul.f32.gmra.mxu0 %v1693
    %v1812 = vpop.f32.mrf.mxu0
    %v1813 = vadd.f32 %v1793, %v1812
    %1814 = vdwg.mxu0
    %1815 = vmatpush.msra.mxu0 %v354
    %1816 = vmatpush.msra.mxu0 %v350
    %1817 = vmatpush.msra.mxu0 %v346
    %1818 = vmatpush.msra.mxu0 %v342
    %1819 = vmatpush.msra.mxu0 %v338
    %1820 = vmatpush.msra.mxu0 %v334
    %1821 = vmatpush.msra.mxu0 %v330
    %1822 = vmatpush.msra.mxu0 %v326
    %1823 = vmatpush.msra.mxu0 %v322
    %1824 = vmatpush.msra.mxu0 %v318
    %1825 = vmatpush.msra.mxu0 %v314
    %1826 = vmatpush.msra.mxu0 %v310
    %1827 = vmatpush.msra.mxu0 %v306
    %1828 = vmatpush.msra.mxu0 %v302
    %1829 = vmatpush.msra.mxu0 %v298
    %1830 = vmatpush.msra.mxu0 %v294
    %1831 = vmatmul.f32.gmra.mxu0 %v1691
    %v1832 = vpop.f32.mrf.mxu0
    %v1833 = vadd.f32 %v424, %v1832
    %1834 = vdwg.mxu0
    %1835 = vmatpush.msra.mxu0 %v418
    %1836 = vmatpush.msra.mxu0 %v414
    %1837 = vmatpush.msra.mxu0 %v410
    %1838 = vmatpush.msra.mxu0 %v406
    %1839 = vmatpush.msra.mxu0 %v402
    %1840 = vmatpush.msra.mxu0 %v398
    %1841 = vmatpush.msra.mxu0 %v394
    %1842 = vmatpush.msra.mxu0 %v390
    %1843 = vmatpush.msra.mxu0 %v386
    %1844 = vmatpush.msra.mxu0 %v382
    %1845 = vmatpush.msra.mxu0 %v378
    %1846 = vmatpush.msra.mxu0 %v374
    %1847 = vmatpush.msra.mxu0 %v370
    %1848 = vmatpush.msra.mxu0 %v366
    %1849 = vmatpush.msra.mxu0 %v362
    %1850 = vmatpush.msra.mxu0 %v358
    %1851 = vmatmul.f32.gmra.mxu0 %v1693
    %v1852 = vpop.f32.mrf.mxu0
    %v1853 = vadd.f32 %v1833, %v1852
    %1854 = vdwg.mxu0
    %v1855 = vxor.u32 %v1733, 2147483648
    %v1856 = vmul.f32 %v1855, 1.442695
    %v1857 = vpow.pop %v1856
    %v1858 = vadd.f32 %v1857, 1.0
    %v1859 = vrcp.pop %v1858
    %v1860 = vmul.f32 %v1858, %v1859
    %v1861 = vsub.f32 1.0, %v1860
    %v1862 = vmul.f32 %v1859, %v1861
    %v1863 = vadd.f32 %v1859, %v1862
    %vm1864 = vweird.f32 %v1858
    %vm1865 = vweird.f32 %v1859
    %vm1866 = vmor %vm1864, %vm1865
    %v1867 = vsel %vm1866, %v1859, %v1863
    %v1868 = vand.u32 2147483647, %v1858
    %vm1869 = vcmp.eq.f32.partialorder %v1868, 8.507059e+37
    %v1870 = vand.u32 %v1858, 2147483648
    %v1871 = vor.u32 1.1754944e-38, %v1870
    %v1872 = vsel %vm1869, %v1871, %v1867
    %v1873 = vmul.f32 1.0, %v1872
    %v1874 = vxor.u32 %v1773, 2147483648
    %v1875 = vmul.f32 %v1874, 1.442695
    %v1876 = vpow.pop %v1875
    %v1877 = vadd.f32 %v1876, 1.0
    %v1878 = vrcp.pop %v1877
    %v1879 = vmul.f32 %v1877, %v1878
    %v1880 = vsub.f32 1.0, %v1879
    %v1881 = vmul.f32 %v1878, %v1880
    %v1882 = vadd.f32 %v1878, %v1881
    %vm1883 = vweird.f32 %v1877
    %vm1884 = vweird.f32 %v1878
    %vm1885 = vmor %vm1883, %vm1884
    %v1886 = vsel %vm1885, %v1878, %v1882
    %v1887 = vand.u32 2147483647, %v1877
    %vm1888 = vcmp.eq.f32.partialorder %v1887, 8.507059e+37
    %v1889 = vand.u32 %v1877, 2147483648
    %v1890 = vor.u32 1.1754944e-38, %v1889
    %v1891 = vsel %vm1888, %v1890, %v1886
    %v1892 = vmul.f32 1.0, %v1891
    %v1893 = vtanh.pop %v1813
    %v1894 = vxor.u32 %v1853, 2147483648
    %v1895 = vmul.f32 %v1894, 1.442695
    %v1896 = vpow.pop %v1895
    %v1897 = vadd.f32 %v1896, 1.0
    %v1898 = vrcp.pop %v1897
    %v1899 = vmul.f32 %v1897, %v1898
    %v1900 = vsub.f32 1.0, %v1899
    %v1901 = vmul.f32 %v1898, %v1900
    %v1902 = vadd.f32 %v1898, %v1901
    %vm1903 = vweird.f32 %v1897
    %vm1904 = vweird.f32 %v1898
    %vm1905 = vmor %vm1903, %vm1904
    %v1906 = vsel %vm1905, %v1898, %v1902
    %v1907 = vand.u32 2147483647, %v1897
    %vm1908 = vcmp.eq.f32.partialorder %v1907, 8.507059e+37
    %v1909 = vand.u32 %v1897, 2147483648
    %v1910 = vor.u32 1.1754944e-38, %v1909
    %v1911 = vsel %vm1908, %v1910, %v1906
    %v1912 = vmul.f32 1.0, %v1911
    %v1915 = vperm.slane %v1611, 3
    %v1916 = vperm.slane %v1612, 3
    %v1917 = vsel %vm183, %v1916, %v1915
    %v1919 = vmul.f32 %v1892, %v1917
    %v1920 = vmul.f32 %v1873, %v1893
    %v1921 = vadd.f32 %v1919, %v1920
    %v1922 = vtanh.pop %v1921
    %v1923 = vmul.f32 %v1912, %v1922
    %1924 = vmatpush.msra.mxu0 %v460
    %1925 = vmatpush.msra.mxu0 %v459
    %1926 = vmatpush.msra.mxu0 %v458
    %1927 = vmatpush.msra.mxu0 %v457
    %1928 = vmatpush.msra.mxu0 %v456
    %1929 = vmatpush.msra.mxu0 %v455
    %1930 = vmatpush.msra.mxu0 %v454
    %1931 = vmatpush.msra.mxu0 %v453
    %1932 = vmatpush.msra.mxu0 %v452
    %1933 = vmatpush.msra.mxu0 %v451
    %1934 = vmatpush.msra.mxu0 %v450
    %1935 = vmatpush.msra.mxu0 %v449
    %1936 = vmatpush.msra.mxu0 %v448
    %1937 = vmatpush.msra.mxu0 %v447
    %1938 = vmatpush.msra.mxu0 %v446
    %1939 = vmatpush.msra.mxu0 %v445
    %1940 = vmatmul.f32.gmra.mxu0 %v1923
    %v1941 = vpop.f32.mrf.mxu0
    %v1942 = vadd.f32 0.0, %v1941
    %1943 = vdwg.mxu0
    %v1945 = vrot.slane %v1942, 1
    %v1946 = vperm.slane %v1942, 0
    %v1947 = vperm.slane %v1945, 0
    %v1950 = vadd.f32 %v1687, %v1946
    %v1951 = vadd.f32 %v1688, %v1947
    %v1952 = vtanh.pop %v1950
    %v1953 = vtanh.pop %v1951
    %v1955 = vperm.slane %v461, 0
    %v1957 = vmul.f32 %v1952, %v1955
    %v1958 = vmul.f32 %v1953, %v1955
    %v1959 = vsel %vm622, %v1957, 0.0
    %1960 = vadd.xlane.f32.xlu0 %v1959
    %v1961 = vpop.xlane.xlu0 %1960
    %v1962 = vsel %vm622, %v1958, 0.0
    %1963 = vadd.xlane.f32.xlu0 %v1962
    %v1964 = vpop.xlane.xlu0 %1963
    %v1965 = vadd.f32 %v1961, 0.0
    %v1966 = vadd.f32 %v1964, 0.0
    %v1969 = vperm.slane %v1965, %v174
    %v1970 = vperm.slane %v1966, %v174
    %v1971 = vsel %vm183, %v1970, %v1969
    %vm1973 = vcmask 25600
    %v1974 = vsel %vm1973, %v1971, -inf
    %1975 = vmax.xlane.f32.xlu0 %v1974
    %v1976 = vpop.xlane.xlu0 %1975
    %v1978 = vperm.slane %v1976, 0
    %v1979 = vperm.slane %v1976, 1
    %vm1982 = vcmp.ge.f32.partialorder %v1965, %v1978
    %vm1983 = vcmp.ge.f32.partialorder %v1966, %v1979
    %v1984 = vlaneseq
    %v1985 = vshrl.u32 %v1984, 7
    %1987 = vset.pattern.permute.xlu0 %v1985
    %1988 = vperm.xlu0 %1987, %v174
    %v1989 = vpop.permute.xlu0 %1988
    %v1990 = vsel %vm1982, %v1989, 4
    %v1991 = vsel %vm1983, %v1989, 4
    %1992 = vset.pattern.permute.xlu0 0
    %1993 = vperm.xlu0 %1992, %v1990
    %v1994 = vpop.permute.xlu0 %1993
    %1995 = vset.pattern.permute.xlu0 0
    %1996 = vperm.xlu0 %1995, %v1991
    %v1997 = vpop.permute.xlu0 %1996
    %v1998 = vperm.slane %v1994, %v174
    %v1999 = vperm.slane %v1997, %v174
    %v2000 = vsel %vm183, %v1999, %v1998
    %v2001 = vsel %vm1973, %v2000, 2147483647
    %v2002 = vand.u32 %v2001, 65535
    %v2003 = vshra.s32 %v2001, 16
    %v2004 = vcvt.s32.f32 %v2002
    %v2005 = vcvt.s32.f32 %v2003
    %2006 = vmin.xlane.f32.xlu0 %v2005
    %v2007 = vpop.xlane.xlu0 %2006
    %vm2008 = vcmp.eq.f32.partialorder %v2005, %v2007
    %v2009 = vsel %vm2008, %v2004, inf
    %2010 = vmin.xlane.f32.xlu0 %v2009
    %v2011 = vpop.xlane.xlu0 %2010
    %v2012 = vcvt.f32.s32 %v2011
    %v2013 = vcvt.f32.s32 %v2007
    %v2014 = vshll.u32 %v2013, 16
    %v2015 = vadd.s32 %v2014, %v2012
    %vm2016 = vcmp.eq.s32.totalorder %v174, %v2015
    %v2017 = vsel %vm2016, 1, 0
    %v2018 = vcvt.s32.f32 %v2017
    %v2019 = vperm.slane %v2018, 0
    %v2020 = vlaneseq
    %v2021 = vshrl.u32 %v2020, 7
    %2023 = vset.pattern.permute.xlu0 %v2021
    %2024 = vperm.xlu0 %2023, %v2019
    %v2025 = vpop.permute.xlu0 %2024
    %v2026 = vperm.slane %v2018, 1
    %v2027 = vlaneseq
    %v2028 = vshrl.u32 %v2027, 7
    %2030 = vset.pattern.permute.xlu0 %v2028
    %2031 = vperm.xlu0 %2030, %v2026
    %v2032 = vpop.permute.xlu0 %2031
    %v2033 = vmul.f32 %v223, %v2025
    %v2034 = vmul.f32 %v225, %v2032
    %v2035 = vsel %vm622, %v2033, 0.0
    %v2036 = vrot.slane %v2035, 4
    %v2037 = vadd.f32 %v2035, %v2036
    %v2038 = vrot.slane %v2037, 2
    %v2039 = vadd.f32 %v2037, %v2038
    %v2040 = vrot.slane %v2039, 1
    %v2041 = vadd.f32 %v2039, %v2040
    %v2042 = vsel %vm622, %v2034, 0.0
    %v2043 = vrot.slane %v2042, 4
    %v2044 = vadd.f32 %v2042, %v2043
    %v2045 = vrot.slane %v2044, 2
    %v2046 = vadd.f32 %v2044, %v2045
    %v2047 = vrot.slane %v2046, 1
    %v2048 = vadd.f32 %v2046, %v2047
    %v2049 = vmul.f32 %v2018, -1e+09
    %v2050 = vadd.f32 %v2049, 0.0
    %v2053 = vsel %vm183, %v2048, %v2041
    %2055 = vmatpush.msra.mxu0 %v351
    %2056 = vmatpush.msra.mxu0 %v347
    %2057 = vmatpush.msra.mxu0 %v343
    %2058 = vmatpush.msra.mxu0 %v339
    %2059 = vmatpush.msra.mxu0 %v335
    %2060 = vmatpush.msra.mxu0 %v331
    %2061 = vmatpush.msra.mxu0 %v327
    %2062 = vmatpush.msra.mxu0 %v323
    %2063 = vmatpush.msra.mxu0 %v319
    %2064 = vmatpush.msra.mxu0 %v315
    %2065 = vmatpush.msra.mxu0 %v311
    %2066 = vmatpush.msra.mxu0 %v307
    %2067 = vmatpush.msra.mxu0 %v303
    %2068 = vmatpush.msra.mxu0 %v299
    %2069 = vmatpush.msra.mxu0 %v295
    %2070 = vmatpush.msra.mxu0 %v291
    %2071 = vmatmul.f32.gmra.mxu0 %v2053
    %v2072 = vpop.f32.mrf.mxu0
    %v2073 = vadd.f32 %v421, %v2072
    %2074 = vdwg.mxu0
    %2075 = vmatpush.msra.mxu0 %v415
    %2076 = vmatpush.msra.mxu0 %v411
    %2077 = vmatpush.msra.mxu0 %v407
    %2078 = vmatpush.msra.mxu0 %v403
    %2079 = vmatpush.msra.mxu0 %v399
    %2080 = vmatpush.msra.mxu0 %v395
    %2081 = vmatpush.msra.mxu0 %v391
    %2082 = vmatpush.msra.mxu0 %v387
    %2083 = vmatpush.msra.mxu0 %v383
    %2084 = vmatpush.msra.mxu0 %v379
    %2085 = vmatpush.msra.mxu0 %v375
    %2086 = vmatpush.msra.mxu0 %v371
    %2087 = vmatpush.msra.mxu0 %v367
    %2088 = vmatpush.msra.mxu0 %v363
    %2089 = vmatpush.msra.mxu0 %v359
    %2090 = vmatpush.msra.mxu0 %v355
    %2091 = vmatmul.f32.gmra.mxu0 %v1923
    %v2092 = vpop.f32.mrf.mxu0
    %v2093 = vadd.f32 %v2073, %v2092
    %2094 = vdwg.mxu0
    %2095 = vmatpush.msra.mxu0 %v352
    %2096 = vmatpush.msra.mxu0 %v348
    %2097 = vmatpush.msra.mxu0 %v344
    %2098 = vmatpush.msra.mxu0 %v340
    %2099 = vmatpush.msra.mxu0 %v336
    %2100 = vmatpush.msra.mxu0 %v332
    %2101 = vmatpush.msra.mxu0 %v328
    %2102 = vmatpush.msra.mxu0 %v324
    %2103 = vmatpush.msra.mxu0 %v320
    %2104 = vmatpush.msra.mxu0 %v316
    %2105 = vmatpush.msra.mxu0 %v312
    %2106 = vmatpush.msra.mxu0 %v308
    %2107 = vmatpush.msra.mxu0 %v304
    %2108 = vmatpush.msra.mxu0 %v300
    %2109 = vmatpush.msra.mxu0 %v296
    %2110 = vmatpush.msra.mxu0 %v292
    %2111 = vmatmul.f32.gmra.mxu0 %v2053
    %v2112 = vpop.f32.mrf.mxu0
    %v2113 = vadd.f32 %v422, %v2112
    %2114 = vdwg.mxu0
    %2115 = vmatpush.msra.mxu0 %v416
    %2116 = vmatpush.msra.mxu0 %v412
    %2117 = vmatpush.msra.mxu0 %v408
    %2118 = vmatpush.msra.mxu0 %v404
    %2119 = vmatpush.msra.mxu0 %v400
    %2120 = vmatpush.msra.mxu0 %v396
    %2121 = vmatpush.msra.mxu0 %v392
    %2122 = vmatpush.msra.mxu0 %v388
    %2123 = vmatpush.msra.mxu0 %v384
    %2124 = vmatpush.msra.mxu0 %v380
    %2125 = vmatpush.msra.mxu0 %v376
    %2126 = vmatpush.msra.mxu0 %v372
    %2127 = vmatpush.msra.mxu0 %v368
    %2128 = vmatpush.msra.mxu0 %v364
    %2129 = vmatpush.msra.mxu0 %v360
    %2130 = vmatpush.msra.mxu0 %v356
    %2131 = vmatmul.f32.gmra.mxu0 %v1923
    %v2132 = vpop.f32.mrf.mxu0
    %v2133 = vadd.f32 %v2113, %v2132
    %2134 = vdwg.mxu0
    %2135 = vmatpush.msra.mxu0 %v353
    %2136 = vmatpush.msra.mxu0 %v349
    %2137 = vmatpush.msra.mxu0 %v345
    %2138 = vmatpush.msra.mxu0 %v341
    %2139 = vmatpush.msra.mxu0 %v337
    %2140 = vmatpush.msra.mxu0 %v333
    %2141 = vmatpush.msra.mxu0 %v329
    %2142 = vmatpush.msra.mxu0 %v325
    %2143 = vmatpush.msra.mxu0 %v321
    %2144 = vmatpush.msra.mxu0 %v317
    %2145 = vmatpush.msra.mxu0 %v313
    %2146 = vmatpush.msra.mxu0 %v309
    %2147 = vmatpush.msra.mxu0 %v305
    %2148 = vmatpush.msra.mxu0 %v301
    %2149 = vmatpush.msra.mxu0 %v297
    %2150 = vmatpush.msra.mxu0 %v293
    %2151 = vmatmul.f32.gmra.mxu0 %v2053
    %v2152 = vpop.f32.mrf.mxu0
    %v2153 = vadd.f32 %v423, %v2152
    %2154 = vdwg.mxu0
    %2155 = vmatpush.msra.mxu0 %v417
    %2156 = vmatpush.msra.mxu0 %v413
    %2157 = vmatpush.msra.mxu0 %v409
    %2158 = vmatpush.msra.mxu0 %v405
    %2159 = vmatpush.msra.mxu0 %v401
    %2160 = vmatpush.msra.mxu0 %v397
    %2161 = vmatpush.msra.mxu0 %v393
    %2162 = vmatpush.msra.mxu0 %v389
    %2163 = vmatpush.msra.mxu0 %v385
    %2164 = vmatpush.msra.mxu0 %v381
    %2165 = vmatpush.msra.mxu0 %v377
    %2166 = vmatpush.msra.mxu0 %v373
    %2167 = vmatpush.msra.mxu0 %v369
    %2168 = vmatpush.msra.mxu0 %v365
    %2169 = vmatpush.msra.mxu0 %v361
    %2170 = vmatpush.msra.mxu0 %v357
    %2171 = vmatmul.f32.gmra.mxu0 %v1923
    %v2172 = vpop.f32.mrf.mxu0
    %v2173 = vadd.f32 %v2153, %v2172
    %2174 = vdwg.mxu0
    %2175 = vmatpush.msra.mxu0 %v354
    %2176 = vmatpush.msra.mxu0 %v350
    %2177 = vmatpush.msra.mxu0 %v346
    %2178 = vmatpush.msra.mxu0 %v342
    %2179 = vmatpush.msra.mxu0 %v338
    %2180 = vmatpush.msra.mxu0 %v334
    %2181 = vmatpush.msra.mxu0 %v330
    %2182 = vmatpush.msra.mxu0 %v326
    %2183 = vmatpush.msra.mxu0 %v322
    %2184 = vmatpush.msra.mxu0 %v318
    %2185 = vmatpush.msra.mxu0 %v314
    %2186 = vmatpush.msra.mxu0 %v310
    %2187 = vmatpush.msra.mxu0 %v306
    %2188 = vmatpush.msra.mxu0 %v302
    %2189 = vmatpush.msra.mxu0 %v298
    %2190 = vmatpush.msra.mxu0 %v294
    %2191 = vmatmul.f32.gmra.mxu0 %v2053
    %v2192 = vpop.f32.mrf.mxu0
    %v2193 = vadd.f32 %v424, %v2192
    %2194 = vdwg.mxu0
    %2195 = vmatpush.msra.mxu0 %v418
    %2196 = vmatpush.msra.mxu0 %v414
    %2197 = vmatpush.msra.mxu0 %v410
    %2198 = vmatpush.msra.mxu0 %v406
    %2199 = vmatpush.msra.mxu0 %v402
    %2200 = vmatpush.msra.mxu0 %v398
    %2201 = vmatpush.msra.mxu0 %v394
    %2202 = vmatpush.msra.mxu0 %v390
    %2203 = vmatpush.msra.mxu0 %v386
    %2204 = vmatpush.msra.mxu0 %v382
    %2205 = vmatpush.msra.mxu0 %v378
    %2206 = vmatpush.msra.mxu0 %v374
    %2207 = vmatpush.msra.mxu0 %v370
    %2208 = vmatpush.msra.mxu0 %v366
    %2209 = vmatpush.msra.mxu0 %v362
    %2210 = vmatpush.msra.mxu0 %v358
    %2211 = vmatmul.f32.gmra.mxu0 %v1923
    %v2212 = vpop.f32.mrf.mxu0
    %v2213 = vadd.f32 %v2193, %v2212
    %2214 = vdwg.mxu0
    %v2215 = vxor.u32 %v2093, 2147483648
    %v2216 = vmul.f32 %v2215, 1.442695
    %v2217 = vpow.pop %v2216
    %v2218 = vadd.f32 %v2217, 1.0
    %v2219 = vrcp.pop %v2218
    %v2220 = vmul.f32 %v2218, %v2219
    %v2221 = vsub.f32 1.0, %v2220
    %v2222 = vmul.f32 %v2219, %v2221
    %v2223 = vadd.f32 %v2219, %v2222
    %vm2224 = vweird.f32 %v2218
    %vm2225 = vweird.f32 %v2219
    %vm2226 = vmor %vm2224, %vm2225
    %v2227 = vsel %vm2226, %v2219, %v2223
    %v2228 = vand.u32 2147483647, %v2218
    %vm2229 = vcmp.eq.f32.partialorder %v2228, 8.507059e+37
    %v2230 = vand.u32 %v2218, 2147483648
    %v2231 = vor.u32 1.1754944e-38, %v2230
    %v2232 = vsel %vm2229, %v2231, %v2227
    %v2233 = vmul.f32 1.0, %v2232
    %v2234 = vxor.u32 %v2133, 2147483648
    %v2235 = vmul.f32 %v2234, 1.442695
    %v2236 = vpow.pop %v2235
    %v2237 = vadd.f32 %v2236, 1.0
    %v2238 = vrcp.pop %v2237
    %v2239 = vmul.f32 %v2237, %v2238
    %v2240 = vsub.f32 1.0, %v2239
    %v2241 = vmul.f32 %v2238, %v2240
    %v2242 = vadd.f32 %v2238, %v2241
    %vm2243 = vweird.f32 %v2237
    %vm2244 = vweird.f32 %v2238
    %vm2245 = vmor %vm2243, %vm2244
    %v2246 = vsel %vm2245, %v2238, %v2242
    %v2247 = vand.u32 2147483647, %v2237
    %vm2248 = vcmp.eq.f32.partialorder %v2247, 8.507059e+37
    %v2249 = vand.u32 %v2237, 2147483648
    %v2250 = vor.u32 1.1754944e-38, %v2249
    %v2251 = vsel %vm2248, %v2250, %v2246
    %v2252 = vmul.f32 1.0, %v2251
    %v2253 = vtanh.pop %v2173
    %v2254 = vxor.u32 %v2213, 2147483648
    %v2255 = vmul.f32 %v2254, 1.442695
    %v2256 = vpow.pop %v2255
    %v2257 = vadd.f32 %v2256, 1.0
    %v2258 = vrcp.pop %v2257
    %v2259 = vmul.f32 %v2257, %v2258
    %v2260 = vsub.f32 1.0, %v2259
    %v2261 = vmul.f32 %v2258, %v2260
    %v2262 = vadd.f32 %v2258, %v2261
    %vm2263 = vweird.f32 %v2257
    %vm2264 = vweird.f32 %v2258
    %vm2265 = vmor %vm2263, %vm2264
    %v2266 = vsel %vm2265, %v2258, %v2262
    %v2267 = vand.u32 2147483647, %v2257
    %vm2268 = vcmp.eq.f32.partialorder %v2267, 8.507059e+37
    %v2269 = vand.u32 %v2257, 2147483648
    %v2270 = vor.u32 1.1754944e-38, %v2269
    %v2271 = vsel %vm2268, %v2270, %v2266
    %v2272 = vmul.f32 1.0, %v2271
    %v2273 = vmul.f32 %v2252, %v1921
    %v2274 = vmul.f32 %v2233, %v2253
    %v2275 = vadd.f32 %v2273, %v2274
    %v2276 = vtanh.pop %v2275
    %v2277 = vmul.f32 %v2272, %v2276
    %2278 = vmatpush.msra.mxu0 %v460
    %2279 = vmatpush.msra.mxu0 %v459
    %2280 = vmatpush.msra.mxu0 %v458
    %2281 = vmatpush.msra.mxu0 %v457
    %2282 = vmatpush.msra.mxu0 %v456
    %2283 = vmatpush.msra.mxu0 %v455
    %2284 = vmatpush.msra.mxu0 %v454
    %2285 = vmatpush.msra.mxu0 %v453
    %2286 = vmatpush.msra.mxu0 %v452
    %2287 = vmatpush.msra.mxu0 %v451
    %2288 = vmatpush.msra.mxu0 %v450
    %2289 = vmatpush.msra.mxu0 %v449
    %2290 = vmatpush.msra.mxu0 %v448
    %2291 = vmatpush.msra.mxu0 %v447
    %2292 = vmatpush.msra.mxu0 %v446
    %2293 = vmatpush.msra.mxu0 %v445
    %2294 = vmatmul.f32.gmra.mxu0 %v2277
    %v2295 = vpop.f32.mrf.mxu0
    %v2296 = vadd.f32 0.0, %v2295
    %2297 = vdwg.mxu0
    %v2299 = vrot.slane %v2296, 1
    %v2300 = vperm.slane %v2296, 0
    %v2301 = vperm.slane %v2299, 0
    %v2304 = vadd.f32 %v1687, %v2300
    %v2305 = vadd.f32 %v1688, %v2301
    %v2306 = vtanh.pop %v2304
    %v2307 = vtanh.pop %v2305
    %v2308 = vmul.f32 %v2306, %v1955
    %v2309 = vmul.f32 %v2307, %v1955
    %v2310 = vsel %vm622, %v2308, 0.0
    %2311 = vadd.xlane.f32.xlu0 %v2310
    %v2312 = vpop.xlane.xlu0 %2311
    %v2313 = vsel %vm622, %v2309, 0.0
    %2314 = vadd.xlane.f32.xlu0 %v2313
    %v2315 = vpop.xlane.xlu0 %2314
    %v2317 = vperm.slane %v2050, 0
    %v2318 = vlaneseq
    %v2319 = vshrl.u32 %v2318, 7
    %2321 = vset.pattern.permute.xlu0 %v2319
    %2322 = vperm.xlu0 %2321, %v2317
    %v2323 = vpop.permute.xlu0 %2322
    %v2324 = vperm.slane %v2050, 1
    %v2325 = vlaneseq
    %v2326 = vshrl.u32 %v2325, 7
    %2328 = vset.pattern.permute.xlu0 %v2326
    %2329 = vperm.xlu0 %2328, %v2324
    %v2330 = vpop.permute.xlu0 %2329
    %v2333 = vadd.f32 %v2312, %v2323
    %v2334 = vadd.f32 %v2315, %v2330
    %2337 = vset.pattern.permute.xlu0 0
    %2338 = vperm.xlu0 %2337, %v2333
    %v2339 = vpop.permute.xlu0 %2338
    %2340 = vset.pattern.permute.xlu0 0
    %2341 = vperm.xlu0 %2340, %v2334
    %v2342 = vpop.permute.xlu0 %2341
    %v2343 = vperm.slane %v2339, %v174
    %v2344 = vperm.slane %v2342, %v174
    %v2345 = vsel %vm183, %v2344, %v2343
    %v2347 = vsel %vm1973, %v2345, -inf
    %2348 = vmax.xlane.f32.xlu0 %v2347
    %v2349 = vpop.xlane.xlu0 %2348
    %v2351 = vperm.slane %v2349, 0
    %v2352 = vperm.slane %v2349, 1
    %vm2355 = vcmp.ge.f32.partialorder %v2333, %v2351
    %vm2356 = vcmp.ge.f32.partialorder %v2334, %v2352
    %v2357 = vsel %vm2355, %v1989, 4
    %v2358 = vsel %vm2356, %v1989, 4
    %2359 = vset.pattern.permute.xlu0 0
    %2360 = vperm.xlu0 %2359, %v2357
    %v2361 = vpop.permute.xlu0 %2360
    %2362 = vset.pattern.permute.xlu0 0
    %2363 = vperm.xlu0 %2362, %v2358
    %v2364 = vpop.permute.xlu0 %2363
    %v2365 = vperm.slane %v2361, %v174
    %v2366 = vperm.slane %v2364, %v174
    %v2367 = vsel %vm183, %v2366, %v2365
    %v2368 = vsel %vm1973, %v2367, 2147483647
    %v2369 = vand.u32 %v2368, 65535
    %v2370 = vshra.s32 %v2368, 16
    %v2371 = vcvt.s32.f32 %v2369
    %v2372 = vcvt.s32.f32 %v2370
    %2373 = vmin.xlane.f32.xlu0 %v2372
    %v2374 = vpop.xlane.xlu0 %2373
    %vm2375 = vcmp.eq.f32.partialorder %v2372, %v2374
    %v2376 = vsel %vm2375, %v2371, inf
    %2377 = vmin.xlane.f32.xlu0 %v2376
    %v2378 = vpop.xlane.xlu0 %2377
    %v2379 = vcvt.f32.s32 %v2378
    %v2380 = vcvt.f32.s32 %v2374
    %v2381 = vshll.u32 %v2380, 16
    %v2382 = vadd.s32 %v2381, %v2379
    %vm2383 = vcmp.eq.s32.totalorder %v174, %v2382
    %v2384 = vsel %vm2383, 1, 0
    %v2385 = vcvt.s32.f32 %v2384
    %v2386 = vperm.slane %v2385, 0
    %v2387 = vlaneseq
    %v2388 = vshrl.u32 %v2387, 7
    %2390 = vset.pattern.permute.xlu0 %v2388
    %2391 = vperm.xlu0 %2390, %v2386
    %v2392 = vpop.permute.xlu0 %2391
    %v2393 = vperm.slane %v2385, 1
    %v2394 = vlaneseq
    %v2395 = vshrl.u32 %v2394, 7
    %2397 = vset.pattern.permute.xlu0 %v2395
    %2398 = vperm.xlu0 %2397, %v2393
    %v2399 = vpop.permute.xlu0 %2398
    %v2400 = vmul.f32 %v223, %v2392
    %v2401 = vmul.f32 %v225, %v2399
    %v2402 = vsel %vm622, %v2400, 0.0
    %v2403 = vrot.slane %v2402, 4
    %v2404 = vadd.f32 %v2402, %v2403
    %v2405 = vrot.slane %v2404, 2
    %v2406 = vadd.f32 %v2404, %v2405
    %v2407 = vrot.slane %v2406, 1
    %v2408 = vadd.f32 %v2406, %v2407
    %v2409 = vsel %vm622, %v2401, 0.0
    %v2410 = vrot.slane %v2409, 4
    %v2411 = vadd.f32 %v2409, %v2410
    %v2412 = vrot.slane %v2411, 2
    %v2413 = vadd.f32 %v2411, %v2412
    %v2414 = vrot.slane %v2413, 1
    %v2415 = vadd.f32 %v2413, %v2414
    %v2416 = vmul.f32 %v2385, -1e+09
    %v2417 = vadd.f32 %v2050, %v2416
    %v2420 = vsel %vm183, %v2415, %v2408
    %2422 = vmatpush.msra.mxu0 %v351
    %2423 = vmatpush.msra.mxu0 %v347
    %2424 = vmatpush.msra.mxu0 %v343
    %2425 = vmatpush.msra.mxu0 %v339
    %2426 = vmatpush.msra.mxu0 %v335
    %2427 = vmatpush.msra.mxu0 %v331
    %2428 = vmatpush.msra.mxu0 %v327
    %2429 = vmatpush.msra.mxu0 %v323
    %2430 = vmatpush.msra.mxu0 %v319
    %2431 = vmatpush.msra.mxu0 %v315
    %2432 = vmatpush.msra.mxu0 %v311
    %2433 = vmatpush.msra.mxu0 %v307
    %2434 = vmatpush.msra.mxu0 %v303
    %2435 = vmatpush.msra.mxu0 %v299
    %2436 = vmatpush.msra.mxu0 %v295
    %2437 = vmatpush.msra.mxu0 %v291
    %2438 = vmatmul.f32.gmra.mxu0 %v2420
    %v2439 = vpop.f32.mrf.mxu0
    %v2440 = vadd.f32 %v421, %v2439
    %2441 = vdwg.mxu0
    %2442 = vmatpush.msra.mxu0 %v415
    %2443 = vmatpush.msra.mxu0 %v411
    %2444 = vmatpush.msra.mxu0 %v407
    %2445 = vmatpush.msra.mxu0 %v403
    %2446 = vmatpush.msra.mxu0 %v399
    %2447 = vmatpush.msra.mxu0 %v395
    %2448 = vmatpush.msra.mxu0 %v391
    %2449 = vmatpush.msra.mxu0 %v387
    %2450 = vmatpush.msra.mxu0 %v383
    %2451 = vmatpush.msra.mxu0 %v379
    %2452 = vmatpush.msra.mxu0 %v375
    %2453 = vmatpush.msra.mxu0 %v371
    %2454 = vmatpush.msra.mxu0 %v367
    %2455 = vmatpush.msra.mxu0 %v363
    %2456 = vmatpush.msra.mxu0 %v359
    %2457 = vmatpush.msra.mxu0 %v355
    %2458 = vmatmul.f32.gmra.mxu0 %v2277
    %v2459 = vpop.f32.mrf.mxu0
    %v2460 = vadd.f32 %v2440, %v2459
    %2461 = vdwg.mxu0
    %2462 = vmatpush.msra.mxu0 %v352
    %2463 = vmatpush.msra.mxu0 %v348
    %2464 = vmatpush.msra.mxu0 %v344
    %2465 = vmatpush.msra.mxu0 %v340
    %2466 = vmatpush.msra.mxu0 %v336
    %2467 = vmatpush.msra.mxu0 %v332
    %2468 = vmatpush.msra.mxu0 %v328
    %2469 = vmatpush.msra.mxu0 %v324
    %2470 = vmatpush.msra.mxu0 %v320
    %2471 = vmatpush.msra.mxu0 %v316
    %2472 = vmatpush.msra.mxu0 %v312
    %2473 = vmatpush.msra.mxu0 %v308
    %2474 = vmatpush.msra.mxu0 %v304
    %2475 = vmatpush.msra.mxu0 %v300
    %2476 = vmatpush.msra.mxu0 %v296
    %2477 = vmatpush.msra.mxu0 %v292
    %2478 = vmatmul.f32.gmra.mxu0 %v2420
    %v2479 = vpop.f32.mrf.mxu0
    %v2480 = vadd.f32 %v422, %v2479
    %2481 = vdwg.mxu0
    %2482 = vmatpush.msra.mxu0 %v416
    %2483 = vmatpush.msra.mxu0 %v412
    %2484 = vmatpush.msra.mxu0 %v408
    %2485 = vmatpush.msra.mxu0 %v404
    %2486 = vmatpush.msra.mxu0 %v400
    %2487 = vmatpush.msra.mxu0 %v396
    %2488 = vmatpush.msra.mxu0 %v392
    %2489 = vmatpush.msra.mxu0 %v388
    %2490 = vmatpush.msra.mxu0 %v384
    %2491 = vmatpush.msra.mxu0 %v380
    %2492 = vmatpush.msra.mxu0 %v376
    %2493 = vmatpush.msra.mxu0 %v372
    %2494 = vmatpush.msra.mxu0 %v368
    %2495 = vmatpush.msra.mxu0 %v364
    %2496 = vmatpush.msra.mxu0 %v360
    %2497 = vmatpush.msra.mxu0 %v356
    %2498 = vmatmul.f32.gmra.mxu0 %v2277
    %v2499 = vpop.f32.mrf.mxu0
    %v2500 = vadd.f32 %v2480, %v2499
    %2501 = vdwg.mxu0
    %2502 = vmatpush.msra.mxu0 %v353
    %2503 = vmatpush.msra.mxu0 %v349
    %2504 = vmatpush.msra.mxu0 %v345
    %2505 = vmatpush.msra.mxu0 %v341
    %2506 = vmatpush.msra.mxu0 %v337
    %2507 = vmatpush.msra.mxu0 %v333
    %2508 = vmatpush.msra.mxu0 %v329
    %2509 = vmatpush.msra.mxu0 %v325
    %2510 = vmatpush.msra.mxu0 %v321
    %2511 = vmatpush.msra.mxu0 %v317
    %2512 = vmatpush.msra.mxu0 %v313
    %2513 = vmatpush.msra.mxu0 %v309
    %2514 = vmatpush.msra.mxu0 %v305
    %2515 = vmatpush.msra.mxu0 %v301
    %2516 = vmatpush.msra.mxu0 %v297
    %2517 = vmatpush.msra.mxu0 %v293
    %2518 = vmatmul.f32.gmra.mxu0 %v2420
    %v2519 = vpop.f32.mrf.mxu0
    %v2520 = vadd.f32 %v423, %v2519
    %2521 = vdwg.mxu0
    %2522 = vmatpush.msra.mxu0 %v417
    %2523 = vmatpush.msra.mxu0 %v413
    %2524 = vmatpush.msra.mxu0 %v409
    %2525 = vmatpush.msra.mxu0 %v405
    %2526 = vmatpush.msra.mxu0 %v401
    %2527 = vmatpush.msra.mxu0 %v397
    %2528 = vmatpush.msra.mxu0 %v393
    %2529 = vmatpush.msra.mxu0 %v389
    %2530 = vmatpush.msra.mxu0 %v385
    %2531 = vmatpush.msra.mxu0 %v381
    %2532 = vmatpush.msra.mxu0 %v377
    %2533 = vmatpush.msra.mxu0 %v373
    %2534 = vmatpush.msra.mxu0 %v369
    %2535 = vmatpush.msra.mxu0 %v365
    %2536 = vmatpush.msra.mxu0 %v361
    %2537 = vmatpush.msra.mxu0 %v357
    %2538 = vmatmul.f32.gmra.mxu0 %v2277
    %v2539 = vpop.f32.mrf.mxu0
    %v2540 = vadd.f32 %v2520, %v2539
    %2541 = vdwg.mxu0
    %2542 = vmatpush.msra.mxu0 %v354
    %2543 = vmatpush.msra.mxu0 %v350
    %2544 = vmatpush.msra.mxu0 %v346
    %2545 = vmatpush.msra.mxu0 %v342
    %2546 = vmatpush.msra.mxu0 %v338
    %2547 = vmatpush.msra.mxu0 %v334
    %2548 = vmatpush.msra.mxu0 %v330
    %2549 = vmatpush.msra.mxu0 %v326
    %2550 = vmatpush.msra.mxu0 %v322
    %2551 = vmatpush.msra.mxu0 %v318
    %2552 = vmatpush.msra.mxu0 %v314
    %2553 = vmatpush.msra.mxu0 %v310
    %2554 = vmatpush.msra.mxu0 %v306
    %2555 = vmatpush.msra.mxu0 %v302
    %2556 = vmatpush.msra.mxu0 %v298
    %2557 = vmatpush.msra.mxu0 %v294
    %2558 = vmatmul.f32.gmra.mxu0 %v2420
    %v2559 = vpop.f32.mrf.mxu0
    %v2560 = vadd.f32 %v424, %v2559
    %2561 = vdwg.mxu0
    %2562 = vmatpush.msra.mxu0 %v418
    %2563 = vmatpush.msra.mxu0 %v414
    %2564 = vmatpush.msra.mxu0 %v410
    %2565 = vmatpush.msra.mxu0 %v406
    %2566 = vmatpush.msra.mxu0 %v402
    %2567 = vmatpush.msra.mxu0 %v398
    %2568 = vmatpush.msra.mxu0 %v394
    %2569 = vmatpush.msra.mxu0 %v390
    %2570 = vmatpush.msra.mxu0 %v386
    %2571 = vmatpush.msra.mxu0 %v382
    %2572 = vmatpush.msra.mxu0 %v378
    %2573 = vmatpush.msra.mxu0 %v374
    %2574 = vmatpush.msra.mxu0 %v370
    %2575 = vmatpush.msra.mxu0 %v366
    %2576 = vmatpush.msra.mxu0 %v362
    %2577 = vmatpush.msra.mxu0 %v358
    %2578 = vmatmul.f32.gmra.mxu0 %v2277
    %v2579 = vpop.f32.mrf.mxu0
    %v2580 = vadd.f32 %v2560, %v2579
    %2581 = vdwg.mxu0
    %v2582 = vxor.u32 %v2460, 2147483648
    %v2583 = vmul.f32 %v2582, 1.442695
    %v2584 = vpow.pop %v2583
    %v2585 = vadd.f32 %v2584, 1.0
    %v2586 = vrcp.pop %v2585
    %v2587 = vmul.f32 %v2585, %v2586
    %v2588 = vsub.f32 1.0, %v2587
    %v2589 = vmul.f32 %v2586, %v2588
    %v2590 = vadd.f32 %v2586, %v2589
    %vm2591 = vweird.f32 %v2585
    %vm2592 = vweird.f32 %v2586
    %vm2593 = vmor %vm2591, %vm2592
    %v2594 = vsel %vm2593, %v2586, %v2590
    %v2595 = vand.u32 2147483647, %v2585
    %vm2596 = vcmp.eq.f32.partialorder %v2595, 8.507059e+37
    %v2597 = vand.u32 %v2585, 2147483648
    %v2598 = vor.u32 1.1754944e-38, %v2597
    %v2599 = vsel %vm2596, %v2598, %v2594
    %v2600 = vmul.f32 1.0, %v2599
    %v2601 = vxor.u32 %v2500, 2147483648
    %v2602 = vmul.f32 %v2601, 1.442695
    %v2603 = vpow.pop %v2602
    %v2604 = vadd.f32 %v2603, 1.0
    %v2605 = vrcp.pop %v2604
    %v2606 = vmul.f32 %v2604, %v2605
    %v2607 = vsub.f32 1.0, %v2606
    %v2608 = vmul.f32 %v2605, %v2607
    %v2609 = vadd.f32 %v2605, %v2608
    %vm2610 = vweird.f32 %v2604
    %vm2611 = vweird.f32 %v2605
    %vm2612 = vmor %vm2610, %vm2611
    %v2613 = vsel %vm2612, %v2605, %v2609
    %v2614 = vand.u32 2147483647, %v2604
    %vm2615 = vcmp.eq.f32.partialorder %v2614, 8.507059e+37
    %v2616 = vand.u32 %v2604, 2147483648
    %v2617 = vor.u32 1.1754944e-38, %v2616
    %v2618 = vsel %vm2615, %v2617, %v2613
    %v2619 = vmul.f32 1.0, %v2618
    %v2620 = vtanh.pop %v2540
    %v2621 = vxor.u32 %v2580, 2147483648
    %v2622 = vmul.f32 %v2621, 1.442695
    %v2623 = vpow.pop %v2622
    %v2624 = vadd.f32 %v2623, 1.0
    %v2625 = vrcp.pop %v2624
    %v2626 = vmul.f32 %v2624, %v2625
    %v2627 = vsub.f32 1.0, %v2626
    %v2628 = vmul.f32 %v2625, %v2627
    %v2629 = vadd.f32 %v2625, %v2628
    %vm2630 = vweird.f32 %v2624
    %vm2631 = vweird.f32 %v2625
    %vm2632 = vmor %vm2630, %vm2631
    %v2633 = vsel %vm2632, %v2625, %v2629
    %v2634 = vand.u32 2147483647, %v2624
    %vm2635 = vcmp.eq.f32.partialorder %v2634, 8.507059e+37
    %v2636 = vand.u32 %v2624, 2147483648
    %v2637 = vor.u32 1.1754944e-38, %v2636
    %v2638 = vsel %vm2635, %v2637, %v2633
    %v2639 = vmul.f32 1.0, %v2638
    %v2640 = vmul.f32 %v2619, %v2275
    %v2641 = vmul.f32 %v2600, %v2620
    %v2642 = vadd.f32 %v2640, %v2641
    %v2643 = vtanh.pop %v2642
    %v2644 = vmul.f32 %v2639, %v2643
    %2645 = vmatpush.msra.mxu0 %v460
    %2646 = vmatpush.msra.mxu0 %v459
    %2647 = vmatpush.msra.mxu0 %v458
    %2648 = vmatpush.msra.mxu0 %v457
    %2649 = vmatpush.msra.mxu0 %v456
    %2650 = vmatpush.msra.mxu0 %v455
    %2651 = vmatpush.msra.mxu0 %v454
    %2652 = vmatpush.msra.mxu0 %v453
    %2653 = vmatpush.msra.mxu0 %v452
    %2654 = vmatpush.msra.mxu0 %v451
    %2655 = vmatpush.msra.mxu0 %v450
    %2656 = vmatpush.msra.mxu0 %v449
    %2657 = vmatpush.msra.mxu0 %v448
    %2658 = vmatpush.msra.mxu0 %v447
    %2659 = vmatpush.msra.mxu0 %v446
    %2660 = vmatpush.msra.mxu0 %v445
    %2661 = vmatmul.f32.gmra.mxu0 %v2644
    %v2662 = vpop.f32.mrf.mxu0
    %v2663 = vadd.f32 0.0, %v2662
    %2664 = vdwg.mxu0
    %v2666 = vrot.slane %v2663, 1
    %v2667 = vperm.slane %v2663, 0
    %v2668 = vperm.slane %v2666, 0
    %v2671 = vadd.f32 %v1687, %v2667
    %v2672 = vadd.f32 %v1688, %v2668
    %v2673 = vtanh.pop %v2671
    %v2674 = vtanh.pop %v2672
    %v2675 = vmul.f32 %v2673, %v1955
    %v2676 = vmul.f32 %v2674, %v1955
    %v2677 = vsel %vm622, %v2675, 0.0
    %2678 = vadd.xlane.f32.xlu0 %v2677
    %v2679 = vpop.xlane.xlu0 %2678
    %v2680 = vsel %vm622, %v2676, 0.0
    %2681 = vadd.xlane.f32.xlu0 %v2680
    %v2682 = vpop.xlane.xlu0 %2681
    %v2684 = vperm.slane %v2417, 0
    %v2685 = vlaneseq
    %v2686 = vshrl.u32 %v2685, 7
    %2688 = vset.pattern.permute.xlu0 %v2686
    %2689 = vperm.xlu0 %2688, %v2684
    %v2690 = vpop.permute.xlu0 %2689
    %v2691 = vperm.slane %v2417, 1
    %v2692 = vlaneseq
    %v2693 = vshrl.u32 %v2692, 7
    %2695 = vset.pattern.permute.xlu0 %v2693
    %2696 = vperm.xlu0 %2695, %v2691
    %v2697 = vpop.permute.xlu0 %2696
    %v2700 = vadd.f32 %v2679, %v2690
    %v2701 = vadd.f32 %v2682, %v2697
    %2704 = vset.pattern.permute.xlu0 0
    %2705 = vperm.xlu0 %2704, %v2700
    %v2706 = vpop.permute.xlu0 %2705
    %2707 = vset.pattern.permute.xlu0 0
    %2708 = vperm.xlu0 %2707, %v2701
    %v2709 = vpop.permute.xlu0 %2708
    %v2710 = vperm.slane %v2706, %v174
    %v2711 = vperm.slane %v2709, %v174
    %v2712 = vsel %vm183, %v2711, %v2710
    %v2714 = vsel %vm1973, %v2712, -inf
    %2715 = vmax.xlane.f32.xlu0 %v2714
    %v2716 = vpop.xlane.xlu0 %2715
    %v2718 = vperm.slane %v2716, 0
    %v2719 = vperm.slane %v2716, 1
    %vm2722 = vcmp.ge.f32.partialorder %v2700, %v2718
    %vm2723 = vcmp.ge.f32.partialorder %v2701, %v2719
    %v2724 = vsel %vm2722, %v1989, 4
    %v2725 = vsel %vm2723, %v1989, 4
    %2726 = vset.pattern.permute.xlu0 0
    %2727 = vperm.xlu0 %2726, %v2724
    %v2728 = vpop.permute.xlu0 %2727
    %2729 = vset.pattern.permute.xlu0 0
    %2730 = vperm.xlu0 %2729, %v2725
    %v2731 = vpop.permute.xlu0 %2730
    %v2732 = vperm.slane %v2728, %v174
    %v2733 = vperm.slane %v2731, %v174
    %v2734 = vsel %vm183, %v2733, %v2732
    %v2735 = vsel %vm1973, %v2734, 2147483647
    %v2736 = vand.u32 %v2735, 65535
    %v2737 = vshra.s32 %v2735, 16
    %v2738 = vcvt.s32.f32 %v2736
    %v2739 = vcvt.s32.f32 %v2737
    %2740 = vmin.xlane.f32.xlu0 %v2739
    %v2741 = vpop.xlane.xlu0 %2740
    %vm2742 = vcmp.eq.f32.partialorder %v2739, %v2741
    %v2743 = vsel %vm2742, %v2738, inf
    %2744 = vmin.xlane.f32.xlu0 %v2743
    %v2745 = vpop.xlane.xlu0 %2744
    %v2746 = vcvt.f32.s32 %v2745
    %v2747 = vcvt.f32.s32 %v2741
    %v2748 = vshll.u32 %v2747, 16
    %v2749 = vadd.s32 %v2748, %v2746
    %vm2750 = vcmp.eq.s32.totalorder %v174, %v2749
    %v2751 = vsel %vm2750, 1, 0
    %v2752 = vcvt.s32.f32 %v2751
    %v2753 = vperm.slane %v2752, 0
    %v2754 = vlaneseq
    %v2755 = vshrl.u32 %v2754, 7
    %2757 = vset.pattern.permute.xlu0 %v2755
    %2758 = vperm.xlu0 %2757, %v2753
    %v2759 = vpop.permute.xlu0 %2758
    %v2760 = vperm.slane %v2752, 1
    %v2761 = vlaneseq
    %v2762 = vshrl.u32 %v2761, 7
    %2764 = vset.pattern.permute.xlu0 %v2762
    %2765 = vperm.xlu0 %2764, %v2760
    %v2766 = vpop.permute.xlu0 %2765
    %v2767 = vmul.f32 %v223, %v2759
    %v2768 = vmul.f32 %v225, %v2766
    %v2769 = vsel %vm622, %v2767, 0.0
    %v2770 = vrot.slane %v2769, 4
    %v2771 = vadd.f32 %v2769, %v2770
    %v2772 = vrot.slane %v2771, 2
    %v2773 = vadd.f32 %v2771, %v2772
    %v2774 = vrot.slane %v2773, 1
    %v2775 = vadd.f32 %v2773, %v2774
    %v2776 = vsel %vm622, %v2768, 0.0
    %v2777 = vrot.slane %v2776, 4
    %v2778 = vadd.f32 %v2776, %v2777
    %v2779 = vrot.slane %v2778, 2
    %v2780 = vadd.f32 %v2778, %v2779
    %v2781 = vrot.slane %v2780, 1
    %v2782 = vadd.f32 %v2780, %v2781
    %v2783 = vmul.f32 %v2752, -1e+09
    %v2784 = vadd.f32 %v2417, %v2783
    %v2787 = vsel %vm183, %v2782, %v2775
    %2789 = vmatpush.msra.mxu0 %v351
    %2790 = vmatpush.msra.mxu0 %v347
    %2791 = vmatpush.msra.mxu0 %v343
    %2792 = vmatpush.msra.mxu0 %v339
    %2793 = vmatpush.msra.mxu0 %v335
    %2794 = vmatpush.msra.mxu0 %v331
    %2795 = vmatpush.msra.mxu0 %v327
    %2796 = vmatpush.msra.mxu0 %v323
    %2797 = vmatpush.msra.mxu0 %v319
    %2798 = vmatpush.msra.mxu0 %v315
    %2799 = vmatpush.msra.mxu0 %v311
    %2800 = vmatpush.msra.mxu0 %v307
    %2801 = vmatpush.msra.mxu0 %v303
    %2802 = vmatpush.msra.mxu0 %v299
    %2803 = vmatpush.msra.mxu0 %v295
    %2804 = vmatpush.msra.mxu0 %v291
    %2805 = vmatmul.f32.gmra.mxu0 %v2787
    %v2806 = vpop.f32.mrf.mxu0
    %v2807 = vadd.f32 %v421, %v2806
    %2808 = vdwg.mxu0
    %2809 = vmatpush.msra.mxu0 %v415
    %2810 = vmatpush.msra.mxu0 %v411
    %2811 = vmatpush.msra.mxu0 %v407
    %2812 = vmatpush.msra.mxu0 %v403
    %2813 = vmatpush.msra.mxu0 %v399
    %2814 = vmatpush.msra.mxu0 %v395
    %2815 = vmatpush.msra.mxu0 %v391
    %2816 = vmatpush.msra.mxu0 %v387
    %2817 = vmatpush.msra.mxu0 %v383
    %2818 = vmatpush.msra.mxu0 %v379
    %2819 = vmatpush.msra.mxu0 %v375
    %2820 = vmatpush.msra.mxu0 %v371
    %2821 = vmatpush.msra.mxu0 %v367
    %2822 = vmatpush.msra.mxu0 %v363
    %2823 = vmatpush.msra.mxu0 %v359
    %2824 = vmatpush.msra.mxu0 %v355
    %2825 = vmatmul.f32.gmra.mxu0 %v2644
    %v2826 = vpop.f32.mrf.mxu0
    %v2827 = vadd.f32 %v2807, %v2826
    %2828 = vdwg.mxu0
    %2829 = vmatpush.msra.mxu0 %v352
    %2830 = vmatpush.msra.mxu0 %v348
    %2831 = vmatpush.msra.mxu0 %v344
    %2832 = vmatpush.msra.mxu0 %v340
    %2833 = vmatpush.msra.mxu0 %v336
    %2834 = vmatpush.msra.mxu0 %v332
    %2835 = vmatpush.msra.mxu0 %v328
    %2836 = vmatpush.msra.mxu0 %v324
    %2837 = vmatpush.msra.mxu0 %v320
    %2838 = vmatpush.msra.mxu0 %v316
    %2839 = vmatpush.msra.mxu0 %v312
    %2840 = vmatpush.msra.mxu0 %v308
    %2841 = vmatpush.msra.mxu0 %v304
    %2842 = vmatpush.msra.mxu0 %v300
    %2843 = vmatpush.msra.mxu0 %v296
    %2844 = vmatpush.msra.mxu0 %v292
    %2845 = vmatmul.f32.gmra.mxu0 %v2787
    %v2846 = vpop.f32.mrf.mxu0
    %v2847 = vadd.f32 %v422, %v2846
    %2848 = vdwg.mxu0
    %2849 = vmatpush.msra.mxu0 %v416
    %2850 = vmatpush.msra.mxu0 %v412
    %2851 = vmatpush.msra.mxu0 %v408
    %2852 = vmatpush.msra.mxu0 %v404
    %2853 = vmatpush.msra.mxu0 %v400
    %2854 = vmatpush.msra.mxu0 %v396
    %2855 = vmatpush.msra.mxu0 %v392
    %2856 = vmatpush.msra.mxu0 %v388
    %2857 = vmatpush.msra.mxu0 %v384
    %2858 = vmatpush.msra.mxu0 %v380
    %2859 = vmatpush.msra.mxu0 %v376
    %2860 = vmatpush.msra.mxu0 %v372
    %2861 = vmatpush.msra.mxu0 %v368
    %2862 = vmatpush.msra.mxu0 %v364
    %2863 = vmatpush.msra.mxu0 %v360
    %2864 = vmatpush.msra.mxu0 %v356
    %2865 = vmatmul.f32.gmra.mxu0 %v2644
    %v2866 = vpop.f32.mrf.mxu0
    %v2867 = vadd.f32 %v2847, %v2866
    %2868 = vdwg.mxu0
    %2869 = vmatpush.msra.mxu0 %v353
    %2870 = vmatpush.msra.mxu0 %v349
    %2871 = vmatpush.msra.mxu0 %v345
    %2872 = vmatpush.msra.mxu0 %v341
    %2873 = vmatpush.msra.mxu0 %v337
    %2874 = vmatpush.msra.mxu0 %v333
    %2875 = vmatpush.msra.mxu0 %v329
    %2876 = vmatpush.msra.mxu0 %v325
    %2877 = vmatpush.msra.mxu0 %v321
    %2878 = vmatpush.msra.mxu0 %v317
    %2879 = vmatpush.msra.mxu0 %v313
    %2880 = vmatpush.msra.mxu0 %v309
    %2881 = vmatpush.msra.mxu0 %v305
    %2882 = vmatpush.msra.mxu0 %v301
    %2883 = vmatpush.msra.mxu0 %v297
    %2884 = vmatpush.msra.mxu0 %v293
    %2885 = vmatmul.f32.gmra.mxu0 %v2787
    %v2886 = vpop.f32.mrf.mxu0
    %v2887 = vadd.f32 %v423, %v2886
    %2888 = vdwg.mxu0
    %2889 = vmatpush.msra.mxu0 %v417
    %2890 = vmatpush.msra.mxu0 %v413
    %2891 = vmatpush.msra.mxu0 %v409
    %2892 = vmatpush.msra.mxu0 %v405
    %2893 = vmatpush.msra.mxu0 %v401
    %2894 = vmatpush.msra.mxu0 %v397
    %2895 = vmatpush.msra.mxu0 %v393
    %2896 = vmatpush.msra.mxu0 %v389
    %2897 = vmatpush.msra.mxu0 %v385
    %2898 = vmatpush.msra.mxu0 %v381
    %2899 = vmatpush.msra.mxu0 %v377
    %2900 = vmatpush.msra.mxu0 %v373
    %2901 = vmatpush.msra.mxu0 %v369
    %2902 = vmatpush.msra.mxu0 %v365
    %2903 = vmatpush.msra.mxu0 %v361
    %2904 = vmatpush.msra.mxu0 %v357
    %2905 = vmatmul.f32.gmra.mxu0 %v2644
    %v2906 = vpop.f32.mrf.mxu0
    %v2907 = vadd.f32 %v2887, %v2906
    %2908 = vdwg.mxu0
    %2909 = vmatpush.msra.mxu0 %v354
    %2910 = vmatpush.msra.mxu0 %v350
    %2911 = vmatpush.msra.mxu0 %v346
    %2912 = vmatpush.msra.mxu0 %v342
    %2913 = vmatpush.msra.mxu0 %v338
    %2914 = vmatpush.msra.mxu0 %v334
    %2915 = vmatpush.msra.mxu0 %v330
    %2916 = vmatpush.msra.mxu0 %v326
    %2917 = vmatpush.msra.mxu0 %v322
    %2918 = vmatpush.msra.mxu0 %v318
    %2919 = vmatpush.msra.mxu0 %v314
    %2920 = vmatpush.msra.mxu0 %v310
    %2921 = vmatpush.msra.mxu0 %v306
    %2922 = vmatpush.msra.mxu0 %v302
    %2923 = vmatpush.msra.mxu0 %v298
    %2924 = vmatpush.msra.mxu0 %v294
    %2925 = vmatmul.f32.gmra.mxu0 %v2787
    %v2926 = vpop.f32.mrf.mxu0
    %v2927 = vadd.f32 %v424, %v2926
    %2928 = vdwg.mxu0
    %2929 = vmatpush.msra.mxu0 %v418
    %2930 = vmatpush.msra.mxu0 %v414
    %2931 = vmatpush.msra.mxu0 %v410
    %2932 = vmatpush.msra.mxu0 %v406
    %2933 = vmatpush.msra.mxu0 %v402
    %2934 = vmatpush.msra.mxu0 %v398
    %2935 = vmatpush.msra.mxu0 %v394
    %2936 = vmatpush.msra.mxu0 %v390
    %2937 = vmatpush.msra.mxu0 %v386
    %2938 = vmatpush.msra.mxu0 %v382
    %2939 = vmatpush.msra.mxu0 %v378
    %2940 = vmatpush.msra.mxu0 %v374
    %2941 = vmatpush.msra.mxu0 %v370
    %2942 = vmatpush.msra.mxu0 %v366
    %2943 = vmatpush.msra.mxu0 %v362
    %2944 = vmatpush.msra.mxu0 %v358
    %2945 = vmatmul.f32.gmra.mxu0 %v2644
    %v2946 = vpop.f32.mrf.mxu0
    %v2947 = vadd.f32 %v2927, %v2946
    %2948 = vdwg.mxu0
    %v2949 = vxor.u32 %v2827, 2147483648
    %v2950 = vmul.f32 %v2949, 1.442695
    %v2951 = vpow.pop %v2950
    %v2952 = vadd.f32 %v2951, 1.0
    %v2953 = vrcp.pop %v2952
    %v2954 = vmul.f32 %v2952, %v2953
    %v2955 = vsub.f32 1.0, %v2954
    %v2956 = vmul.f32 %v2953, %v2955
    %v2957 = vadd.f32 %v2953, %v2956
    %vm2958 = vweird.f32 %v2952
    %vm2959 = vweird.f32 %v2953
    %vm2960 = vmor %vm2958, %vm2959
    %v2961 = vsel %vm2960, %v2953, %v2957
    %v2962 = vand.u32 2147483647, %v2952
    %vm2963 = vcmp.eq.f32.partialorder %v2962, 8.507059e+37
    %v2964 = vand.u32 %v2952, 2147483648
    %v2965 = vor.u32 1.1754944e-38, %v2964
    %v2966 = vsel %vm2963, %v2965, %v2961
    %v2967 = vmul.f32 1.0, %v2966
    %v2968 = vxor.u32 %v2867, 2147483648
    %v2969 = vmul.f32 %v2968, 1.442695
    %v2970 = vpow.pop %v2969
    %v2971 = vadd.f32 %v2970, 1.0
    %v2972 = vrcp.pop %v2971
    %v2973 = vmul.f32 %v2971, %v2972
    %v2974 = vsub.f32 1.0, %v2973
    %v2975 = vmul.f32 %v2972, %v2974
    %v2976 = vadd.f32 %v2972, %v2975
    %vm2977 = vweird.f32 %v2971
    %vm2978 = vweird.f32 %v2972
    %vm2979 = vmor %vm2977, %vm2978
    %v2980 = vsel %vm2979, %v2972, %v2976
    %v2981 = vand.u32 2147483647, %v2971
    %vm2982 = vcmp.eq.f32.partialorder %v2981, 8.507059e+37
    %v2983 = vand.u32 %v2971, 2147483648
    %v2984 = vor.u32 1.1754944e-38, %v2983
    %v2985 = vsel %vm2982, %v2984, %v2980
    %v2986 = vmul.f32 1.0, %v2985
    %v2987 = vtanh.pop %v2907
    %v2988 = vxor.u32 %v2947, 2147483648
    %v2989 = vmul.f32 %v2988, 1.442695
    %v2990 = vpow.pop %v2989
    %v2991 = vadd.f32 %v2990, 1.0
    %v2992 = vrcp.pop %v2991
    %v2993 = vmul.f32 %v2991, %v2992
    %v2994 = vsub.f32 1.0, %v2993
    %v2995 = vmul.f32 %v2992, %v2994
    %v2996 = vadd.f32 %v2992, %v2995
    %vm2997 = vweird.f32 %v2991
    %vm2998 = vweird.f32 %v2992
    %vm2999 = vmor %vm2997, %vm2998
    %v3000 = vsel %vm2999, %v2992, %v2996
    %v3001 = vand.u32 2147483647, %v2991
    %vm3002 = vcmp.eq.f32.partialorder %v3001, 8.507059e+37
    %v3003 = vand.u32 %v2991, 2147483648
    %v3004 = vor.u32 1.1754944e-38, %v3003
    %v3005 = vsel %vm3002, %v3004, %v3000
    %v3006 = vmul.f32 1.0, %v3005
    %v3007 = vmul.f32 %v2986, %v2642
    %v3008 = vmul.f32 %v2967, %v2987
    %v3009 = vadd.f32 %v3007, %v3008
    %v3010 = vtanh.pop %v3009
    %v3011 = vmul.f32 %v3006, %v3010
    %3012 = vmatpush.msra.mxu0 %v460
    %3013 = vmatpush.msra.mxu0 %v459
    %3014 = vmatpush.msra.mxu0 %v458
    %3015 = vmatpush.msra.mxu0 %v457
    %3016 = vmatpush.msra.mxu0 %v456
    %3017 = vmatpush.msra.mxu0 %v455
    %3018 = vmatpush.msra.mxu0 %v454
    %3019 = vmatpush.msra.mxu0 %v453
    %3020 = vmatpush.msra.mxu0 %v452
    %3021 = vmatpush.msra.mxu0 %v451
    %3022 = vmatpush.msra.mxu0 %v450
    %3023 = vmatpush.msra.mxu0 %v449
    %3024 = vmatpush.msra.mxu0 %v448
    %3025 = vmatpush.msra.mxu0 %v447
    %3026 = vmatpush.msra.mxu0 %v446
    %3027 = vmatpush.msra.mxu0 %v445
    %3028 = vmatmul.f32.gmra.mxu0 %v3011
    %v3029 = vpop.f32.mrf.mxu0
    %v3030 = vadd.f32 0.0, %v3029
    %3031 = vdwg.mxu0
    %v3033 = vrot.slane %v3030, 1
    %v3034 = vperm.slane %v3030, 0
    %v3035 = vperm.slane %v3033, 0
    %v3038 = vadd.f32 %v1687, %v3034
    %v3039 = vadd.f32 %v1688, %v3035
    %v3040 = vtanh.pop %v3038
    %v3041 = vtanh.pop %v3039
    %v3042 = vmul.f32 %v3040, %v1955
    %v3043 = vmul.f32 %v3041, %v1955
    %v3044 = vsel %vm622, %v3042, 0.0
    %3045 = vadd.xlane.f32.xlu0 %v3044
    %v3046 = vpop.xlane.xlu0 %3045
    %v3047 = vsel %vm622, %v3043, 0.0
    %3048 = vadd.xlane.f32.xlu0 %v3047
    %v3049 = vpop.xlane.xlu0 %3048
    %v3051 = vperm.slane %v2784, 0
    %v3052 = vlaneseq
    %v3053 = vshrl.u32 %v3052, 7
    %3055 = vset.pattern.permute.xlu0 %v3053
    %3056 = vperm.xlu0 %3055, %v3051
    %v3057 = vpop.permute.xlu0 %3056
    %v3058 = vperm.slane %v2784, 1
    %v3059 = vlaneseq
    %v3060 = vshrl.u32 %v3059, 7
    %3062 = vset.pattern.permute.xlu0 %v3060
    %3063 = vperm.xlu0 %3062, %v3058
    %v3064 = vpop.permute.xlu0 %3063
    %v3067 = vadd.f32 %v3046, %v3057
    %v3068 = vadd.f32 %v3049, %v3064
    %3071 = vset.pattern.permute.xlu0 0
    %3072 = vperm.xlu0 %3071, %v3067
    %v3073 = vpop.permute.xlu0 %3072
    %3074 = vset.pattern.permute.xlu0 0
    %3075 = vperm.xlu0 %3074, %v3068
    %v3076 = vpop.permute.xlu0 %3075
    %v3077 = vperm.slane %v3073, %v174
    %v3078 = vperm.slane %v3076, %v174
    %v3079 = vsel %vm183, %v3078, %v3077
    %v3081 = vsel %vm1973, %v3079, -inf
    %3082 = vmax.xlane.f32.xlu0 %v3081
    %v3083 = vpop.xlane.xlu0 %3082
    %v3085 = vperm.slane %v3083, 0
    %v3086 = vperm.slane %v3083, 1
    %vm3089 = vcmp.ge.f32.partialorder %v3067, %v3085
    %vm3090 = vcmp.ge.f32.partialorder %v3068, %v3086
    %v3091 = vsel %vm3089, %v1989, 4
    %v3092 = vsel %vm3090, %v1989, 4
    %3093 = vset.pattern.permute.xlu0 0
    %3094 = vperm.xlu0 %3093, %v3091
    %v3095 = vpop.permute.xlu0 %3094
    %3096 = vset.pattern.permute.xlu0 0
    %3097 = vperm.xlu0 %3096, %v3092
    %v3098 = vpop.permute.xlu0 %3097
    %v3099 = vperm.slane %v3095, %v174
    %v3100 = vperm.slane %v3098, %v174
    %v3101 = vsel %vm183, %v3100, %v3099
    %v3102 = vsel %vm1973, %v3101, 2147483647
    %v3103 = vand.u32 %v3102, 65535
    %v3104 = vshra.s32 %v3102, 16
    %v3105 = vcvt.s32.f32 %v3103
    %v3106 = vcvt.s32.f32 %v3104
    %3107 = vmin.xlane.f32.xlu0 %v3106
    %v3108 = vpop.xlane.xlu0 %3107
    %vm3109 = vcmp.eq.f32.partialorder %v3106, %v3108
    %v3110 = vsel %vm3109, %v3105, inf
    %3111 = vmin.xlane.f32.xlu0 %v3110
    %v3112 = vpop.xlane.xlu0 %3111
    %v3113 = vcvt.f32.s32 %v3112
    %v3114 = vcvt.f32.s32 %v3108
    %v3115 = vshll.u32 %v3114, 16
    %v3116 = vadd.s32 %v3115, %v3113
    %v3125 = vsel %vm1682, %v1969, %v2343
    %v3126 = vsel %vm1682, %v1970, %v2344
    %v3127 = vsel %vm1627, %v3125, %v2710
    %v3128 = vsel %vm1627, %v3126, %v2711
    %v3129 = vsel %vm104, %v3127, %v3077
    %v3130 = vsel %vm104, %v3128, %v3078
    %vm3131 = vcmask 27648
    %3132 = vst.msk [vmem:[#allocation2] sm:$0xf] %vm3131, %v3129
    %3133 = vst.msk [vmem:[#allocation2 + $0x4] sm:$0xf] %vm3131, %v3130
    %vm3134 = vcmask 7168
    %v3135 = vsel %vm3134, %v2015, %v2382
    %vm3136 = vcmask 15360
    %v3137 = vsel %vm3136, %v3135, %v2749
    %v3138 = vsel %vm197, %v3137, %v3116
    %3139 = vst.msk [vmem:[#allocation4] sm:$0x3] %vm1973, %v3138
    // Predicated region
    $region50: #{srsc_forward.1} parent=1 // pred_check
      _
    $region51: #{srsc_forward.1} parent=1 // pred_check_branch
      %3141 = sbr.rel (0) target = $region53
    $region52: #{srsc_forward.1} parent=1 // pred_region
      %3143 = vsyncadd [#allocation3], 0
      %s3144 = sshll.u32 [#allocation2], 4
      %s3145 = int_to_ptr.vmem [resolvable:$true] %s3144
      %s3146 = sshll.u32 %s12, 4
      %s3147 = int_to_ptr.hbm [resolvable:$true] %s3146
      %3152 = dma.vmem_to_hbm [thread:$0]  %s3145, 128, %s3147, [#allocation3], 64, 64, 4
    $region53: #{srsc_forward.1} parent=1 // pred_fallthru
      _
    // Predicated region
    $region54: #{srsc_forward.1} parent=1 // pred_check
      _
    $region55: #{srsc_forward.1} parent=1 // pred_check_branch
      %3154 = sbr.rel (0) target = $region57
    $region56: #{srsc_forward.1} parent=1 // pred_region
      %3156 = vsyncadd [#allocation5], 0
      %s3158 = sshll.u32 [#allocation4], 4
      %s3159 = int_to_ptr.vmem [resolvable:$true] %s3158
      %s3160 = sshll.u32 %s13, 4
      %s3161 = int_to_ptr.hbm [resolvable:$true] %s3160
      %3163 = dma.vmem_to_hbm [thread:$0]  %s3159, 32, %s3161, [#allocation5]
    $region57: #{srsc_forward.1} parent=1 // pred_fallthru
      _
    // Predicated region
    $region58: #{srsc_forward.1} parent=1 // pred_check
      _
    $region59: #{srsc_forward.1} parent=1 // pred_check_branch
      %3165 = sbr.rel (0) target = $region61
    $region60: #{srsc_forward.1} parent=1 // pred_region
      %3167 = dma.done [#allocation3], 128
    $region61: #{srsc_forward.1} parent=1 // pred_fallthru
      _
    // Predicated region
    $region62: #{srsc_forward.1} parent=1 // pred_check
      _
    $region63: #{srsc_forward.1} parent=1 // pred_check_branch
      %3169 = sbr.rel (0) target = $region65
    $region64: #{srsc_forward.1} parent=1 // pred_region
      %3171 = dma.done [#allocation5], 32
    $region65: #{srsc_forward.1} parent=1 // pred_fallthru
      _
    %3172 = vsyncpa [#allocation3], 1
    %3173 = vsyncpa [#allocation5], 1

</llo_original>
